<compile_context>
chip_gen: v7x
topology: tpu7x:2x2x1
jax: 0.10.0
libtpu: 0.0.40
codegen_flags: <defaults>
</compile_context>

<pallas_src>
import functools
import math

import jax
import jax.numpy as jnp
from jax import lax
from jax.experimental import pallas as pl
from jax.experimental.pallas import tpu as pltpu

_C = 64       # channel width of every layer in the client block
_EPS = 1e-5   # nn.BatchNorm2d default


# ----------------------------------------------------------------------------
# The fused kernel (everything happens in VMEM)
# ----------------------------------------------------------------------------
def _client_forward_kernel(p1_ref, w1_ref, g1_ref, b1_ref,
                           w2a_ref, g2a_ref, b2a_ref,
                           w2b_ref, g2b_ref, b2b_ref,
                           o_ref, pad_ref,
                           *, N, H1, W1, H2, W2, eps):
    C = _C
    Hp, Wp = H2 + 2, W2 + 2            # zero halo for the 3x3/s1/p1 convs
    M2 = N * H2 * W2

    def bn(y, g_ref, b_ref):
        # Training-mode BatchNorm over the full batch (M = N*H*W rows per channel),
        # single-pass sum / sum^2 statistics, biased variance (PyTorch train norm).
        # TODO(synk): when M is tiled across a grid, aggregate stats over ALL tiles.
        m = y.shape[0]
        mean = jnp.sum(y, axis=0, keepdims=True) * (1.0 / m)
        var = jnp.sum(y * y, axis=0, keepdims=True) * (1.0 / m) - mean * mean
        scale = g_ref[...] * lax.rsqrt(jnp.maximum(var, 0.0) + eps)
        return (y - mean) * scale + b_ref[...]

    # ---------------- layer1: 7x7/s2 conv (pre-gathered im2col) + BN + ReLU --------
    y1 = jnp.dot(p1_ref[...].astype(jnp.bfloat16), w1_ref[...],
                 preferred_element_type=jnp.float32)           # (N*H1*W1, C) f32 acc
    y1 = jnp.maximum(bn(y1, g1_ref, b1_ref), 0.0)

    # ---------------- MaxPool 3x3 / s2 / p1 (fused, static window slices) ----------
    # y1 rows are ordered (n, h, w); no (9, M, C) slab ever touches HBM.
    pooled = []
    for n_ in range(N):
        base = n_ * H1 * W1
        for oh in range(H2):
            hs = [h for h in (2 * oh - 1, 2 * oh, 2 * oh + 1) if 0 <= h < H1]
            hmax = y1[base + hs[0] * W1: base + hs[0] * W1 + W1, :]
            for h in hs[1:]:
                hmax = jnp.maximum(hmax, y1[base + h * W1: base + h * W1 + W1, :])
            row = []
            for ow in range(W2):
                ws = [w for w in (2 * ow - 1, 2 * ow, 2 * ow + 1) if 0 <= w < W1]
                m_ = hmax[ws[0]:ws[0] + 1, :]
                for w in ws[1:]:
                    m_ = jnp.maximum(m_, hmax[w:w + 1, :])
                row.append(m_)
            pooled.append(jnp.concatenate(row, axis=0))        # (W2, C)
    r1 = jnp.concatenate(pooled, axis=0)                       # (M2, C) residual
    # The module's outer F.relu(layer1(x)) is an identity here: the max-pool of
    # ReLU'd values is already >= 0, so no extra elementwise pass is emitted.

    # ---------------- layer-2 3x3 convs: zero-halo scratch + 9 shifted matmuls -----
    pad_ref[...] = jnp.zeros_like(pad_ref)   # halo stays zero; interior rewritten per layer

    def write_interior(act):
        for n_ in range(N):
            for h in range(H2):
                dst = n_ * Hp * Wp + (h + 1) * Wp + 1
                src = n_ * H2 * W2 + h * W2
                pad_ref[dst:dst + W2, :] = act[src:src + W2, :]

    def conv3x3(w_ref):
        # conv = sum over the 9 taps of a shifted (M2, C) @ (C, C) MXU matmul,
        # gathered with static slices straight out of the halo'd VMEM scratch.
        acc = jnp.zeros((M2, C), jnp.float32)
        for di in range(3):
            for dj in range(3):
                rows = []
                for n_ in range(N):
                    for h in range(H2):
                        start = n_ * Hp * Wp + (h + di) * Wp + dj
                        rows.append(pad_ref[start:start + W2, :])
                xs = jnp.concatenate(rows, axis=0).astype(jnp.bfloat16)   # (M2, C)
                tap = (di * 3 + dj) * C
                acc = acc + jnp.dot(xs, w_ref[tap:tap + C, :],
                                    preferred_element_type=jnp.float32)
        return acc

    # layer2a: conv3x3 + BN + ReLU
    write_interior(r1)
    ya = jnp.maximum(bn(conv3x3(w2a_ref), g2a_ref, b2a_ref), 0.0)

    # layer2b: conv3x3 + BN.  (The module's conv bias is dropped: a per-channel
    # constant added before training-mode BN cancels exactly in (y - mean).)
    write_interior(ya)
    yb = bn(conv3x3(w2b_ref), g2b_ref, b2b_ref)

    # residual add + final ReLU
    o_ref[...] = jnp.maximum(yb + r1, 0.0)


# ----------------------------------------------------------------------------
# Wrapper-side glue (pure data movement, plain JAX)
# ----------------------------------------------------------------------------
def im2col(x_nhwc, kh, kw, stride, pad):
    N, H, W, C = x_nhwc.shape
    Ho = (H + 2 * pad - kh) // stride + 1
    Wo = (W + 2 * pad - kw) // stride + 1
    xp = jnp.pad(x_nhwc, ((0, 0), (pad, pad), (pad, pad), (0, 0)))
    cols = []
    for di in range(kh):
        for dj in range(kw):
            cols.append(xp[:, di:di + Ho * stride:stride,
                           dj:dj + Wo * stride:stride, :])
    patches = jnp.concatenate(cols, axis=-1)            # (N, Ho, Wo, kh*kw*C)
    return patches.reshape(N * Ho * Wo, kh * kw * C), (N, Ho, Wo)


def _weight_to_kmajor(w_oihw):
    """PyTorch (Cout, Cin, kh, kw) -> (kh*kw*Cin, Cout), K order = (di, dj, cin)."""
    cout, cin, kh, kw = w_oihw.shape
    return jnp.transpose(w_oihw, (2, 3, 1, 0)).reshape(kh * kw * cin, cout)


# ----------------------------------------------------------------------------
# Parameter init (deterministic, mirrors the module's __init__)
# ----------------------------------------------------------------------------
def init_params(key, input_channels):
    ks = jax.random.split(key, 3)

    def conv_w(k, cout, cin, kh, kw):
        n = kh * kw * cout
        return jax.random.normal(k, (cout, cin, kh, kw), jnp.float32) * math.sqrt(2.0 / n)

    p = {}
    p["w1"] = conv_w(ks[0], _C, input_channels, 7, 7)    # layer1 conv, bias=False
    p["g1"] = jnp.ones((_C,), jnp.float32)
    p["b1"] = jnp.zeros((_C,), jnp.float32)

    p["w2a"] = conv_w(ks[1], _C, _C, 3, 3)               # layer2 conv a, bias=False
    p["g2a"] = jnp.ones((_C,), jnp.float32)
    p["b2a"] = jnp.zeros((_C,), jnp.float32)

    p["w2b"] = conv_w(ks[2], _C, _C, 3, 3)               # layer2 conv b
    # NOTE: the PyTorch conv b has bias=True, but it is followed by training-mode
    # BatchNorm, where a per-channel constant cancels exactly -> omitted (dead work).
    p["g2b"] = jnp.ones((_C,), jnp.float32)
    p["b2b"] = jnp.zeros((_C,), jnp.float32)
    return p


# ----------------------------------------------------------------------------
# Forward pass (matches ResNet18_client_side.forward, training-mode BN)
# ----------------------------------------------------------------------------
def forward(x_nchw, p):
    # PyTorch-facing I/O stays NCHW; internally NHWC so C=64 is lane-dense.
    # TODO(synk): skip both transposes if the server-side consumer accepts NHWC.
    x = jnp.transpose(x_nchw, (0, 2, 3, 1)).astype(jnp.float32)

    # layer-1 im2col (7x7/s2/p3) stays wrapper-side XLA glue; patches passed UNPADDED.
    patches, (N, H1, W1) = im2col(x, 7, 7, 2, 3)
    H2 = (H1 + 2 - 3) // 2 + 1
    W2 = (W1 + 2 - 3) // 2 + 1
    M2 = N * H2 * W2

    kernel = functools.partial(_client_forward_kernel,
                               N=N, H1=H1, W1=W1, H2=H2, W2=W2, eps=_EPS)
    out = pl.pallas_call(
        kernel,
        out_shape=jax.ShapeDtypeStruct((M2, _C), jnp.float32),
        scratch_shapes=[pltpu.VMEM((N * (H2 + 2) * (W2 + 2), _C), jnp.float32)],
    )(patches,
      _weight_to_kmajor(p["w1"]).astype(jnp.bfloat16),
      p["g1"].reshape(1, _C), p["b1"].reshape(1, _C),
      _weight_to_kmajor(p["w2a"]).astype(jnp.bfloat16),
      p["g2a"].reshape(1, _C), p["b2a"].reshape(1, _C),
      _weight_to_kmajor(p["w2b"]).astype(jnp.bfloat16),
      p["g2b"].reshape(1, _C), p["b2b"].reshape(1, _C))

    out4 = out.reshape(N, H2, W2, _C)
    return jnp.transpose(out4, (0, 3, 1, 2))             # back to NCHW


# ----------------------------------------------------------------------------
if __name__ == "__main__":
    key = jax.random.PRNGKey(0)
    k_x, k_p = jax.random.split(key)

    input_channels = 4
    x = jax.random.normal(k_x, (2, input_channels, 16, 16), jnp.float32)
    params = init_params(k_p, input_channels)

    out = jax.jit(forward)(x, params)
    out = jax.block_until_ready(out)

    assert out.shape == (2, 64, 4, 4), out.shape
    assert out.dtype == jnp.float32
    assert bool(jnp.all(jnp.isfinite(out)))
    assert bool(jnp.all(out >= 0.0))                      # final ReLU
    print("KERNEL_OK")
</pallas_src>

<mosaic_0001>
module attributes {stable_mosaic.version = 11 : i64} {
  func.func @_client_forward_kernel(%arg0: memref<128x196xf32, #tpu.memory_space<vmem>>, %arg1: memref<196x64xbf16, #tpu.memory_space<vmem>>, %arg2: memref<1x64xf32, #tpu.memory_space<vmem>>, %arg3: memref<1x64xf32, #tpu.memory_space<vmem>>, %arg4: memref<576x64xbf16, #tpu.memory_space<vmem>>, %arg5: memref<1x64xf32, #tpu.memory_space<vmem>>, %arg6: memref<1x64xf32, #tpu.memory_space<vmem>>, %arg7: memref<576x64xbf16, #tpu.memory_space<vmem>>, %arg8: memref<1x64xf32, #tpu.memory_space<vmem>>, %arg9: memref<1x64xf32, #tpu.memory_space<vmem>>, %arg10: memref<32x64xf32, #tpu.memory_space<vmem>>, %arg11: memref<72x64xf32, #tpu.memory_space<vmem>>) attributes {dimension_semantics = [], scalar_prefetch = 0 : i64, scratch_operands = 1 : i64, tpu.core_type = #tpu.core_type<tc>} {
    %c0 = arith.constant 0 : index
    %c0_0 = arith.constant 0 : index
    %0 = vector.load %arg0[%c0, %c0_0] : memref<128x196xf32, #tpu.memory_space<vmem>>, vector<128x196xf32>
    %1 = arith.truncf %0 : vector<128x196xf32> to vector<128x196xbf16>
    %c0_1 = arith.constant 0 : index
    %c0_2 = arith.constant 0 : index
    %2 = vector.load %arg1[%c0_1, %c0_2] : memref<196x64xbf16, #tpu.memory_space<vmem>>, vector<196x64xbf16>
    %cst = arith.constant dense<0.000000e+00> : vector<128x64xf32>
    %3 = tpu.matmul %1, %2, %cst {dimension_numbers = #tpu.dot_dimension_numbers<[1], [0], [0], [1], [0, 0, 1, 1], [], []>} : vector<128x196xbf16>, vector<196x64xbf16>, vector<128x64xf32> -> vector<128x64xf32>
    %cst_3 = arith.constant dense<0.000000e+00> : vector<64xf32>
    %4 = vector.multi_reduction <add>, %3, %cst_3 [0] : vector<128x64xf32> to vector<64xf32>
    %5 = vector.shape_cast %4 : vector<64xf32> to vector<1x64xf32>
    %cst_4 = arith.constant 7.812500e-03 : f32
    %6 = vector.broadcast %cst_4 : f32 to vector<1x64xf32>
    %7 = arith.mulf %5, %6 : vector<1x64xf32>
    %8 = arith.mulf %3, %3 : vector<128x64xf32>
    %cst_5 = arith.constant dense<0.000000e+00> : vector<64xf32>
    %9 = vector.multi_reduction <add>, %8, %cst_5 [0] : vector<128x64xf32> to vector<64xf32>
    %10 = vector.shape_cast %9 : vector<64xf32> to vector<1x64xf32>
    %cst_6 = arith.constant 7.812500e-03 : f32
    %11 = vector.broadcast %cst_6 : f32 to vector<1x64xf32>
    %12 = arith.mulf %10, %11 : vector<1x64xf32>
    %13 = arith.mulf %7, %7 : vector<1x64xf32>
    %14 = arith.subf %12, %13 : vector<1x64xf32>
    %c0_7 = arith.constant 0 : index
    %c0_8 = arith.constant 0 : index
    %15 = vector.load %arg2[%c0_7, %c0_8] : memref<1x64xf32, #tpu.memory_space<vmem>>, vector<1x64xf32>
    %cst_9 = arith.constant 0.000000e+00 : f32
    %16 = vector.broadcast %cst_9 : f32 to vector<1x64xf32>
    %17 = arith.maximumf %14, %16 : vector<1x64xf32>
    %cst_10 = arith.constant 9.99999974E-6 : f32
    %18 = vector.broadcast %cst_10 : f32 to vector<1x64xf32>
    %19 = arith.addf %17, %18 : vector<1x64xf32>
    %20 = math.rsqrt %19 : vector<1x64xf32>
    %21 = arith.mulf %15, %20 : vector<1x64xf32>
    %22 = vector.broadcast %7 : vector<1x64xf32> to vector<128x64xf32>
    %23 = arith.subf %3, %22 : vector<128x64xf32>
    %24 = vector.broadcast %21 : vector<1x64xf32> to vector<128x64xf32>
    %25 = arith.mulf %23, %24 : vector<128x64xf32>
    %c0_11 = arith.constant 0 : index
    %c0_12 = arith.constant 0 : index
    %26 = vector.load %arg3[%c0_11, %c0_12] : memref<1x64xf32, #tpu.memory_space<vmem>>, vector<1x64xf32>
    %27 = vector.broadcast %26 : vector<1x64xf32> to vector<128x64xf32>
    %28 = arith.addf %25, %27 : vector<128x64xf32>
    %cst_13 = arith.constant 0.000000e+00 : f32
    %29 = vector.broadcast %cst_13 : f32 to vector<128x64xf32>
    %30 = arith.maximumf %28, %29 : vector<128x64xf32>
    %31 = vector.extract_strided_slice %30 {offsets = [0, 0], sizes = [8, 64], strides = [1, 1]} : vector<128x64xf32> to vector<8x64xf32>
    %32 = vector.extract_strided_slice %30 {offsets = [8, 0], sizes = [8, 64], strides = [1, 1]} : vector<128x64xf32> to vector<8x64xf32>
    %33 = arith.maximumf %31, %32 : vector<8x64xf32>
    %34 = vector.extract_strided_slice %33 {offsets = [0, 0], sizes = [1, 64], strides = [1, 1]} : vector<8x64xf32> to vector<1x64xf32>
    %35 = vector.extract_strided_slice %33 {offsets = [1, 0], sizes = [1, 64], strides = [1, 1]} : vector<8x64xf32> to vector<1x64xf32>
    %36 = arith.maximumf %34, %35 : vector<1x64xf32>
    %37 = vector.extract_strided_slice %33 {offsets = [1, 0], sizes = [1, 64], strides = [1, 1]} : vector<8x64xf32> to vector<1x64xf32>
    %38 = vector.extract_strided_slice %33 {offsets = [2, 0], sizes = [1, 64], strides = [1, 1]} : vector<8x64xf32> to vector<1x64xf32>
    %39 = arith.maximumf %37, %38 : vector<1x64xf32>
    %40 = vector.extract_strided_slice %33 {offsets = [3, 0], sizes = [1, 64], strides = [1, 1]} : vector<8x64xf32> to vector<1x64xf32>
    %41 = arith.maximumf %39, %40 : vector<1x64xf32>
    %42 = vector.extract_strided_slice %33 {offsets = [3, 0], sizes = [1, 64], strides = [1, 1]} : vector<8x64xf32> to vector<1x64xf32>
    %43 = vector.extract_strided_slice %33 {offsets = [4, 0], sizes = [1, 64], strides = [1, 1]} : vector<8x64xf32> to vector<1x64xf32>
    %44 = arith.maximumf %42, %43 : vector<1x64xf32>
    %45 = vector.extract_strided_slice %33 {offsets = [5, 0], sizes = [1, 64], strides = [1, 1]} : vector<8x64xf32> to vector<1x64xf32>
    %46 = arith.maximumf %44, %45 : vector<1x64xf32>
    %47 = vector.extract_strided_slice %33 {offsets = [5, 0], sizes = [1, 64], strides = [1, 1]} : vector<8x64xf32> to vector<1x64xf32>
    %48 = vector.extract_strided_slice %33 {offsets = [6, 0], sizes = [1, 64], strides = [1, 1]} : vector<8x64xf32> to vector<1x64xf32>
    %49 = arith.maximumf %47, %48 : vector<1x64xf32>
    %50 = vector.extract_strided_slice %33 {offsets = [7, 0], sizes = [1, 64], strides = [1, 1]} : vector<8x64xf32> to vector<1x64xf32>
    %51 = arith.maximumf %49, %50 : vector<1x64xf32>
    %52 = tpu.concatenate %36, %41, %46, %51 in 0 : vector<1x64xf32>, vector<1x64xf32>, vector<1x64xf32>, vector<1x64xf32> -> vector<4x64xf32>
    %53 = vector.extract_strided_slice %30 {offsets = [8, 0], sizes = [8, 64], strides = [1, 1]} : vector<128x64xf32> to vector<8x64xf32>
    %54 = vector.extract_strided_slice %30 {offsets = [16, 0], sizes = [8, 64], strides = [1, 1]} : vector<128x64xf32> to vector<8x64xf32>
    %55 = arith.maximumf %53, %54 : vector<8x64xf32>
    %56 = vector.extract_strided_slice %30 {offsets = [24, 0], sizes = [8, 64], strides = [1, 1]} : vector<128x64xf32> to vector<8x64xf32>
    %57 = arith.maximumf %55, %56 : vector<8x64xf32>
    %58 = vector.extract_strided_slice %57 {offsets = [0, 0], sizes = [1, 64], strides = [1, 1]} : vector<8x64xf32> to vector<1x64xf32>
    %59 = vector.extract_strided_slice %57 {offsets = [1, 0], sizes = [1, 64], strides = [1, 1]} : vector<8x64xf32> to vector<1x64xf32>
    %60 = arith.maximumf %58, %59 : vector<1x64xf32>
    %61 = vector.extract_strided_slice %57 {offsets = [1, 0], sizes = [1, 64], strides = [1, 1]} : vector<8x64xf32> to vector<1x64xf32>
    %62 = vector.extract_strided_slice %57 {offsets = [2, 0], sizes = [1, 64], strides = [1, 1]} : vector<8x64xf32> to vector<1x64xf32>
    %63 = arith.maximumf %61, %62 : vector<1x64xf32>
    %64 = vector.extract_strided_slice %57 {offsets = [3, 0], sizes = [1, 64], strides = [1, 1]} : vector<8x64xf32> to vector<1x64xf32>
    %65 = arith.maximumf %63, %64 : vector<1x64xf32>
    %66 = vector.extract_strided_slice %57 {offsets = [3, 0], sizes = [1, 64], strides = [1, 1]} : vector<8x64xf32> to vector<1x64xf32>
    %67 = vector.extract_strided_slice %57 {offsets = [4, 0], sizes = [1, 64], strides = [1, 1]} : vector<8x64xf32> to vector<1x64xf32>
    %68 = arith.maximumf %66, %67 : vector<1x64xf32>
    %69 = vector.extract_strided_slice %57 {offsets = [5, 0], sizes = [1, 64], strides = [1, 1]} : vector<8x64xf32> to vector<1x64xf32>
    %70 = arith.maximumf %68, %69 : vector<1x64xf32>
    %71 = vector.extract_strided_slice %57 {offsets = [5, 0], sizes = [1, 64], strides = [1, 1]} : vector<8x64xf32> to vector<1x64xf32>
    %72 = vector.extract_strided_slice %57 {offsets = [6, 0], sizes = [1, 64], strides = [1, 1]} : vector<8x64xf32> to vector<1x64xf32>
    %73 = arith.maximumf %71, %72 : vector<1x64xf32>
    %74 = vector.extract_strided_slice %57 {offsets = [7, 0], sizes = [1, 64], strides = [1, 1]} : vector<8x64xf32> to vector<1x64xf32>
    %75 = arith.maximumf %73, %74 : vector<1x64xf32>
    %76 = tpu.concatenate %60, %65, %70, %75 in 0 : vector<1x64xf32>, vector<1x64xf32>, vector<1x64xf32>, vector<1x64xf32> -> vector<4x64xf32>
    %77 = vector.extract_strided_slice %30 {offsets = [24, 0], sizes = [8, 64], strides = [1, 1]} : vector<128x64xf32> to vector<8x64xf32>
    %78 = vector.extract_strided_slice %30 {offsets = [32, 0], sizes = [8, 64], strides = [1, 1]} : vector<128x64xf32> to vector<8x64xf32>
    %79 = arith.maximumf %77, %78 : vector<8x64xf32>
    %80 = vector.extract_strided_slice %30 {offsets = [40, 0], sizes = [8, 64], strides = [1, 1]} : vector<128x64xf32> to vector<8x64xf32>
    %81 = arith.maximumf %79, %80 : vector<8x64xf32>
    %82 = vector.extract_strided_slice %81 {offsets = [0, 0], sizes = [1, 64], strides = [1, 1]} : vector<8x64xf32> to vector<1x64xf32>
    %83 = vector.extract_strided_slice %81 {offsets = [1, 0], sizes = [1, 64], strides = [1, 1]} : vector<8x64xf32> to vector<1x64xf32>
    %84 = arith.maximumf %82, %83 : vector<1x64xf32>
    %85 = vector.extract_strided_slice %81 {offsets = [1, 0], sizes = [1, 64], strides = [1, 1]} : vector<8x64xf32> to vector<1x64xf32>
    %86 = vector.extract_strided_slice %81 {offsets = [2, 0], sizes = [1, 64], strides = [1, 1]} : vector<8x64xf32> to vector<1x64xf32>
    %87 = arith.maximumf %85, %86 : vector<1x64xf32>
    %88 = vector.extract_strided_slice %81 {offsets = [3, 0], sizes = [1, 64], strides = [1, 1]} : vector<8x64xf32> to vector<1x64xf32>
    %89 = arith.maximumf %87, %88 : vector<1x64xf32>
    %90 = vector.extract_strided_slice %81 {offsets = [3, 0], sizes = [1, 64], strides = [1, 1]} : vector<8x64xf32> to vector<1x64xf32>
    %91 = vector.extract_strided_slice %81 {offsets = [4, 0], sizes = [1, 64], strides = [1, 1]} : vector<8x64xf32> to vector<1x64xf32>
    %92 = arith.maximumf %90, %91 : vector<1x64xf32>
    %93 = vector.extract_strided_slice %81 {offsets = [5, 0], sizes = [1, 64], strides = [1, 1]} : vector<8x64xf32> to vector<1x64xf32>
    %94 = arith.maximumf %92, %93 : vector<1x64xf32>
    %95 = vector.extract_strided_slice %81 {offsets = [5, 0], sizes = [1, 64], strides = [1, 1]} : vector<8x64xf32> to vector<1x64xf32>
    %96 = vector.extract_strided_slice %81 {offsets = [6, 0], sizes = [1, 64], strides = [1, 1]} : vector<8x64xf32> to vector<1x64xf32>
    %97 = arith.maximumf %95, %96 : vector<1x64xf32>
    %98 = vector.extract_strided_slice %81 {offsets = [7, 0], sizes = [1, 64], strides = [1, 1]} : vector<8x64xf32> to vector<1x64xf32>
    %99 = arith.maximumf %97, %98 : vector<1x64xf32>
    %100 = tpu.concatenate %84, %89, %94, %99 in 0 : vector<1x64xf32>, vector<1x64xf32>, vector<1x64xf32>, vector<1x64xf32> -> vector<4x64xf32>
    %101 = vector.extract_strided_slice %30 {offsets = [40, 0], sizes = [8, 64], strides = [1, 1]} : vector<128x64xf32> to vector<8x64xf32>
    %102 = vector.extract_strided_slice %30 {offsets = [48, 0], sizes = [8, 64], strides = [1, 1]} : vector<128x64xf32> to vector<8x64xf32>
    %103 = arith.maximumf %101, %102 : vector<8x64xf32>
    %104 = vector.extract_strided_slice %30 {offsets = [56, 0], sizes = [8, 64], strides = [1, 1]} : vector<128x64xf32> to vector<8x64xf32>
    %105 = arith.maximumf %103, %104 : vector<8x64xf32>
    %106 = vector.extract_strided_slice %105 {offsets = [0, 0], sizes = [1, 64], strides = [1, 1]} : vector<8x64xf32> to vector<1x64xf32>
    %107 = vector.extract_strided_slice %105 {offsets = [1, 0], sizes = [1, 64], strides = [1, 1]} : vector<8x64xf32> to vector<1x64xf32>
    %108 = arith.maximumf %106, %107 : vector<1x64xf32>
    %109 = vector.extract_strided_slice %105 {offsets = [1, 0], sizes = [1, 64], strides = [1, 1]} : vector<8x64xf32> to vector<1x64xf32>
    %110 = vector.extract_strided_slice %105 {offsets = [2, 0], sizes = [1, 64], strides = [1, 1]} : vector<8x64xf32> to vector<1x64xf32>
    %111 = arith.maximumf %109, %110 : vector<1x64xf32>
    %112 = vector.extract_strided_slice %105 {offsets = [3, 0], sizes = [1, 64], strides = [1, 1]} : vector<8x64xf32> to vector<1x64xf32>
    %113 = arith.maximumf %111, %112 : vector<1x64xf32>
    %114 = vector.extract_strided_slice %105 {offsets = [3, 0], sizes = [1, 64], strides = [1, 1]} : vector<8x64xf32> to vector<1x64xf32>
    %115 = vector.extract_strided_slice %105 {offsets = [4, 0], sizes = [1, 64], strides = [1, 1]} : vector<8x64xf32> to vector<1x64xf32>
    %116 = arith.maximumf %114, %115 : vector<1x64xf32>
    %117 = vector.extract_strided_slice %105 {offsets = [5, 0], sizes = [1, 64], strides = [1, 1]} : vector<8x64xf32> to vector<1x64xf32>
    %118 = arith.maximumf %116, %117 : vector<1x64xf32>
    %119 = vector.extract_strided_slice %105 {offsets = [5, 0], sizes = [1, 64], strides = [1, 1]} : vector<8x64xf32> to vector<1x64xf32>
    %120 = vector.extract_strided_slice %105 {offsets = [6, 0], sizes = [1, 64], strides = [1, 1]} : vector<8x64xf32> to vector<1x64xf32>
    %121 = arith.maximumf %119, %120 : vector<1x64xf32>
    %122 = vector.extract_strided_slice %105 {offsets = [7, 0], sizes = [1, 64], strides = [1, 1]} : vector<8x64xf32> to vector<1x64xf32>
    %123 = arith.maximumf %121, %122 : vector<1x64xf32>
    %124 = tpu.concatenate %108, %113, %118, %123 in 0 : vector<1x64xf32>, vector<1x64xf32>, vector<1x64xf32>, vector<1x64xf32> -> vector<4x64xf32>
    %125 = vector.extract_strided_slice %30 {offsets = [64, 0], sizes = [8, 64], strides = [1, 1]} : vector<128x64xf32> to vector<8x64xf32>
    %126 = vector.extract_strided_slice %30 {offsets = [72, 0], sizes = [8, 64], strides = [1, 1]} : vector<128x64xf32> to vector<8x64xf32>
    %127 = arith.maximumf %125, %126 : vector<8x64xf32>
    %128 = vector.extract_strided_slice %127 {offsets = [0, 0], sizes = [1, 64], strides = [1, 1]} : vector<8x64xf32> to vector<1x64xf32>
    %129 = vector.extract_strided_slice %127 {offsets = [1, 0], sizes = [1, 64], strides = [1, 1]} : vector<8x64xf32> to vector<1x64xf32>
    %130 = arith.maximumf %128, %129 : vector<1x64xf32>
    %131 = vector.extract_strided_slice %127 {offsets = [1, 0], sizes = [1, 64], strides = [1, 1]} : vector<8x64xf32> to vector<1x64xf32>
    %132 = vector.extract_strided_slice %127 {offsets = [2, 0], sizes = [1, 64], strides = [1, 1]} : vector<8x64xf32> to vector<1x64xf32>
    %133 = arith.maximumf %131, %132 : vector<1x64xf32>
    %134 = vector.extract_strided_slice %127 {offsets = [3, 0], sizes = [1, 64], strides = [1, 1]} : vector<8x64xf32> to vector<1x64xf32>
    %135 = arith.maximumf %133, %134 : vector<1x64xf32>
    %136 = vector.extract_strided_slice %127 {offsets = [3, 0], sizes = [1, 64], strides = [1, 1]} : vector<8x64xf32> to vector<1x64xf32>
    %137 = vector.extract_strided_slice %127 {offsets = [4, 0], sizes = [1, 64], strides = [1, 1]} : vector<8x64xf32> to vector<1x64xf32>
    %138 = arith.maximumf %136, %137 : vector<1x64xf32>
    %139 = vector.extract_strided_slice %127 {offsets = [5, 0], sizes = [1, 64], strides = [1, 1]} : vector<8x64xf32> to vector<1x64xf32>
    %140 = arith.maximumf %138, %139 : vector<1x64xf32>
    %141 = vector.extract_strided_slice %127 {offsets = [5, 0], sizes = [1, 64], strides = [1, 1]} : vector<8x64xf32> to vector<1x64xf32>
    %142 = vector.extract_strided_slice %127 {offsets = [6, 0], sizes = [1, 64], strides = [1, 1]} : vector<8x64xf32> to vector<1x64xf32>
    %143 = arith.maximumf %141, %142 : vector<1x64xf32>
    %144 = vector.extract_strided_slice %127 {offsets = [7, 0], sizes = [1, 64], strides = [1, 1]} : vector<8x64xf32> to vector<1x64xf32>
    %145 = arith.maximumf %143, %144 : vector<1x64xf32>
    %146 = tpu.concatenate %130, %135, %140, %145 in 0 : vector<1x64xf32>, vector<1x64xf32>, vector<1x64xf32>, vector<1x64xf32> -> vector<4x64xf32>
    %147 = vector.extract_strided_slice %30 {offsets = [72, 0], sizes = [8, 64], strides = [1, 1]} : vector<128x64xf32> to vector<8x64xf32>
    %148 = vector.extract_strided_slice %30 {offsets = [80, 0], sizes = [8, 64], strides = [1, 1]} : vector<128x64xf32> to vector<8x64xf32>
    %149 = arith.maximumf %147, %148 : vector<8x64xf32>
    %150 = vector.extract_strided_slice %30 {offsets = [88, 0], sizes = [8, 64], strides = [1, 1]} : vector<128x64xf32> to vector<8x64xf32>
    %151 = arith.maximumf %149, %150 : vector<8x64xf32>
    %152 = vector.extract_strided_slice %151 {offsets = [0, 0], sizes = [1, 64], strides = [1, 1]} : vector<8x64xf32> to vector<1x64xf32>
    %153 = vector.extract_strided_slice %151 {offsets = [1, 0], sizes = [1, 64], strides = [1, 1]} : vector<8x64xf32> to vector<1x64xf32>
    %154 = arith.maximumf %152, %153 : vector<1x64xf32>
    %155 = vector.extract_strided_slice %151 {offsets = [1, 0], sizes = [1, 64], strides = [1, 1]} : vector<8x64xf32> to vector<1x64xf32>
    %156 = vector.extract_strided_slice %151 {offsets = [2, 0], sizes = [1, 64], strides = [1, 1]} : vector<8x64xf32> to vector<1x64xf32>
    %157 = arith.maximumf %155, %156 : vector<1x64xf32>
    %158 = vector.extract_strided_slice %151 {offsets = [3, 0], sizes = [1, 64], strides = [1, 1]} : vector<8x64xf32> to vector<1x64xf32>
    %159 = arith.maximumf %157, %158 : vector<1x64xf32>
    %160 = vector.extract_strided_slice %151 {offsets = [3, 0], sizes = [1, 64], strides = [1, 1]} : vector<8x64xf32> to vector<1x64xf32>
    %161 = vector.extract_strided_slice %151 {offsets = [4, 0], sizes = [1, 64], strides = [1, 1]} : vector<8x64xf32> to vector<1x64xf32>
    %162 = arith.maximumf %160, %161 : vector<1x64xf32>
    %163 = vector.extract_strided_slice %151 {offsets = [5, 0], sizes = [1, 64], strides = [1, 1]} : vector<8x64xf32> to vector<1x64xf32>
    %164 = arith.maximumf %162, %163 : vector<1x64xf32>
    %165 = vector.extract_strided_slice %151 {offsets = [5, 0], sizes = [1, 64], strides = [1, 1]} : vector<8x64xf32> to vector<1x64xf32>
    %166 = vector.extract_strided_slice %151 {offsets = [6, 0], sizes = [1, 64], strides = [1, 1]} : vector<8x64xf32> to vector<1x64xf32>
    %167 = arith.maximumf %165, %166 : vector<1x64xf32>
    %168 = vector.extract_strided_slice %151 {offsets = [7, 0], sizes = [1, 64], strides = [1, 1]} : vector<8x64xf32> to vector<1x64xf32>
    %169 = arith.maximumf %167, %168 : vector<1x64xf32>
    %170 = tpu.concatenate %154, %159, %164, %169 in 0 : vector<1x64xf32>, vector<1x64xf32>, vector<1x64xf32>, vector<1x64xf32> -> vector<4x64xf32>
    %171 = vector.extract_strided_slice %30 {offsets = [88, 0], sizes = [8, 64], strides = [1, 1]} : vector<128x64xf32> to vector<8x64xf32>
    %172 = vector.extract_strided_slice %30 {offsets = [96, 0], sizes = [8, 64], strides = [1, 1]} : vector<128x64xf32> to vector<8x64xf32>
    %173 = arith.maximumf %171, %172 : vector<8x64xf32>
    %174 = vector.extract_strided_slice %30 {offsets = [104, 0], sizes = [8, 64], strides = [1, 1]} : vector<128x64xf32> to vector<8x64xf32>
    %175 = arith.maximumf %173, %174 : vector<8x64xf32>
    %176 = vector.extract_strided_slice %175 {offsets = [0, 0], sizes = [1, 64], strides = [1, 1]} : vector<8x64xf32> to vector<1x64xf32>
    %177 = vector.extract_strided_slice %175 {offsets = [1, 0], sizes = [1, 64], strides = [1, 1]} : vector<8x64xf32> to vector<1x64xf32>
    %178 = arith.maximumf %176, %177 : vector<1x64xf32>
    %179 = vector.extract_strided_slice %175 {offsets = [1, 0], sizes = [1, 64], strides = [1, 1]} : vector<8x64xf32> to vector<1x64xf32>
    %180 = vector.extract_strided_slice %175 {offsets = [2, 0], sizes = [1, 64], strides = [1, 1]} : vector<8x64xf32> to vector<1x64xf32>
    %181 = arith.maximumf %179, %180 : vector<1x64xf32>
    %182 = vector.extract_strided_slice %175 {offsets = [3, 0], sizes = [1, 64], strides = [1, 1]} : vector<8x64xf32> to vector<1x64xf32>
    %183 = arith.maximumf %181, %182 : vector<1x64xf32>
    %184 = vector.extract_strided_slice %175 {offsets = [3, 0], sizes = [1, 64], strides = [1, 1]} : vector<8x64xf32> to vector<1x64xf32>
    %185 = vector.extract_strided_slice %175 {offsets = [4, 0], sizes = [1, 64], strides = [1, 1]} : vector<8x64xf32> to vector<1x64xf32>
    %186 = arith.maximumf %184, %185 : vector<1x64xf32>
    %187 = vector.extract_strided_slice %175 {offsets = [5, 0], sizes = [1, 64], strides = [1, 1]} : vector<8x64xf32> to vector<1x64xf32>
    %188 = arith.maximumf %186, %187 : vector<1x64xf32>
    %189 = vector.extract_strided_slice %175 {offsets = [5, 0], sizes = [1, 64], strides = [1, 1]} : vector<8x64xf32> to vector<1x64xf32>
    %190 = vector.extract_strided_slice %175 {offsets = [6, 0], sizes = [1, 64], strides = [1, 1]} : vector<8x64xf32> to vector<1x64xf32>
    %191 = arith.maximumf %189, %190 : vector<1x64xf32>
    %192 = vector.extract_strided_slice %175 {offsets = [7, 0], sizes = [1, 64], strides = [1, 1]} : vector<8x64xf32> to vector<1x64xf32>
    %193 = arith.maximumf %191, %192 : vector<1x64xf32>
    %194 = tpu.concatenate %178, %183, %188, %193 in 0 : vector<1x64xf32>, vector<1x64xf32>, vector<1x64xf32>, vector<1x64xf32> -> vector<4x64xf32>
    %195 = vector.extract_strided_slice %30 {offsets = [104, 0], sizes = [8, 64], strides = [1, 1]} : vector<128x64xf32> to vector<8x64xf32>
    %196 = vector.extract_strided_slice %30 {offsets = [112, 0], sizes = [8, 64], strides = [1, 1]} : vector<128x64xf32> to vector<8x64xf32>
    %197 = arith.maximumf %195, %196 : vector<8x64xf32>
    %198 = vector.extract_strided_slice %30 {offsets = [120, 0], sizes = [8, 64], strides = [1, 1]} : vector<128x64xf32> to vector<8x64xf32>
    %199 = arith.maximumf %197, %198 : vector<8x64xf32>
    %200 = vector.extract_strided_slice %199 {offsets = [0, 0], sizes = [1, 64], strides = [1, 1]} : vector<8x64xf32> to vector<1x64xf32>
    %201 = vector.extract_strided_slice %199 {offsets = [1, 0], sizes = [1, 64], strides = [1, 1]} : vector<8x64xf32> to vector<1x64xf32>
    %202 = arith.maximumf %200, %201 : vector<1x64xf32>
    %203 = vector.extract_strided_slice %199 {offsets = [1, 0], sizes = [1, 64], strides = [1, 1]} : vector<8x64xf32> to vector<1x64xf32>
    %204 = vector.extract_strided_slice %199 {offsets = [2, 0], sizes = [1, 64], strides = [1, 1]} : vector<8x64xf32> to vector<1x64xf32>
    %205 = arith.maximumf %203, %204 : vector<1x64xf32>
    %206 = vector.extract_strided_slice %199 {offsets = [3, 0], sizes = [1, 64], strides = [1, 1]} : vector<8x64xf32> to vector<1x64xf32>
    %207 = arith.maximumf %205, %206 : vector<1x64xf32>
    %208 = vector.extract_strided_slice %199 {offsets = [3, 0], sizes = [1, 64], strides = [1, 1]} : vector<8x64xf32> to vector<1x64xf32>
    %209 = vector.extract_strided_slice %199 {offsets = [4, 0], sizes = [1, 64], strides = [1, 1]} : vector<8x64xf32> to vector<1x64xf32>
    %210 = arith.maximumf %208, %209 : vector<1x64xf32>
    %211 = vector.extract_strided_slice %199 {offsets = [5, 0], sizes = [1, 64], strides = [1, 1]} : vector<8x64xf32> to vector<1x64xf32>
    %212 = arith.maximumf %210, %211 : vector<1x64xf32>
    %213 = vector.extract_strided_slice %199 {offsets = [5, 0], sizes = [1, 64], strides = [1, 1]} : vector<8x64xf32> to vector<1x64xf32>
    %214 = vector.extract_strided_slice %199 {offsets = [6, 0], sizes = [1, 64], strides = [1, 1]} : vector<8x64xf32> to vector<1x64xf32>
    %215 = arith.maximumf %213, %214 : vector<1x64xf32>
    %216 = vector.extract_strided_slice %199 {offsets = [7, 0], sizes = [1, 64], strides = [1, 1]} : vector<8x64xf32> to vector<1x64xf32>
    %217 = arith.maximumf %215, %216 : vector<1x64xf32>
    %218 = tpu.concatenate %202, %207, %212, %217 in 0 : vector<1x64xf32>, vector<1x64xf32>, vector<1x64xf32>, vector<1x64xf32> -> vector<4x64xf32>
    %219 = tpu.concatenate %52, %76, %100, %124, %146, %170, %194, %218 in 0 : vector<4x64xf32>, vector<4x64xf32>, vector<4x64xf32>, vector<4x64xf32>, vector<4x64xf32>, vector<4x64xf32>, vector<4x64xf32>, vector<4x64xf32> -> vector<32x64xf32>
    %cst_14 = arith.constant 0.000000e+00 : f32
    %220 = vector.broadcast %cst_14 : f32 to vector<72x64xf32>
    %c0_15 = arith.constant 0 : index
    %c0_16 = arith.constant 0 : index
    %221 = vector.load %arg11[%c0_15, %c0_16] : memref<72x64xf32, #tpu.memory_space<vmem>>, vector<72x64xf32>
    tpu.vector_store %arg11[%c0_15, %c0_16], %220 {strides = array<i32>} : memref<72x64xf32, #tpu.memory_space<vmem>>, vector<72x64xf32>,
    %222 = vector.extract_strided_slice %219 {offsets = [0, 0], sizes = [4, 64], strides = [1, 1]} : vector<32x64xf32> to vector<4x64xf32>
    %c7 = arith.constant 7 : index
    %c0_17 = arith.constant 0 : index
    %223 = vector.load %arg11[%c7, %c0_17] : memref<72x64xf32, #tpu.memory_space<vmem>>, vector<4x64xf32>
    tpu.vector_store %arg11[%c7, %c0_17], %222 {strides = array<i32>} : memref<72x64xf32, #tpu.memory_space<vmem>>, vector<4x64xf32>,
    %224 = vector.extract_strided_slice %219 {offsets = [4, 0], sizes = [4, 64], strides = [1, 1]} : vector<32x64xf32> to vector<4x64xf32>
    %c13 = arith.constant 13 : index
    %c0_18 = arith.constant 0 : index
    %225 = vector.load %arg11[%c13, %c0_18] : memref<72x64xf32, #tpu.memory_space<vmem>>, vector<4x64xf32>
    tpu.vector_store %arg11[%c13, %c0_18], %224 {strides = array<i32>} : memref<72x64xf32, #tpu.memory_space<vmem>>, vector<4x64xf32>,
    %226 = vector.extract_strided_slice %219 {offsets = [8, 0], sizes = [4, 64], strides = [1, 1]} : vector<32x64xf32> to vector<4x64xf32>
    %c19 = arith.constant 19 : index
    %c0_19 = arith.constant 0 : index
    %227 = vector.load %arg11[%c19, %c0_19] : memref<72x64xf32, #tpu.memory_space<vmem>>, vector<4x64xf32>
    tpu.vector_store %arg11[%c19, %c0_19], %226 {strides = array<i32>} : memref<72x64xf32, #tpu.memory_space<vmem>>, vector<4x64xf32>,
    %228 = vector.extract_strided_slice %219 {offsets = [12, 0], sizes = [4, 64], strides = [1, 1]} : vector<32x64xf32> to vector<4x64xf32>
    %c25 = arith.constant 25 : index
    %c0_20 = arith.constant 0 : index
    %229 = vector.load %arg11[%c25, %c0_20] : memref<72x64xf32, #tpu.memory_space<vmem>>, vector<4x64xf32>
    tpu.vector_store %arg11[%c25, %c0_20], %228 {strides = array<i32>} : memref<72x64xf32, #tpu.memory_space<vmem>>, vector<4x64xf32>,
    %230 = vector.extract_strided_slice %219 {offsets = [16, 0], sizes = [4, 64], strides = [1, 1]} : vector<32x64xf32> to vector<4x64xf32>
    %c43 = arith.constant 43 : index
    %c0_21 = arith.constant 0 : index
    %231 = vector.load %arg11[%c43, %c0_21] : memref<72x64xf32, #tpu.memory_space<vmem>>, vector<4x64xf32>
    tpu.vector_store %arg11[%c43, %c0_21], %230 {strides = array<i32>} : memref<72x64xf32, #tpu.memory_space<vmem>>, vector<4x64xf32>,
    %232 = vector.extract_strided_slice %219 {offsets = [20, 0], sizes = [4, 64], strides = [1, 1]} : vector<32x64xf32> to vector<4x64xf32>
    %c49 = arith.constant 49 : index
    %c0_22 = arith.constant 0 : index
    %233 = vector.load %arg11[%c49, %c0_22] : memref<72x64xf32, #tpu.memory_space<vmem>>, vector<4x64xf32>
    tpu.vector_store %arg11[%c49, %c0_22], %232 {strides = array<i32>} : memref<72x64xf32, #tpu.memory_space<vmem>>, vector<4x64xf32>,
    %234 = vector.extract_strided_slice %219 {offsets = [24, 0], sizes = [4, 64], strides = [1, 1]} : vector<32x64xf32> to vector<4x64xf32>
    %c55 = arith.constant 55 : index
    %c0_23 = arith.constant 0 : index
    %235 = vector.load %arg11[%c55, %c0_23] : memref<72x64xf32, #tpu.memory_space<vmem>>, vector<4x64xf32>
    tpu.vector_store %arg11[%c55, %c0_23], %234 {strides = array<i32>} : memref<72x64xf32, #tpu.memory_space<vmem>>, vector<4x64xf32>,
    %236 = vector.extract_strided_slice %219 {offsets = [28, 0], sizes = [4, 64], strides = [1, 1]} : vector<32x64xf32> to vector<4x64xf32>
    %c61 = arith.constant 61 : index
    %c0_24 = arith.constant 0 : index
    %237 = vector.load %arg11[%c61, %c0_24] : memref<72x64xf32, #tpu.memory_space<vmem>>, vector<4x64xf32>
    tpu.vector_store %arg11[%c61, %c0_24], %236 {strides = array<i32>} : memref<72x64xf32, #tpu.memory_space<vmem>>, vector<4x64xf32>,
    %cst_25 = arith.constant 0.000000e+00 : f32
    %238 = vector.broadcast %cst_25 : f32 to vector<32x64xf32>
    %c0_26 = arith.constant 0 : index
    %c0_27 = arith.constant 0 : index
    %239 = vector.load %arg11[%c0_26, %c0_27] : memref<72x64xf32, #tpu.memory_space<vmem>>, vector<4x64xf32>
    %c6 = arith.constant 6 : index
    %c0_28 = arith.constant 0 : index
    %240 = vector.load %arg11[%c6, %c0_28] : memref<72x64xf32, #tpu.memory_space<vmem>>, vector<4x64xf32>
    %c12 = arith.constant 12 : index
    %c0_29 = arith.constant 0 : index
    %241 = vector.load %arg11[%c12, %c0_29] : memref<72x64xf32, #tpu.memory_space<vmem>>, vector<4x64xf32>
    %c18 = arith.constant 18 : index
    %c0_30 = arith.constant 0 : index
    %242 = vector.load %arg11[%c18, %c0_30] : memref<72x64xf32, #tpu.memory_space<vmem>>, vector<4x64xf32>
    %c36 = arith.constant 36 : index
    %c0_31 = arith.constant 0 : index
    %243 = vector.load %arg11[%c36, %c0_31] : memref<72x64xf32, #tpu.memory_space<vmem>>, vector<4x64xf32>
    %c42 = arith.constant 42 : index
    %c0_32 = arith.constant 0 : index
    %244 = vector.load %arg11[%c42, %c0_32] : memref<72x64xf32, #tpu.memory_space<vmem>>, vector<4x64xf32>
    %c48 = arith.constant 48 : index
    %c0_33 = arith.constant 0 : index
    %245 = vector.load %arg11[%c48, %c0_33] : memref<72x64xf32, #tpu.memory_space<vmem>>, vector<4x64xf32>
    %c54 = arith.constant 54 : index
    %c0_34 = arith.constant 0 : index
    %246 = vector.load %arg11[%c54, %c0_34] : memref<72x64xf32, #tpu.memory_space<vmem>>, vector<4x64xf32>
    %247 = tpu.concatenate %239, %240, %241, %242, %243, %244, %245, %246 in 0 : vector<4x64xf32>, vector<4x64xf32>, vector<4x64xf32>, vector<4x64xf32>, vector<4x64xf32>, vector<4x64xf32>, vector<4x64xf32>, vector<4x64xf32> -> vector<32x64xf32>
    %248 = arith.truncf %247 : vector<32x64xf32> to vector<32x64xbf16>
    %c0_35 = arith.constant 0 : index
    %c0_36 = arith.constant 0 : index
    %249 = vector.load %arg4[%c0_35, %c0_36] : memref<576x64xbf16, #tpu.memory_space<vmem>>, vector<64x64xbf16>
    %cst_37 = arith.constant dense<0.000000e+00> : vector<32x64xf32>
    %250 = tpu.matmul %248, %249, %cst_37 {dimension_numbers = #tpu.dot_dimension_numbers<[1], [0], [0], [1], [0, 0, 1, 1], [], []>} : vector<32x64xbf16>, vector<64x64xbf16>, vector<32x64xf32> -> vector<32x64xf32>
    %251 = arith.addf %238, %250 : vector<32x64xf32>
    %c1 = arith.constant 1 : index
    %c0_38 = arith.constant 0 : index
    %252 = vector.load %arg11[%c1, %c0_38] : memref<72x64xf32, #tpu.memory_space<vmem>>, vector<4x64xf32>
    %c7_39 = arith.constant 7 : index
    %c0_40 = arith.constant 0 : index
    %253 = vector.load %arg11[%c7_39, %c0_40] : memref<72x64xf32, #tpu.memory_space<vmem>>, vector<4x64xf32>
    %c13_41 = arith.constant 13 : index
    %c0_42 = arith.constant 0 : index
    %254 = vector.load %arg11[%c13_41, %c0_42] : memref<72x64xf32, #tpu.memory_space<vmem>>, vector<4x64xf32>
    %c19_43 = arith.constant 19 : index
    %c0_44 = arith.constant 0 : index
    %255 = vector.load %arg11[%c19_43, %c0_44] : memref<72x64xf32, #tpu.memory_space<vmem>>, vector<4x64xf32>
    %c37 = arith.constant 37 : index
    %c0_45 = arith.constant 0 : index
    %256 = vector.load %arg11[%c37, %c0_45] : memref<72x64xf32, #tpu.memory_space<vmem>>, vector<4x64xf32>
    %c43_46 = arith.constant 43 : index
    %c0_47 = arith.constant 0 : index
    %257 = vector.load %arg11[%c43_46, %c0_47] : memref<72x64xf32, #tpu.memory_space<vmem>>, vector<4x64xf32>
    %c49_48 = arith.constant 49 : index
    %c0_49 = arith.constant 0 : index
    %258 = vector.load %arg11[%c49_48, %c0_49] : memref<72x64xf32, #tpu.memory_space<vmem>>, vector<4x64xf32>
    %c55_50 = arith.constant 55 : index
    %c0_51 = arith.constant 0 : index
    %259 = vector.load %arg11[%c55_50, %c0_51] : memref<72x64xf32, #tpu.memory_space<vmem>>, vector<4x64xf32>
    %260 = tpu.concatenate %252, %253, %254, %255, %256, %257, %258, %259 in 0 : vector<4x64xf32>, vector<4x64xf32>, vector<4x64xf32>, vector<4x64xf32>, vector<4x64xf32>, vector<4x64xf32>, vector<4x64xf32>, vector<4x64xf32> -> vector<32x64xf32>
    %261 = arith.truncf %260 : vector<32x64xf32> to vector<32x64xbf16>
    %c64 = arith.constant 64 : index
    %c0_52 = arith.constant 0 : index
    %262 = vector.load %arg4[%c64, %c0_52] : memref<576x64xbf16, #tpu.memory_space<vmem>>, vector<64x64xbf16>
    %cst_53 = arith.constant dense<0.000000e+00> : vector<32x64xf32>
    %263 = tpu.matmul %261, %262, %cst_53 {dimension_numbers = #tpu.dot_dimension_numbers<[1], [0], [0], [1], [0, 0, 1, 1], [], []>} : vector<32x64xbf16>, vector<64x64xbf16>, vector<32x64xf32> -> vector<32x64xf32>
    %264 = arith.addf %251, %263 : vector<32x64xf32>
    %c2 = arith.constant 2 : index
    %c0_54 = arith.constant 0 : index
    %265 = vector.load %arg11[%c2, %c0_54] : memref<72x64xf32, #tpu.memory_space<vmem>>, vector<4x64xf32>
    %c8 = arith.constant 8 : index
    %c0_55 = arith.constant 0 : index
    %266 = vector.load %arg11[%c8, %c0_55] : memref<72x64xf32, #tpu.memory_space<vmem>>, vector<4x64xf32>
    %c14 = arith.constant 14 : index
    %c0_56 = arith.constant 0 : index
    %267 = vector.load %arg11[%c14, %c0_56] : memref<72x64xf32, #tpu.memory_space<vmem>>, vector<4x64xf32>
    %c20 = arith.constant 20 : index
    %c0_57 = arith.constant 0 : index
    %268 = vector.load %arg11[%c20, %c0_57] : memref<72x64xf32, #tpu.memory_space<vmem>>, vector<4x64xf32>
    %c38 = arith.constant 38 : index
    %c0_58 = arith.constant 0 : index
    %269 = vector.load %arg11[%c38, %c0_58] : memref<72x64xf32, #tpu.memory_space<vmem>>, vector<4x64xf32>
    %c44 = arith.constant 44 : index
    %c0_59 = arith.constant 0 : index
    %270 = vector.load %arg11[%c44, %c0_59] : memref<72x64xf32, #tpu.memory_space<vmem>>, vector<4x64xf32>
    %c50 = arith.constant 50 : index
    %c0_60 = arith.constant 0 : index
    %271 = vector.load %arg11[%c50, %c0_60] : memref<72x64xf32, #tpu.memory_space<vmem>>, vector<4x64xf32>
    %c56 = arith.constant 56 : index
    %c0_61 = arith.constant 0 : index
    %272 = vector.load %arg11[%c56, %c0_61] : memref<72x64xf32, #tpu.memory_space<vmem>>, vector<4x64xf32>
    %273 = tpu.concatenate %265, %266, %267, %268, %269, %270, %271, %272 in 0 : vector<4x64xf32>, vector<4x64xf32>, vector<4x64xf32>, vector<4x64xf32>, vector<4x64xf32>, vector<4x64xf32>, vector<4x64xf32>, vector<4x64xf32> -> vector<32x64xf32>
    %274 = arith.truncf %273 : vector<32x64xf32> to vector<32x64xbf16>
    %c128 = arith.constant 128 : index
    %c0_62 = arith.constant 0 : index
    %275 = vector.load %arg4[%c128, %c0_62] : memref<576x64xbf16, #tpu.memory_space<vmem>>, vector<64x64xbf16>
    %cst_63 = arith.constant dense<0.000000e+00> : vector<32x64xf32>
    %276 = tpu.matmul %274, %275, %cst_63 {dimension_numbers = #tpu.dot_dimension_numbers<[1], [0], [0], [1], [0, 0, 1, 1], [], []>} : vector<32x64xbf16>, vector<64x64xbf16>, vector<32x64xf32> -> vector<32x64xf32>
    %277 = arith.addf %264, %276 : vector<32x64xf32>
    %c6_64 = arith.constant 6 : index
    %c0_65 = arith.constant 0 : index
    %278 = vector.load %arg11[%c6_64, %c0_65] : memref<72x64xf32, #tpu.memory_space<vmem>>, vector<4x64xf32>
    %c12_66 = arith.constant 12 : index
    %c0_67 = arith.constant 0 : index
    %279 = vector.load %arg11[%c12_66, %c0_67] : memref<72x64xf32, #tpu.memory_space<vmem>>, vector<4x64xf32>
    %c18_68 = arith.constant 18 : index
    %c0_69 = arith.constant 0 : index
    %280 = vector.load %arg11[%c18_68, %c0_69] : memref<72x64xf32, #tpu.memory_space<vmem>>, vector<4x64xf32>
    %c24 = arith.constant 24 : index
    %c0_70 = arith.constant 0 : index
    %281 = vector.load %arg11[%c24, %c0_70] : memref<72x64xf32, #tpu.memory_space<vmem>>, vector<4x64xf32>
    %c42_71 = arith.constant 42 : index
    %c0_72 = arith.constant 0 : index
    %282 = vector.load %arg11[%c42_71, %c0_72] : memref<72x64xf32, #tpu.memory_space<vmem>>, vector<4x64xf32>
    %c48_73 = arith.constant 48 : index
    %c0_74 = arith.constant 0 : index
    %283 = vector.load %arg11[%c48_73, %c0_74] : memref<72x64xf32, #tpu.memory_space<vmem>>, vector<4x64xf32>
    %c54_75 = arith.constant 54 : index
    %c0_76 = arith.constant 0 : index
    %284 = vector.load %arg11[%c54_75, %c0_76] : memref<72x64xf32, #tpu.memory_space<vmem>>, vector<4x64xf32>
    %c60 = arith.constant 60 : index
    %c0_77 = arith.constant 0 : index
    %285 = vector.load %arg11[%c60, %c0_77] : memref<72x64xf32, #tpu.memory_space<vmem>>, vector<4x64xf32>
    %286 = tpu.concatenate %278, %279, %280, %281, %282, %283, %284, %285 in 0 : vector<4x64xf32>, vector<4x64xf32>, vector<4x64xf32>, vector<4x64xf32>, vector<4x64xf32>, vector<4x64xf32>, vector<4x64xf32>, vector<4x64xf32> -> vector<32x64xf32>
    %287 = arith.truncf %286 : vector<32x64xf32> to vector<32x64xbf16>
    %c192 = arith.constant 192 : index
    %c0_78 = arith.constant 0 : index
    %288 = vector.load %arg4[%c192, %c0_78] : memref<576x64xbf16, #tpu.memory_space<vmem>>, vector<64x64xbf16>
    %cst_79 = arith.constant dense<0.000000e+00> : vector<32x64xf32>
    %289 = tpu.matmul %287, %288, %cst_79 {dimension_numbers = #tpu.dot_dimension_numbers<[1], [0], [0], [1], [0, 0, 1, 1], [], []>} : vector<32x64xbf16>, vector<64x64xbf16>, vector<32x64xf32> -> vector<32x64xf32>
    %290 = arith.addf %277, %289 : vector<32x64xf32>
    %c7_80 = arith.constant 7 : index
    %c0_81 = arith.constant 0 : index
    %291 = vector.load %arg11[%c7_80, %c0_81] : memref<72x64xf32, #tpu.memory_space<vmem>>, vector<4x64xf32>
    %c13_82 = arith.constant 13 : index
    %c0_83 = arith.constant 0 : index
    %292 = vector.load %arg11[%c13_82, %c0_83] : memref<72x64xf32, #tpu.memory_space<vmem>>, vector<4x64xf32>
    %c19_84 = arith.constant 19 : index
    %c0_85 = arith.constant 0 : index
    %293 = vector.load %arg11[%c19_84, %c0_85] : memref<72x64xf32, #tpu.memory_space<vmem>>, vector<4x64xf32>
    %c25_86 = arith.constant 25 : index
    %c0_87 = arith.constant 0 : index
    %294 = vector.load %arg11[%c25_86, %c0_87] : memref<72x64xf32, #tpu.memory_space<vmem>>, vector<4x64xf32>
    %c43_88 = arith.constant 43 : index
    %c0_89 = arith.constant 0 : index
    %295 = vector.load %arg11[%c43_88, %c0_89] : memref<72x64xf32, #tpu.memory_space<vmem>>, vector<4x64xf32>
    %c49_90 = arith.constant 49 : index
    %c0_91 = arith.constant 0 : index
    %296 = vector.load %arg11[%c49_90, %c0_91] : memref<72x64xf32, #tpu.memory_space<vmem>>, vector<4x64xf32>
    %c55_92 = arith.constant 55 : index
    %c0_93 = arith.constant 0 : index
    %297 = vector.load %arg11[%c55_92, %c0_93] : memref<72x64xf32, #tpu.memory_space<vmem>>, vector<4x64xf32>
    %c61_94 = arith.constant 61 : index
    %c0_95 = arith.constant 0 : index
    %298 = vector.load %arg11[%c61_94, %c0_95] : memref<72x64xf32, #tpu.memory_space<vmem>>, vector<4x64xf32>
    %299 = tpu.concatenate %291, %292, %293, %294, %295, %296, %297, %298 in 0 : vector<4x64xf32>, vector<4x64xf32>, vector<4x64xf32>, vector<4x64xf32>, vector<4x64xf32>, vector<4x64xf32>, vector<4x64xf32>, vector<4x64xf32> -> vector<32x64xf32>
    %300 = arith.truncf %299 : vector<32x64xf32> to vector<32x64xbf16>
    %c256 = arith.constant 256 : index
    %c0_96 = arith.constant 0 : index
    %301 = vector.load %arg4[%c256, %c0_96] : memref<576x64xbf16, #tpu.memory_space<vmem>>, vector<64x64xbf16>
    %cst_97 = arith.constant dense<0.000000e+00> : vector<32x64xf32>
    %302 = tpu.matmul %300, %301, %cst_97 {dimension_numbers = #tpu.dot_dimension_numbers<[1], [0], [0], [1], [0, 0, 1, 1], [], []>} : vector<32x64xbf16>, vector<64x64xbf16>, vector<32x64xf32> -> vector<32x64xf32>
    %303 = arith.addf %290, %302 : vector<32x64xf32>
    %c8_98 = arith.constant 8 : index
    %c0_99 = arith.constant 0 : index
    %304 = vector.load %arg11[%c8_98, %c0_99] : memref<72x64xf32, #tpu.memory_space<vmem>>, vector<4x64xf32>
    %c14_100 = arith.constant 14 : index
    %c0_101 = arith.constant 0 : index
    %305 = vector.load %arg11[%c14_100, %c0_101] : memref<72x64xf32, #tpu.memory_space<vmem>>, vector<4x64xf32>
    %c20_102 = arith.constant 20 : index
    %c0_103 = arith.constant 0 : index
    %306 = vector.load %arg11[%c20_102, %c0_103] : memref<72x64xf32, #tpu.memory_space<vmem>>, vector<4x64xf32>
    %c26 = arith.constant 26 : index
    %c0_104 = arith.constant 0 : index
    %307 = vector.load %arg11[%c26, %c0_104] : memref<72x64xf32, #tpu.memory_space<vmem>>, vector<4x64xf32>
    %c44_105 = arith.constant 44 : index
    %c0_106 = arith.constant 0 : index
    %308 = vector.load %arg11[%c44_105, %c0_106] : memref<72x64xf32, #tpu.memory_space<vmem>>, vector<4x64xf32>
    %c50_107 = arith.constant 50 : index
    %c0_108 = arith.constant 0 : index
    %309 = vector.load %arg11[%c50_107, %c0_108] : memref<72x64xf32, #tpu.memory_space<vmem>>, vector<4x64xf32>
    %c56_109 = arith.constant 56 : index
    %c0_110 = arith.constant 0 : index
    %310 = vector.load %arg11[%c56_109, %c0_110] : memref<72x64xf32, #tpu.memory_space<vmem>>, vector<4x64xf32>
    %c62 = arith.constant 62 : index
    %c0_111 = arith.constant 0 : index
    %311 = vector.load %arg11[%c62, %c0_111] : memref<72x64xf32, #tpu.memory_space<vmem>>, vector<4x64xf32>
    %312 = tpu.concatenate %304, %305, %306, %307, %308, %309, %310, %311 in 0 : vector<4x64xf32>, vector<4x64xf32>, vector<4x64xf32>, vector<4x64xf32>, vector<4x64xf32>, vector<4x64xf32>, vector<4x64xf32>, vector<4x64xf32> -> vector<32x64xf32>
    %313 = arith.truncf %312 : vector<32x64xf32> to vector<32x64xbf16>
    %c320 = arith.constant 320 : index
    %c0_112 = arith.constant 0 : index
    %314 = vector.load %arg4[%c320, %c0_112] : memref<576x64xbf16, #tpu.memory_space<vmem>>, vector<64x64xbf16>
    %cst_113 = arith.constant dense<0.000000e+00> : vector<32x64xf32>
    %315 = tpu.matmul %313, %314, %cst_113 {dimension_numbers = #tpu.dot_dimension_numbers<[1], [0], [0], [1], [0, 0, 1, 1], [], []>} : vector<32x64xbf16>, vector<64x64xbf16>, vector<32x64xf32> -> vector<32x64xf32>
    %316 = arith.addf %303, %315 : vector<32x64xf32>
    %c12_114 = arith.constant 12 : index
    %c0_115 = arith.constant 0 : index
    %317 = vector.load %arg11[%c12_114, %c0_115] : memref<72x64xf32, #tpu.memory_space<vmem>>, vector<4x64xf32>
    %c18_116 = arith.constant 18 : index
    %c0_117 = arith.constant 0 : index
    %318 = vector.load %arg11[%c18_116, %c0_117] : memref<72x64xf32, #tpu.memory_space<vmem>>, vector<4x64xf32>
    %c24_118 = arith.constant 24 : index
    %c0_119 = arith.constant 0 : index
    %319 = vector.load %arg11[%c24_118, %c0_119] : memref<72x64xf32, #tpu.memory_space<vmem>>, vector<4x64xf32>
    %c30 = arith.constant 30 : index
    %c0_120 = arith.constant 0 : index
    %320 = vector.load %arg11[%c30, %c0_120] : memref<72x64xf32, #tpu.memory_space<vmem>>, vector<4x64xf32>
    %c48_121 = arith.constant 48 : index
    %c0_122 = arith.constant 0 : index
    %321 = vector.load %arg11[%c48_121, %c0_122] : memref<72x64xf32, #tpu.memory_space<vmem>>, vector<4x64xf32>
    %c54_123 = arith.constant 54 : index
    %c0_124 = arith.constant 0 : index
    %322 = vector.load %arg11[%c54_123, %c0_124] : memref<72x64xf32, #tpu.memory_space<vmem>>, vector<4x64xf32>
    %c60_125 = arith.constant 60 : index
    %c0_126 = arith.constant 0 : index
    %323 = vector.load %arg11[%c60_125, %c0_126] : memref<72x64xf32, #tpu.memory_space<vmem>>, vector<4x64xf32>
    %c66 = arith.constant 66 : index
    %c0_127 = arith.constant 0 : index
    %324 = vector.load %arg11[%c66, %c0_127] : memref<72x64xf32, #tpu.memory_space<vmem>>, vector<4x64xf32>
    %325 = tpu.concatenate %317, %318, %319, %320, %321, %322, %323, %324 in 0 : vector<4x64xf32>, vector<4x64xf32>, vector<4x64xf32>, vector<4x64xf32>, vector<4x64xf32>, vector<4x64xf32>, vector<4x64xf32>, vector<4x64xf32> -> vector<32x64xf32>
    %326 = arith.truncf %325 : vector<32x64xf32> to vector<32x64xbf16>
    %c384 = arith.constant 384 : index
    %c0_128 = arith.constant 0 : index
    %327 = vector.load %arg4[%c384, %c0_128] : memref<576x64xbf16, #tpu.memory_space<vmem>>, vector<64x64xbf16>
    %cst_129 = arith.constant dense<0.000000e+00> : vector<32x64xf32>
    %328 = tpu.matmul %326, %327, %cst_129 {dimension_numbers = #tpu.dot_dimension_numbers<[1], [0], [0], [1], [0, 0, 1, 1], [], []>} : vector<32x64xbf16>, vector<64x64xbf16>, vector<32x64xf32> -> vector<32x64xf32>
    %329 = arith.addf %316, %328 : vector<32x64xf32>
    %c13_130 = arith.constant 13 : index
    %c0_131 = arith.constant 0 : index
    %330 = vector.load %arg11[%c13_130, %c0_131] : memref<72x64xf32, #tpu.memory_space<vmem>>, vector<4x64xf32>
    %c19_132 = arith.constant 19 : index
    %c0_133 = arith.constant 0 : index
    %331 = vector.load %arg11[%c19_132, %c0_133] : memref<72x64xf32, #tpu.memory_space<vmem>>, vector<4x64xf32>
    %c25_134 = arith.constant 25 : index
    %c0_135 = arith.constant 0 : index
    %332 = vector.load %arg11[%c25_134, %c0_135] : memref<72x64xf32, #tpu.memory_space<vmem>>, vector<4x64xf32>
    %c31 = arith.constant 31 : index
    %c0_136 = arith.constant 0 : index
    %333 = vector.load %arg11[%c31, %c0_136] : memref<72x64xf32, #tpu.memory_space<vmem>>, vector<4x64xf32>
    %c49_137 = arith.constant 49 : index
    %c0_138 = arith.constant 0 : index
    %334 = vector.load %arg11[%c49_137, %c0_138] : memref<72x64xf32, #tpu.memory_space<vmem>>, vector<4x64xf32>
    %c55_139 = arith.constant 55 : index
    %c0_140 = arith.constant 0 : index
    %335 = vector.load %arg11[%c55_139, %c0_140] : memref<72x64xf32, #tpu.memory_space<vmem>>, vector<4x64xf32>
    %c61_141 = arith.constant 61 : index
    %c0_142 = arith.constant 0 : index
    %336 = vector.load %arg11[%c61_141, %c0_142] : memref<72x64xf32, #tpu.memory_space<vmem>>, vector<4x64xf32>
    %c67 = arith.constant 67 : index
    %c0_143 = arith.constant 0 : index
    %337 = vector.load %arg11[%c67, %c0_143] : memref<72x64xf32, #tpu.memory_space<vmem>>, vector<4x64xf32>
    %338 = tpu.concatenate %330, %331, %332, %333, %334, %335, %336, %337 in 0 : vector<4x64xf32>, vector<4x64xf32>, vector<4x64xf32>, vector<4x64xf32>, vector<4x64xf32>, vector<4x64xf32>, vector<4x64xf32>, vector<4x64xf32> -> vector<32x64xf32>
    %339 = arith.truncf %338 : vector<32x64xf32> to vector<32x64xbf16>
    %c448 = arith.constant 448 : index
    %c0_144 = arith.constant 0 : index
    %340 = vector.load %arg4[%c448, %c0_144] : memref<576x64xbf16, #tpu.memory_space<vmem>>, vector<64x64xbf16>
    %cst_145 = arith.constant dense<0.000000e+00> : vector<32x64xf32>
    %341 = tpu.matmul %339, %340, %cst_145 {dimension_numbers = #tpu.dot_dimension_numbers<[1], [0], [0], [1], [0, 0, 1, 1], [], []>} : vector<32x64xbf16>, vector<64x64xbf16>, vector<32x64xf32> -> vector<32x64xf32>
    %342 = arith.addf %329, %341 : vector<32x64xf32>
    %c14_146 = arith.constant 14 : index
    %c0_147 = arith.constant 0 : index
    %343 = vector.load %arg11[%c14_146, %c0_147] : memref<72x64xf32, #tpu.memory_space<vmem>>, vector<4x64xf32>
    %c20_148 = arith.constant 20 : index
    %c0_149 = arith.constant 0 : index
    %344 = vector.load %arg11[%c20_148, %c0_149] : memref<72x64xf32, #tpu.memory_space<vmem>>, vector<4x64xf32>
    %c26_150 = arith.constant 26 : index
    %c0_151 = arith.constant 0 : index
    %345 = vector.load %arg11[%c26_150, %c0_151] : memref<72x64xf32, #tpu.memory_space<vmem>>, vector<4x64xf32>
    %c32 = arith.constant 32 : index
    %c0_152 = arith.constant 0 : index
    %346 = vector.load %arg11[%c32, %c0_152] : memref<72x64xf32, #tpu.memory_space<vmem>>, vector<4x64xf32>
    %c50_153 = arith.constant 50 : index
    %c0_154 = arith.constant 0 : index
    %347 = vector.load %arg11[%c50_153, %c0_154] : memref<72x64xf32, #tpu.memory_space<vmem>>, vector<4x64xf32>
    %c56_155 = arith.constant 56 : index
    %c0_156 = arith.constant 0 : index
    %348 = vector.load %arg11[%c56_155, %c0_156] : memref<72x64xf32, #tpu.memory_space<vmem>>, vector<4x64xf32>
    %c62_157 = arith.constant 62 : index
    %c0_158 = arith.constant 0 : index
    %349 = vector.load %arg11[%c62_157, %c0_158] : memref<72x64xf32, #tpu.memory_space<vmem>>, vector<4x64xf32>
    %c68 = arith.constant 68 : index
    %c0_159 = arith.constant 0 : index
    %350 = vector.load %arg11[%c68, %c0_159] : memref<72x64xf32, #tpu.memory_space<vmem>>, vector<4x64xf32>
    %351 = tpu.concatenate %343, %344, %345, %346, %347, %348, %349, %350 in 0 : vector<4x64xf32>, vector<4x64xf32>, vector<4x64xf32>, vector<4x64xf32>, vector<4x64xf32>, vector<4x64xf32>, vector<4x64xf32>, vector<4x64xf32> -> vector<32x64xf32>
    %352 = arith.truncf %351 : vector<32x64xf32> to vector<32x64xbf16>
    %c512 = arith.constant 512 : index
    %c0_160 = arith.constant 0 : index
    %353 = vector.load %arg4[%c512, %c0_160] : memref<576x64xbf16, #tpu.memory_space<vmem>>, vector<64x64xbf16>
    %cst_161 = arith.constant dense<0.000000e+00> : vector<32x64xf32>
    %354 = tpu.matmul %352, %353, %cst_161 {dimension_numbers = #tpu.dot_dimension_numbers<[1], [0], [0], [1], [0, 0, 1, 1], [], []>} : vector<32x64xbf16>, vector<64x64xbf16>, vector<32x64xf32> -> vector<32x64xf32>
    %355 = arith.addf %342, %354 : vector<32x64xf32>
    %cst_162 = arith.constant dense<0.000000e+00> : vector<64xf32>
    %356 = vector.multi_reduction <add>, %355, %cst_162 [0] : vector<32x64xf32> to vector<64xf32>
    %357 = vector.shape_cast %356 : vector<64xf32> to vector<1x64xf32>
    %cst_163 = arith.constant 3.125000e-02 : f32
    %358 = vector.broadcast %cst_163 : f32 to vector<1x64xf32>
    %359 = arith.mulf %357, %358 : vector<1x64xf32>
    %360 = arith.mulf %355, %355 : vector<32x64xf32>
    %cst_164 = arith.constant dense<0.000000e+00> : vector<64xf32>
    %361 = vector.multi_reduction <add>, %360, %cst_164 [0] : vector<32x64xf32> to vector<64xf32>
    %362 = vector.shape_cast %361 : vector<64xf32> to vector<1x64xf32>
    %cst_165 = arith.constant 3.125000e-02 : f32
    %363 = vector.broadcast %cst_165 : f32 to vector<1x64xf32>
    %364 = arith.mulf %362, %363 : vector<1x64xf32>
    %365 = arith.mulf %359, %359 : vector<1x64xf32>
    %366 = arith.subf %364, %365 : vector<1x64xf32>
    %c0_166 = arith.constant 0 : index
    %c0_167 = arith.constant 0 : index
    %367 = vector.load %arg5[%c0_166, %c0_167] : memref<1x64xf32, #tpu.memory_space<vmem>>, vector<1x64xf32>
    %cst_168 = arith.constant 0.000000e+00 : f32
    %368 = vector.broadcast %cst_168 : f32 to vector<1x64xf32>
    %369 = arith.maximumf %366, %368 : vector<1x64xf32>
    %cst_169 = arith.constant 9.99999974E-6 : f32
    %370 = vector.broadcast %cst_169 : f32 to vector<1x64xf32>
    %371 = arith.addf %369, %370 : vector<1x64xf32>
    %372 = math.rsqrt %371 : vector<1x64xf32>
    %373 = arith.mulf %367, %372 : vector<1x64xf32>
    %374 = vector.broadcast %359 : vector<1x64xf32> to vector<32x64xf32>
    %375 = arith.subf %355, %374 : vector<32x64xf32>
    %376 = vector.broadcast %373 : vector<1x64xf32> to vector<32x64xf32>
    %377 = arith.mulf %375, %376 : vector<32x64xf32>
    %c0_170 = arith.constant 0 : index
    %c0_171 = arith.constant 0 : index
    %378 = vector.load %arg6[%c0_170, %c0_171] : memref<1x64xf32, #tpu.memory_space<vmem>>, vector<1x64xf32>
    %379 = vector.broadcast %378 : vector<1x64xf32> to vector<32x64xf32>
    %380 = arith.addf %377, %379 : vector<32x64xf32>
    %cst_172 = arith.constant 0.000000e+00 : f32
    %381 = vector.broadcast %cst_172 : f32 to vector<32x64xf32>
    %382 = arith.maximumf %380, %381 : vector<32x64xf32>
    %383 = vector.extract_strided_slice %382 {offsets = [0, 0], sizes = [4, 64], strides = [1, 1]} : vector<32x64xf32> to vector<4x64xf32>
    %c7_173 = arith.constant 7 : index
    %c0_174 = arith.constant 0 : index
    %384 = vector.load %arg11[%c7_173, %c0_174] : memref<72x64xf32, #tpu.memory_space<vmem>>, vector<4x64xf32>
    tpu.vector_store %arg11[%c7_173, %c0_174], %383 {strides = array<i32>} : memref<72x64xf32, #tpu.memory_space<vmem>>, vector<4x64xf32>,
    %385 = vector.extract_strided_slice %382 {offsets = [4, 0], sizes = [4, 64], strides = [1, 1]} : vector<32x64xf32> to vector<4x64xf32>
    %c13_175 = arith.constant 13 : index
    %c0_176 = arith.constant 0 : index
    %386 = vector.load %arg11[%c13_175, %c0_176] : memref<72x64xf32, #tpu.memory_space<vmem>>, vector<4x64xf32>
    tpu.vector_store %arg11[%c13_175, %c0_176], %385 {strides = array<i32>} : memref<72x64xf32, #tpu.memory_space<vmem>>, vector<4x64xf32>,
    %387 = vector.extract_strided_slice %382 {offsets = [8, 0], sizes = [4, 64], strides = [1, 1]} : vector<32x64xf32> to vector<4x64xf32>
    %c19_177 = arith.constant 19 : index
    %c0_178 = arith.constant 0 : index
    %388 = vector.load %arg11[%c19_177, %c0_178] : memref<72x64xf32, #tpu.memory_space<vmem>>, vector<4x64xf32>
    tpu.vector_store %arg11[%c19_177, %c0_178], %387 {strides = array<i32>} : memref<72x64xf32, #tpu.memory_space<vmem>>, vector<4x64xf32>,
    %389 = vector.extract_strided_slice %382 {offsets = [12, 0], sizes = [4, 64], strides = [1, 1]} : vector<32x64xf32> to vector<4x64xf32>
    %c25_179 = arith.constant 25 : index
    %c0_180 = arith.constant 0 : index
    %390 = vector.load %arg11[%c25_179, %c0_180] : memref<72x64xf32, #tpu.memory_space<vmem>>, vector<4x64xf32>
    tpu.vector_store %arg11[%c25_179, %c0_180], %389 {strides = array<i32>} : memref<72x64xf32, #tpu.memory_space<vmem>>, vector<4x64xf32>,
    %391 = vector.extract_strided_slice %382 {offsets = [16, 0], sizes = [4, 64], strides = [1, 1]} : vector<32x64xf32> to vector<4x64xf32>
    %c43_181 = arith.constant 43 : index
    %c0_182 = arith.constant 0 : index
    %392 = vector.load %arg11[%c43_181, %c0_182] : memref<72x64xf32, #tpu.memory_space<vmem>>, vector<4x64xf32>
    tpu.vector_store %arg11[%c43_181, %c0_182], %391 {strides = array<i32>} : memref<72x64xf32, #tpu.memory_space<vmem>>, vector<4x64xf32>,
    %393 = vector.extract_strided_slice %382 {offsets = [20, 0], sizes = [4, 64], strides = [1, 1]} : vector<32x64xf32> to vector<4x64xf32>
    %c49_183 = arith.constant 49 : index
    %c0_184 = arith.constant 0 : index
    %394 = vector.load %arg11[%c49_183, %c0_184] : memref<72x64xf32, #tpu.memory_space<vmem>>, vector<4x64xf32>
    tpu.vector_store %arg11[%c49_183, %c0_184], %393 {strides = array<i32>} : memref<72x64xf32, #tpu.memory_space<vmem>>, vector<4x64xf32>,
    %395 = vector.extract_strided_slice %382 {offsets = [24, 0], sizes = [4, 64], strides = [1, 1]} : vector<32x64xf32> to vector<4x64xf32>
    %c55_185 = arith.constant 55 : index
    %c0_186 = arith.constant 0 : index
    %396 = vector.load %arg11[%c55_185, %c0_186] : memref<72x64xf32, #tpu.memory_space<vmem>>, vector<4x64xf32>
    tpu.vector_store %arg11[%c55_185, %c0_186], %395 {strides = array<i32>} : memref<72x64xf32, #tpu.memory_space<vmem>>, vector<4x64xf32>,
    %397 = vector.extract_strided_slice %382 {offsets = [28, 0], sizes = [4, 64], strides = [1, 1]} : vector<32x64xf32> to vector<4x64xf32>
    %c61_187 = arith.constant 61 : index
    %c0_188 = arith.constant 0 : index
    %398 = vector.load %arg11[%c61_187, %c0_188] : memref<72x64xf32, #tpu.memory_space<vmem>>, vector<4x64xf32>
    tpu.vector_store %arg11[%c61_187, %c0_188], %397 {strides = array<i32>} : memref<72x64xf32, #tpu.memory_space<vmem>>, vector<4x64xf32>,
    %cst_189 = arith.constant 0.000000e+00 : f32
    %399 = vector.broadcast %cst_189 : f32 to vector<32x64xf32>
    %c0_190 = arith.constant 0 : index
    %c0_191 = arith.constant 0 : index
    %400 = vector.load %arg11[%c0_190, %c0_191] : memref<72x64xf32, #tpu.memory_space<vmem>>, vector<4x64xf32>
    %c6_192 = arith.constant 6 : index
    %c0_193 = arith.constant 0 : index
    %401 = vector.load %arg11[%c6_192, %c0_193] : memref<72x64xf32, #tpu.memory_space<vmem>>, vector<4x64xf32>
    %c12_194 = arith.constant 12 : index
    %c0_195 = arith.constant 0 : index
    %402 = vector.load %arg11[%c12_194, %c0_195] : memref<72x64xf32, #tpu.memory_space<vmem>>, vector<4x64xf32>
    %c18_196 = arith.constant 18 : index
    %c0_197 = arith.constant 0 : index
    %403 = vector.load %arg11[%c18_196, %c0_197] : memref<72x64xf32, #tpu.memory_space<vmem>>, vector<4x64xf32>
    %c36_198 = arith.constant 36 : index
    %c0_199 = arith.constant 0 : index
    %404 = vector.load %arg11[%c36_198, %c0_199] : memref<72x64xf32, #tpu.memory_space<vmem>>, vector<4x64xf32>
    %c42_200 = arith.constant 42 : index
    %c0_201 = arith.constant 0 : index
    %405 = vector.load %arg11[%c42_200, %c0_201] : memref<72x64xf32, #tpu.memory_space<vmem>>, vector<4x64xf32>
    %c48_202 = arith.constant 48 : index
    %c0_203 = arith.constant 0 : index
    %406 = vector.load %arg11[%c48_202, %c0_203] : memref<72x64xf32, #tpu.memory_space<vmem>>, vector<4x64xf32>
    %c54_204 = arith.constant 54 : index
    %c0_205 = arith.constant 0 : index
    %407 = vector.load %arg11[%c54_204, %c0_205] : memref<72x64xf32, #tpu.memory_space<vmem>>, vector<4x64xf32>
    %408 = tpu.concatenate %400, %401, %402, %403, %404, %405, %406, %407 in 0 : vector<4x64xf32>, vector<4x64xf32>, vector<4x64xf32>, vector<4x64xf32>, vector<4x64xf32>, vector<4x64xf32>, vector<4x64xf32>, vector<4x64xf32> -> vector<32x64xf32>
    %409 = arith.truncf %408 : vector<32x64xf32> to vector<32x64xbf16>
    %c0_206 = arith.constant 0 : index
    %c0_207 = arith.constant 0 : index
    %410 = vector.load %arg7[%c0_206, %c0_207] : memref<576x64xbf16, #tpu.memory_space<vmem>>, vector<64x64xbf16>
    %cst_208 = arith.constant dense<0.000000e+00> : vector<32x64xf32>
    %411 = tpu.matmul %409, %410, %cst_208 {dimension_numbers = #tpu.dot_dimension_numbers<[1], [0], [0], [1], [0, 0, 1, 1], [], []>} : vector<32x64xbf16>, vector<64x64xbf16>, vector<32x64xf32> -> vector<32x64xf32>
    %412 = arith.addf %399, %411 : vector<32x64xf32>
    %c1_209 = arith.constant 1 : index
    %c0_210 = arith.constant 0 : index
    %413 = vector.load %arg11[%c1_209, %c0_210] : memref<72x64xf32, #tpu.memory_space<vmem>>, vector<4x64xf32>
    %c7_211 = arith.constant 7 : index
    %c0_212 = arith.constant 0 : index
    %414 = vector.load %arg11[%c7_211, %c0_212] : memref<72x64xf32, #tpu.memory_space<vmem>>, vector<4x64xf32>
    %c13_213 = arith.constant 13 : index
    %c0_214 = arith.constant 0 : index
    %415 = vector.load %arg11[%c13_213, %c0_214] : memref<72x64xf32, #tpu.memory_space<vmem>>, vector<4x64xf32>
    %c19_215 = arith.constant 19 : index
    %c0_216 = arith.constant 0 : index
    %416 = vector.load %arg11[%c19_215, %c0_216] : memref<72x64xf32, #tpu.memory_space<vmem>>, vector<4x64xf32>
    %c37_217 = arith.constant 37 : index
    %c0_218 = arith.constant 0 : index
    %417 = vector.load %arg11[%c37_217, %c0_218] : memref<72x64xf32, #tpu.memory_space<vmem>>, vector<4x64xf32>
    %c43_219 = arith.constant 43 : index
    %c0_220 = arith.constant 0 : index
    %418 = vector.load %arg11[%c43_219, %c0_220] : memref<72x64xf32, #tpu.memory_space<vmem>>, vector<4x64xf32>
    %c49_221 = arith.constant 49 : index
    %c0_222 = arith.constant 0 : index
    %419 = vector.load %arg11[%c49_221, %c0_222] : memref<72x64xf32, #tpu.memory_space<vmem>>, vector<4x64xf32>
    %c55_223 = arith.constant 55 : index
    %c0_224 = arith.constant 0 : index
    %420 = vector.load %arg11[%c55_223, %c0_224] : memref<72x64xf32, #tpu.memory_space<vmem>>, vector<4x64xf32>
    %421 = tpu.concatenate %413, %414, %415, %416, %417, %418, %419, %420 in 0 : vector<4x64xf32>, vector<4x64xf32>, vector<4x64xf32>, vector<4x64xf32>, vector<4x64xf32>, vector<4x64xf32>, vector<4x64xf32>, vector<4x64xf32> -> vector<32x64xf32>
    %422 = arith.truncf %421 : vector<32x64xf32> to vector<32x64xbf16>
    %c64_225 = arith.constant 64 : index
    %c0_226 = arith.constant 0 : index
    %423 = vector.load %arg7[%c64_225, %c0_226] : memref<576x64xbf16, #tpu.memory_space<vmem>>, vector<64x64xbf16>
    %cst_227 = arith.constant dense<0.000000e+00> : vector<32x64xf32>
    %424 = tpu.matmul %422, %423, %cst_227 {dimension_numbers = #tpu.dot_dimension_numbers<[1], [0], [0], [1], [0, 0, 1, 1], [], []>} : vector<32x64xbf16>, vector<64x64xbf16>, vector<32x64xf32> -> vector<32x64xf32>
    %425 = arith.addf %412, %424 : vector<32x64xf32>
    %c2_228 = arith.constant 2 : index
    %c0_229 = arith.constant 0 : index
    %426 = vector.load %arg11[%c2_228, %c0_229] : memref<72x64xf32, #tpu.memory_space<vmem>>, vector<4x64xf32>
    %c8_230 = arith.constant 8 : index
    %c0_231 = arith.constant 0 : index
    %427 = vector.load %arg11[%c8_230, %c0_231] : memref<72x64xf32, #tpu.memory_space<vmem>>, vector<4x64xf32>
    %c14_232 = arith.constant 14 : index
    %c0_233 = arith.constant 0 : index
    %428 = vector.load %arg11[%c14_232, %c0_233] : memref<72x64xf32, #tpu.memory_space<vmem>>, vector<4x64xf32>
    %c20_234 = arith.constant 20 : index
    %c0_235 = arith.constant 0 : index
    %429 = vector.load %arg11[%c20_234, %c0_235] : memref<72x64xf32, #tpu.memory_space<vmem>>, vector<4x64xf32>
    %c38_236 = arith.constant 38 : index
    %c0_237 = arith.constant 0 : index
    %430 = vector.load %arg11[%c38_236, %c0_237] : memref<72x64xf32, #tpu.memory_space<vmem>>, vector<4x64xf32>
    %c44_238 = arith.constant 44 : index
    %c0_239 = arith.constant 0 : index
    %431 = vector.load %arg11[%c44_238, %c0_239] : memref<72x64xf32, #tpu.memory_space<vmem>>, vector<4x64xf32>
    %c50_240 = arith.constant 50 : index
    %c0_241 = arith.constant 0 : index
    %432 = vector.load %arg11[%c50_240, %c0_241] : memref<72x64xf32, #tpu.memory_space<vmem>>, vector<4x64xf32>
    %c56_242 = arith.constant 56 : index
    %c0_243 = arith.constant 0 : index
    %433 = vector.load %arg11[%c56_242, %c0_243] : memref<72x64xf32, #tpu.memory_space<vmem>>, vector<4x64xf32>
    %434 = tpu.concatenate %426, %427, %428, %429, %430, %431, %432, %433 in 0 : vector<4x64xf32>, vector<4x64xf32>, vector<4x64xf32>, vector<4x64xf32>, vector<4x64xf32>, vector<4x64xf32>, vector<4x64xf32>, vector<4x64xf32> -> vector<32x64xf32>
    %435 = arith.truncf %434 : vector<32x64xf32> to vector<32x64xbf16>
    %c128_244 = arith.constant 128 : index
    %c0_245 = arith.constant 0 : index
    %436 = vector.load %arg7[%c128_244, %c0_245] : memref<576x64xbf16, #tpu.memory_space<vmem>>, vector<64x64xbf16>
    %cst_246 = arith.constant dense<0.000000e+00> : vector<32x64xf32>
    %437 = tpu.matmul %435, %436, %cst_246 {dimension_numbers = #tpu.dot_dimension_numbers<[1], [0], [0], [1], [0, 0, 1, 1], [], []>} : vector<32x64xbf16>, vector<64x64xbf16>, vector<32x64xf32> -> vector<32x64xf32>
    %438 = arith.addf %425, %437 : vector<32x64xf32>
    %c6_247 = arith.constant 6 : index
    %c0_248 = arith.constant 0 : index
    %439 = vector.load %arg11[%c6_247, %c0_248] : memref<72x64xf32, #tpu.memory_space<vmem>>, vector<4x64xf32>
    %c12_249 = arith.constant 12 : index
    %c0_250 = arith.constant 0 : index
    %440 = vector.load %arg11[%c12_249, %c0_250] : memref<72x64xf32, #tpu.memory_space<vmem>>, vector<4x64xf32>
    %c18_251 = arith.constant 18 : index
    %c0_252 = arith.constant 0 : index
    %441 = vector.load %arg11[%c18_251, %c0_252] : memref<72x64xf32, #tpu.memory_space<vmem>>, vector<4x64xf32>
    %c24_253 = arith.constant 24 : index
    %c0_254 = arith.constant 0 : index
    %442 = vector.load %arg11[%c24_253, %c0_254] : memref<72x64xf32, #tpu.memory_space<vmem>>, vector<4x64xf32>
    %c42_255 = arith.constant 42 : index
    %c0_256 = arith.constant 0 : index
    %443 = vector.load %arg11[%c42_255, %c0_256] : memref<72x64xf32, #tpu.memory_space<vmem>>, vector<4x64xf32>
    %c48_257 = arith.constant 48 : index
    %c0_258 = arith.constant 0 : index
    %444 = vector.load %arg11[%c48_257, %c0_258] : memref<72x64xf32, #tpu.memory_space<vmem>>, vector<4x64xf32>
    %c54_259 = arith.constant 54 : index
    %c0_260 = arith.constant 0 : index
    %445 = vector.load %arg11[%c54_259, %c0_260] : memref<72x64xf32, #tpu.memory_space<vmem>>, vector<4x64xf32>
    %c60_261 = arith.constant 60 : index
    %c0_262 = arith.constant 0 : index
    %446 = vector.load %arg11[%c60_261, %c0_262] : memref<72x64xf32, #tpu.memory_space<vmem>>, vector<4x64xf32>
    %447 = tpu.concatenate %439, %440, %441, %442, %443, %444, %445, %446 in 0 : vector<4x64xf32>, vector<4x64xf32>, vector<4x64xf32>, vector<4x64xf32>, vector<4x64xf32>, vector<4x64xf32>, vector<4x64xf32>, vector<4x64xf32> -> vector<32x64xf32>
    %448 = arith.truncf %447 : vector<32x64xf32> to vector<32x64xbf16>
    %c192_263 = arith.constant 192 : index
    %c0_264 = arith.constant 0 : index
    %449 = vector.load %arg7[%c192_263, %c0_264] : memref<576x64xbf16, #tpu.memory_space<vmem>>, vector<64x64xbf16>
    %cst_265 = arith.constant dense<0.000000e+00> : vector<32x64xf32>
    %450 = tpu.matmul %448, %449, %cst_265 {dimension_numbers = #tpu.dot_dimension_numbers<[1], [0], [0], [1], [0, 0, 1, 1], [], []>} : vector<32x64xbf16>, vector<64x64xbf16>, vector<32x64xf32> -> vector<32x64xf32>
    %451 = arith.addf %438, %450 : vector<32x64xf32>
    %c7_266 = arith.constant 7 : index
    %c0_267 = arith.constant 0 : index
    %452 = vector.load %arg11[%c7_266, %c0_267] : memref<72x64xf32, #tpu.memory_space<vmem>>, vector<4x64xf32>
    %c13_268 = arith.constant 13 : index
    %c0_269 = arith.constant 0 : index
    %453 = vector.load %arg11[%c13_268, %c0_269] : memref<72x64xf32, #tpu.memory_space<vmem>>, vector<4x64xf32>
    %c19_270 = arith.constant 19 : index
    %c0_271 = arith.constant 0 : index
    %454 = vector.load %arg11[%c19_270, %c0_271] : memref<72x64xf32, #tpu.memory_space<vmem>>, vector<4x64xf32>
    %c25_272 = arith.constant 25 : index
    %c0_273 = arith.constant 0 : index
    %455 = vector.load %arg11[%c25_272, %c0_273] : memref<72x64xf32, #tpu.memory_space<vmem>>, vector<4x64xf32>
    %c43_274 = arith.constant 43 : index
    %c0_275 = arith.constant 0 : index
    %456 = vector.load %arg11[%c43_274, %c0_275] : memref<72x64xf32, #tpu.memory_space<vmem>>, vector<4x64xf32>
    %c49_276 = arith.constant 49 : index
    %c0_277 = arith.constant 0 : index
    %457 = vector.load %arg11[%c49_276, %c0_277] : memref<72x64xf32, #tpu.memory_space<vmem>>, vector<4x64xf32>
    %c55_278 = arith.constant 55 : index
    %c0_279 = arith.constant 0 : index
    %458 = vector.load %arg11[%c55_278, %c0_279] : memref<72x64xf32, #tpu.memory_space<vmem>>, vector<4x64xf32>
    %c61_280 = arith.constant 61 : index
    %c0_281 = arith.constant 0 : index
    %459 = vector.load %arg11[%c61_280, %c0_281] : memref<72x64xf32, #tpu.memory_space<vmem>>, vector<4x64xf32>
    %460 = tpu.concatenate %452, %453, %454, %455, %456, %457, %458, %459 in 0 : vector<4x64xf32>, vector<4x64xf32>, vector<4x64xf32>, vector<4x64xf32>, vector<4x64xf32>, vector<4x64xf32>, vector<4x64xf32>, vector<4x64xf32> -> vector<32x64xf32>
    %461 = arith.truncf %460 : vector<32x64xf32> to vector<32x64xbf16>
    %c256_282 = arith.constant 256 : index
    %c0_283 = arith.constant 0 : index
    %462 = vector.load %arg7[%c256_282, %c0_283] : memref<576x64xbf16, #tpu.memory_space<vmem>>, vector<64x64xbf16>
    %cst_284 = arith.constant dense<0.000000e+00> : vector<32x64xf32>
    %463 = tpu.matmul %461, %462, %cst_284 {dimension_numbers = #tpu.dot_dimension_numbers<[1], [0], [0], [1], [0, 0, 1, 1], [], []>} : vector<32x64xbf16>, vector<64x64xbf16>, vector<32x64xf32> -> vector<32x64xf32>
    %464 = arith.addf %451, %463 : vector<32x64xf32>
    %c8_285 = arith.constant 8 : index
    %c0_286 = arith.constant 0 : index
    %465 = vector.load %arg11[%c8_285, %c0_286] : memref<72x64xf32, #tpu.memory_space<vmem>>, vector<4x64xf32>
    %c14_287 = arith.constant 14 : index
    %c0_288 = arith.constant 0 : index
    %466 = vector.load %arg11[%c14_287, %c0_288] : memref<72x64xf32, #tpu.memory_space<vmem>>, vector<4x64xf32>
    %c20_289 = arith.constant 20 : index
    %c0_290 = arith.constant 0 : index
    %467 = vector.load %arg11[%c20_289, %c0_290] : memref<72x64xf32, #tpu.memory_space<vmem>>, vector<4x64xf32>
    %c26_291 = arith.constant 26 : index
    %c0_292 = arith.constant 0 : index
    %468 = vector.load %arg11[%c26_291, %c0_292] : memref<72x64xf32, #tpu.memory_space<vmem>>, vector<4x64xf32>
    %c44_293 = arith.constant 44 : index
    %c0_294 = arith.constant 0 : index
    %469 = vector.load %arg11[%c44_293, %c0_294] : memref<72x64xf32, #tpu.memory_space<vmem>>, vector<4x64xf32>
    %c50_295 = arith.constant 50 : index
    %c0_296 = arith.constant 0 : index
    %470 = vector.load %arg11[%c50_295, %c0_296] : memref<72x64xf32, #tpu.memory_space<vmem>>, vector<4x64xf32>
    %c56_297 = arith.constant 56 : index
    %c0_298 = arith.constant 0 : index
    %471 = vector.load %arg11[%c56_297, %c0_298] : memref<72x64xf32, #tpu.memory_space<vmem>>, vector<4x64xf32>
    %c62_299 = arith.constant 62 : index
    %c0_300 = arith.constant 0 : index
    %472 = vector.load %arg11[%c62_299, %c0_300] : memref<72x64xf32, #tpu.memory_space<vmem>>, vector<4x64xf32>
    %473 = tpu.concatenate %465, %466, %467, %468, %469, %470, %471, %472 in 0 : vector<4x64xf32>, vector<4x64xf32>, vector<4x64xf32>, vector<4x64xf32>, vector<4x64xf32>, vector<4x64xf32>, vector<4x64xf32>, vector<4x64xf32> -> vector<32x64xf32>
    %474 = arith.truncf %473 : vector<32x64xf32> to vector<32x64xbf16>
    %c320_301 = arith.constant 320 : index
    %c0_302 = arith.constant 0 : index
    %475 = vector.load %arg7[%c320_301, %c0_302] : memref<576x64xbf16, #tpu.memory_space<vmem>>, vector<64x64xbf16>
    %cst_303 = arith.constant dense<0.000000e+00> : vector<32x64xf32>
    %476 = tpu.matmul %474, %475, %cst_303 {dimension_numbers = #tpu.dot_dimension_numbers<[1], [0], [0], [1], [0, 0, 1, 1], [], []>} : vector<32x64xbf16>, vector<64x64xbf16>, vector<32x64xf32> -> vector<32x64xf32>
    %477 = arith.addf %464, %476 : vector<32x64xf32>
    %c12_304 = arith.constant 12 : index
    %c0_305 = arith.constant 0 : index
    %478 = vector.load %arg11[%c12_304, %c0_305] : memref<72x64xf32, #tpu.memory_space<vmem>>, vector<4x64xf32>
    %c18_306 = arith.constant 18 : index
    %c0_307 = arith.constant 0 : index
    %479 = vector.load %arg11[%c18_306, %c0_307] : memref<72x64xf32, #tpu.memory_space<vmem>>, vector<4x64xf32>
    %c24_308 = arith.constant 24 : index
    %c0_309 = arith.constant 0 : index
    %480 = vector.load %arg11[%c24_308, %c0_309] : memref<72x64xf32, #tpu.memory_space<vmem>>, vector<4x64xf32>
    %c30_310 = arith.constant 30 : index
    %c0_311 = arith.constant 0 : index
    %481 = vector.load %arg11[%c30_310, %c0_311] : memref<72x64xf32, #tpu.memory_space<vmem>>, vector<4x64xf32>
    %c48_312 = arith.constant 48 : index
    %c0_313 = arith.constant 0 : index
    %482 = vector.load %arg11[%c48_312, %c0_313] : memref<72x64xf32, #tpu.memory_space<vmem>>, vector<4x64xf32>
    %c54_314 = arith.constant 54 : index
    %c0_315 = arith.constant 0 : index
    %483 = vector.load %arg11[%c54_314, %c0_315] : memref<72x64xf32, #tpu.memory_space<vmem>>, vector<4x64xf32>
    %c60_316 = arith.constant 60 : index
    %c0_317 = arith.constant 0 : index
    %484 = vector.load %arg11[%c60_316, %c0_317] : memref<72x64xf32, #tpu.memory_space<vmem>>, vector<4x64xf32>
    %c66_318 = arith.constant 66 : index
    %c0_319 = arith.constant 0 : index
    %485 = vector.load %arg11[%c66_318, %c0_319] : memref<72x64xf32, #tpu.memory_space<vmem>>, vector<4x64xf32>
    %486 = tpu.concatenate %478, %479, %480, %481, %482, %483, %484, %485 in 0 : vector<4x64xf32>, vector<4x64xf32>, vector<4x64xf32>, vector<4x64xf32>, vector<4x64xf32>, vector<4x64xf32>, vector<4x64xf32>, vector<4x64xf32> -> vector<32x64xf32>
    %487 = arith.truncf %486 : vector<32x64xf32> to vector<32x64xbf16>
    %c384_320 = arith.constant 384 : index
    %c0_321 = arith.constant 0 : index
    %488 = vector.load %arg7[%c384_320, %c0_321] : memref<576x64xbf16, #tpu.memory_space<vmem>>, vector<64x64xbf16>
    %cst_322 = arith.constant dense<0.000000e+00> : vector<32x64xf32>
    %489 = tpu.matmul %487, %488, %cst_322 {dimension_numbers = #tpu.dot_dimension_numbers<[1], [0], [0], [1], [0, 0, 1, 1], [], []>} : vector<32x64xbf16>, vector<64x64xbf16>, vector<32x64xf32> -> vector<32x64xf32>
    %490 = arith.addf %477, %489 : vector<32x64xf32>
    %c13_323 = arith.constant 13 : index
    %c0_324 = arith.constant 0 : index
    %491 = vector.load %arg11[%c13_323, %c0_324] : memref<72x64xf32, #tpu.memory_space<vmem>>, vector<4x64xf32>
    %c19_325 = arith.constant 19 : index
    %c0_326 = arith.constant 0 : index
    %492 = vector.load %arg11[%c19_325, %c0_326] : memref<72x64xf32, #tpu.memory_space<vmem>>, vector<4x64xf32>
    %c25_327 = arith.constant 25 : index
    %c0_328 = arith.constant 0 : index
    %493 = vector.load %arg11[%c25_327, %c0_328] : memref<72x64xf32, #tpu.memory_space<vmem>>, vector<4x64xf32>
    %c31_329 = arith.constant 31 : index
    %c0_330 = arith.constant 0 : index
    %494 = vector.load %arg11[%c31_329, %c0_330] : memref<72x64xf32, #tpu.memory_space<vmem>>, vector<4x64xf32>
    %c49_331 = arith.constant 49 : index
    %c0_332 = arith.constant 0 : index
    %495 = vector.load %arg11[%c49_331, %c0_332] : memref<72x64xf32, #tpu.memory_space<vmem>>, vector<4x64xf32>
    %c55_333 = arith.constant 55 : index
    %c0_334 = arith.constant 0 : index
    %496 = vector.load %arg11[%c55_333, %c0_334] : memref<72x64xf32, #tpu.memory_space<vmem>>, vector<4x64xf32>
    %c61_335 = arith.constant 61 : index
    %c0_336 = arith.constant 0 : index
    %497 = vector.load %arg11[%c61_335, %c0_336] : memref<72x64xf32, #tpu.memory_space<vmem>>, vector<4x64xf32>
    %c67_337 = arith.constant 67 : index
    %c0_338 = arith.constant 0 : index
    %498 = vector.load %arg11[%c67_337, %c0_338] : memref<72x64xf32, #tpu.memory_space<vmem>>, vector<4x64xf32>
    %499 = tpu.concatenate %491, %492, %493, %494, %495, %496, %497, %498 in 0 : vector<4x64xf32>, vector<4x64xf32>, vector<4x64xf32>, vector<4x64xf32>, vector<4x64xf32>, vector<4x64xf32>, vector<4x64xf32>, vector<4x64xf32> -> vector<32x64xf32>
    %500 = arith.truncf %499 : vector<32x64xf32> to vector<32x64xbf16>
    %c448_339 = arith.constant 448 : index
    %c0_340 = arith.constant 0 : index
    %501 = vector.load %arg7[%c448_339, %c0_340] : memref<576x64xbf16, #tpu.memory_space<vmem>>, vector<64x64xbf16>
    %cst_341 = arith.constant dense<0.000000e+00> : vector<32x64xf32>
    %502 = tpu.matmul %500, %501, %cst_341 {dimension_numbers = #tpu.dot_dimension_numbers<[1], [0], [0], [1], [0, 0, 1, 1], [], []>} : vector<32x64xbf16>, vector<64x64xbf16>, vector<32x64xf32> -> vector<32x64xf32>
    %503 = arith.addf %490, %502 : vector<32x64xf32>
    %c14_342 = arith.constant 14 : index
    %c0_343 = arith.constant 0 : index
    %504 = vector.load %arg11[%c14_342, %c0_343] : memref<72x64xf32, #tpu.memory_space<vmem>>, vector<4x64xf32>
    %c20_344 = arith.constant 20 : index
    %c0_345 = arith.constant 0 : index
    %505 = vector.load %arg11[%c20_344, %c0_345] : memref<72x64xf32, #tpu.memory_space<vmem>>, vector<4x64xf32>
    %c26_346 = arith.constant 26 : index
    %c0_347 = arith.constant 0 : index
    %506 = vector.load %arg11[%c26_346, %c0_347] : memref<72x64xf32, #tpu.memory_space<vmem>>, vector<4x64xf32>
    %c32_348 = arith.constant 32 : index
    %c0_349 = arith.constant 0 : index
    %507 = vector.load %arg11[%c32_348, %c0_349] : memref<72x64xf32, #tpu.memory_space<vmem>>, vector<4x64xf32>
    %c50_350 = arith.constant 50 : index
    %c0_351 = arith.constant 0 : index
    %508 = vector.load %arg11[%c50_350, %c0_351] : memref<72x64xf32, #tpu.memory_space<vmem>>, vector<4x64xf32>
    %c56_352 = arith.constant 56 : index
    %c0_353 = arith.constant 0 : index
    %509 = vector.load %arg11[%c56_352, %c0_353] : memref<72x64xf32, #tpu.memory_space<vmem>>, vector<4x64xf32>
    %c62_354 = arith.constant 62 : index
    %c0_355 = arith.constant 0 : index
    %510 = vector.load %arg11[%c62_354, %c0_355] : memref<72x64xf32, #tpu.memory_space<vmem>>, vector<4x64xf32>
    %c68_356 = arith.constant 68 : index
    %c0_357 = arith.constant 0 : index
    %511 = vector.load %arg11[%c68_356, %c0_357] : memref<72x64xf32, #tpu.memory_space<vmem>>, vector<4x64xf32>
    %512 = tpu.concatenate %504, %505, %506, %507, %508, %509, %510, %511 in 0 : vector<4x64xf32>, vector<4x64xf32>, vector<4x64xf32>, vector<4x64xf32>, vector<4x64xf32>, vector<4x64xf32>, vector<4x64xf32>, vector<4x64xf32> -> vector<32x64xf32>
    %513 = arith.truncf %512 : vector<32x64xf32> to vector<32x64xbf16>
    %c512_358 = arith.constant 512 : index
    %c0_359 = arith.constant 0 : index
    %514 = vector.load %arg7[%c512_358, %c0_359] : memref<576x64xbf16, #tpu.memory_space<vmem>>, vector<64x64xbf16>
    %cst_360 = arith.constant dense<0.000000e+00> : vector<32x64xf32>
    %515 = tpu.matmul %513, %514, %cst_360 {dimension_numbers = #tpu.dot_dimension_numbers<[1], [0], [0], [1], [0, 0, 1, 1], [], []>} : vector<32x64xbf16>, vector<64x64xbf16>, vector<32x64xf32> -> vector<32x64xf32>
    %516 = arith.addf %503, %515 : vector<32x64xf32>
    %cst_361 = arith.constant dense<0.000000e+00> : vector<64xf32>
    %517 = vector.multi_reduction <add>, %516, %cst_361 [0] : vector<32x64xf32> to vector<64xf32>
    %518 = vector.shape_cast %517 : vector<64xf32> to vector<1x64xf32>
    %cst_362 = arith.constant 3.125000e-02 : f32
    %519 = vector.broadcast %cst_362 : f32 to vector<1x64xf32>
    %520 = arith.mulf %518, %519 : vector<1x64xf32>
    %521 = arith.mulf %516, %516 : vector<32x64xf32>
    %cst_363 = arith.constant dense<0.000000e+00> : vector<64xf32>
    %522 = vector.multi_reduction <add>, %521, %cst_363 [0] : vector<32x64xf32> to vector<64xf32>
    %523 = vector.shape_cast %522 : vector<64xf32> to vector<1x64xf32>
    %cst_364 = arith.constant 3.125000e-02 : f32
    %524 = vector.broadcast %cst_364 : f32 to vector<1x64xf32>
    %525 = arith.mulf %523, %524 : vector<1x64xf32>
    %526 = arith.mulf %520, %520 : vector<1x64xf32>
    %527 = arith.subf %525, %526 : vector<1x64xf32>
    %c0_365 = arith.constant 0 : index
    %c0_366 = arith.constant 0 : index
    %528 = vector.load %arg8[%c0_365, %c0_366] : memref<1x64xf32, #tpu.memory_space<vmem>>, vector<1x64xf32>
    %cst_367 = arith.constant 0.000000e+00 : f32
    %529 = vector.broadcast %cst_367 : f32 to vector<1x64xf32>
    %530 = arith.maximumf %527, %529 : vector<1x64xf32>
    %cst_368 = arith.constant 9.99999974E-6 : f32
    %531 = vector.broadcast %cst_368 : f32 to vector<1x64xf32>
    %532 = arith.addf %530, %531 : vector<1x64xf32>
    %533 = math.rsqrt %532 : vector<1x64xf32>
    %534 = arith.mulf %528, %533 : vector<1x64xf32>
    %535 = vector.broadcast %520 : vector<1x64xf32> to vector<32x64xf32>
    %536 = arith.subf %516, %535 : vector<32x64xf32>
    %537 = vector.broadcast %534 : vector<1x64xf32> to vector<32x64xf32>
    %538 = arith.mulf %536, %537 : vector<32x64xf32>
    %c0_369 = arith.constant 0 : index
    %c0_370 = arith.constant 0 : index
    %539 = vector.load %arg9[%c0_369, %c0_370] : memref<1x64xf32, #tpu.memory_space<vmem>>, vector<1x64xf32>
    %540 = vector.broadcast %539 : vector<1x64xf32> to vector<32x64xf32>
    %541 = arith.addf %538, %540 : vector<32x64xf32>
    %542 = arith.addf %541, %219 : vector<32x64xf32>
    %cst_371 = arith.constant 0.000000e+00 : f32
    %543 = vector.broadcast %cst_371 : f32 to vector<32x64xf32>
    %544 = arith.maximumf %542, %543 : vector<32x64xf32>
    %c0_372 = arith.constant 0 : index
    %c0_373 = arith.constant 0 : index
    %545 = vector.load %arg10[%c0_372, %c0_373] : memref<32x64xf32, #tpu.memory_space<vmem>>, vector<32x64xf32>
    tpu.vector_store %arg10[%c0_372, %c0_373], %544 {strides = array<i32>} : memref<32x64xf32, #tpu.memory_space<vmem>>, vector<32x64xf32>,
    return
  }
}

</mosaic_0001>

<llo_original>
// kernel: forward.1
$region0: #{forward.1}
  #allocation0 [shape = 'u32[]', space=smem, size = 0x4, offset = 0x4, fixed_abs, tag = 'smem constant byte address 0x4 - core index']
  #allocation1 [shape = 'u32[144,128]{1,0:T(1,128)}', space=vmem, size = 0x12000, scoped, tag = 'internal scratch']
  #allocation2 [shape = 'f32[72,64]{1,0:T(8,128)}', space=vmem, size = 0x9000, scoped, tag = 'scratch operand']
  %s0 = inlined_call_operand.vmem [shape: f32[128,196], index: 0, kind: input, shape index: {}]
  %s1 = inlined_call_operand.vmem [shape: bf16[196,64], index: 1, kind: input, shape index: {}]
  %s2 = inlined_call_operand.vmem [shape: f32[1,64], index: 2, kind: input, shape index: {}]
  %s3 = inlined_call_operand.vmem [shape: f32[1,64], index: 3, kind: input, shape index: {}]
  %s4 = inlined_call_operand.vmem [shape: bf16[576,64], index: 4, kind: input, shape index: {}]
  %s5 = inlined_call_operand.vmem [shape: f32[1,64], index: 5, kind: input, shape index: {}]
  %s6 = inlined_call_operand.vmem [shape: f32[1,64], index: 6, kind: input, shape index: {}]
  %s7 = inlined_call_operand.vmem [shape: bf16[576,64], index: 7, kind: input, shape index: {}]
  %s8 = inlined_call_operand.vmem [shape: f32[1,64], index: 8, kind: input, shape index: {}]
  %s9 = inlined_call_operand.vmem [shape: f32[1,64], index: 9, kind: input, shape index: {}]
  %s10 = inlined_call_operand.hbm [shape: f32[32,64], index: 10, kind: output, shape index: {}]
  %s11 = sld [smem:[#allocation0]]
  $region50: #{forward.1} parent=0
    _
  %s13 = ssub.s32 1, %s11
  %s14 = scalar_select 0, %s13, %s11
  $region1: #{forward.1} parent=0
    #allocation3 [shape = 'u8[16384]{0}', space=vmem, size = 0x4000, scoped, tag = 'output window, operand 0, single buffered']
    #allocation4 [shape = 's32[1]{0}', space=sflag, size = 0x4, scoped, tag = 'scoped memory for forward.1']
    %15 = vsyncpa [#allocation4], 0
    // Predicated region
    $region2: #{forward.1} parent=1 // pred_check
      _
    $region3: #{forward.1} parent=1 // pred_check_branch
      %17 = sbr.rel (0) target = $region5
    $region4: #{forward.1} parent=1 // pred_region
      _
    $region5: #{forward.1} parent=1 // pred_fallthru
      _
    // Predicated region
    $region6: #{forward.1} parent=1 // pred_check
      _
    $region7: #{forward.1} parent=1 // pred_check_branch
      %19 = sbr.rel (0) target = $region9
    $region8: #{forward.1} parent=1 // pred_region
      _
    $region9: #{forward.1} parent=1 // pred_fallthru
      _
    // Predicated region
    $region10: #{forward.1} parent=1 // pred_check
      _
    $region11: #{forward.1} parent=1 // pred_check_branch
      %21 = sbr.rel (0) target = $region13
    $region12: #{forward.1} parent=1 // pred_region
      _
    $region13: #{forward.1} parent=1 // pred_fallthru
      _
    // Predicated region
    $region14: #{forward.1} parent=1 // pred_check
      _
    $region15: #{forward.1} parent=1 // pred_check_branch
      %23 = sbr.rel (0) target = $region17
    $region16: #{forward.1} parent=1 // pred_region
      _
    $region17: #{forward.1} parent=1 // pred_fallthru
      _
    // Predicated region
    $region18: #{forward.1} parent=1 // pred_check
      _
    $region19: #{forward.1} parent=1 // pred_check_branch
      %25 = sbr.rel (0) target = $region21
    $region20: #{forward.1} parent=1 // pred_region
      _
    $region21: #{forward.1} parent=1 // pred_fallthru
      _
    // Predicated region
    $region22: #{forward.1} parent=1 // pred_check
      _
    $region23: #{forward.1} parent=1 // pred_check_branch
      %27 = sbr.rel (0) target = $region25
    $region24: #{forward.1} parent=1 // pred_region
      _
    $region25: #{forward.1} parent=1 // pred_fallthru
      _
    // Predicated region
    $region26: #{forward.1} parent=1 // pred_check
      _
    $region27: #{forward.1} parent=1 // pred_check_branch
      %29 = sbr.rel (0) target = $region29
    $region28: #{forward.1} parent=1 // pred_region
      _
    $region29: #{forward.1} parent=1 // pred_fallthru
      _
    // Predicated region
    $region30: #{forward.1} parent=1 // pred_check
      _
    $region31: #{forward.1} parent=1 // pred_check_branch
      %31 = sbr.rel (0) target = $region33
    $region32: #{forward.1} parent=1 // pred_region
      _
    $region33: #{forward.1} parent=1 // pred_fallthru
      _
    // Predicated region
    $region34: #{forward.1} parent=1 // pred_check
      _
    $region35: #{forward.1} parent=1 // pred_check_branch
      %33 = sbr.rel (0) target = $region37
    $region36: #{forward.1} parent=1 // pred_region
      _
    $region37: #{forward.1} parent=1 // pred_fallthru
      _
    // Predicated region
    $region38: #{forward.1} parent=1 // pred_check
      _
    $region39: #{forward.1} parent=1 // pred_check_branch
      %35 = sbr.rel (0) target = $region41
    $region40: #{forward.1} parent=1 // pred_region
      _
    $region41: #{forward.1} parent=1 // pred_fallthru
      _
    %v37 = vld [vmem:[%s0] sm:$0xff]
    %v38 = vld [vmem:[%s0 + $0x8] sm:$0xff]
    %v39 = vld [vmem:[%s0 + $0x10] sm:$0xff]
    %v40 = vld [vmem:[%s0 + $0x18] sm:$0xff]
    %v41 = vld [vmem:[%s0 + $0x20] sm:$0xff]
    %v42 = vld [vmem:[%s0 + $0x28] sm:$0xff]
    %v43 = vld [vmem:[%s0 + $0x30] sm:$0xff]
    %v44 = vld [vmem:[%s0 + $0x38] sm:$0xff]
    %v45 = vld [vmem:[%s0 + $0x40] sm:$0xff]
    %v46 = vld [vmem:[%s0 + $0x48] sm:$0xff]
    %v47 = vld [vmem:[%s0 + $0x50] sm:$0xff]
    %v48 = vld [vmem:[%s0 + $0x58] sm:$0xff]
    %v49 = vld [vmem:[%s0 + $0x60] sm:$0xff]
    %v50 = vld [vmem:[%s0 + $0x68] sm:$0xff]
    %v51 = vld [vmem:[%s0 + $0x70] sm:$0xff]
    %v52 = vld [vmem:[%s0 + $0x78] sm:$0xff]
    %v53 = vld [vmem:[%s0 + $0x80] sm:$0xff]
    %v54 = vld [vmem:[%s0 + $0x88] sm:$0xff]
    %v55 = vld [vmem:[%s0 + $0x90] sm:$0xff]
    %v56 = vld [vmem:[%s0 + $0x98] sm:$0xff]
    %v57 = vld [vmem:[%s0 + $0xa0] sm:$0xff]
    %v58 = vld [vmem:[%s0 + $0xa8] sm:$0xff]
    %v59 = vld [vmem:[%s0 + $0xb0] sm:$0xff]
    %v60 = vld [vmem:[%s0 + $0xb8] sm:$0xff]
    %v61 = vld [vmem:[%s0 + $0xc0] sm:$0xff]
    %v62 = vld [vmem:[%s0 + $0xc8] sm:$0xff]
    %v63 = vld [vmem:[%s0 + $0xd0] sm:$0xff]
    %v64 = vld [vmem:[%s0 + $0xd8] sm:$0xff]
    %v65 = vld [vmem:[%s0 + $0xe0] sm:$0xff]
    %v66 = vld [vmem:[%s0 + $0xe8] sm:$0xff]
    %v67 = vld [vmem:[%s0 + $0xf0] sm:$0xff]
    %v68 = vld [vmem:[%s0 + $0xf8] sm:$0xff]
    %v69 = vpack.c.bf16 %v39, %v37
    %v70 = vpack.c.bf16 %v40, %v38
    %v71 = vpack.c.bf16 %v43, %v41
    %v72 = vpack.c.bf16 %v44, %v42
    %v73 = vpack.c.bf16 %v47, %v45
    %v74 = vpack.c.bf16 %v48, %v46
    %v75 = vpack.c.bf16 %v51, %v49
    %v76 = vpack.c.bf16 %v52, %v50
    %v77 = vpack.c.bf16 %v55, %v53
    %v78 = vpack.c.bf16 %v56, %v54
    %v79 = vpack.c.bf16 %v59, %v57
    %v80 = vpack.c.bf16 %v60, %v58
    %v81 = vpack.c.bf16 %v63, %v61
    %v82 = vpack.c.bf16 %v64, %v62
    %v83 = vpack.c.bf16 %v67, %v65
    %v84 = vpack.c.bf16 %v68, %v66
    %v85 = vld [vmem:[%s1] sm:$0xf]
    %v86 = vld [vmem:[%s1 + $0x4] sm:$0xf]
    %v87 = vld [vmem:[%s1 + $0x8] sm:$0xf]
    %v88 = vld [vmem:[%s1 + $0xc] sm:$0xf]
    %v89 = vld [vmem:[%s1 + $0x10] sm:$0xf]
    %v90 = vld [vmem:[%s1 + $0x14] sm:$0xf]
    %v91 = vld [vmem:[%s1 + $0x18] sm:$0xf]
    %v92 = vld [vmem:[%s1 + $0x1c] sm:$0xf]
    %v93 = vld [vmem:[%s1 + $0x20] sm:$0xf]
    %v94 = vld [vmem:[%s1 + $0x24] sm:$0xf]
    %v95 = vld [vmem:[%s1 + $0x28] sm:$0xf]
    %v96 = vld [vmem:[%s1 + $0x2c] sm:$0xf]
    %v97 = vld [vmem:[%s1 + $0x30] sm:$0xf]
    %v98 = vld [vmem:[%s1 + $0x34] sm:$0xf]
    %v99 = vld [vmem:[%s1 + $0x38] sm:$0xf]
    %v100 = vld [vmem:[%s1 + $0x3c] sm:$0xf]
    %v101 = vld [vmem:[%s1 + $0x40] sm:$0xf]
    %v102 = vld [vmem:[%s1 + $0x44] sm:$0xf]
    %v103 = vld [vmem:[%s1 + $0x48] sm:$0xf]
    %v104 = vld [vmem:[%s1 + $0x4c] sm:$0xf]
    %v105 = vld [vmem:[%s1 + $0x50] sm:$0xf]
    %v106 = vld [vmem:[%s1 + $0x54] sm:$0xf]
    %v107 = vld [vmem:[%s1 + $0x58] sm:$0xf]
    %v108 = vld [vmem:[%s1 + $0x5c] sm:$0xf]
    %v109 = vld [vmem:[%s1 + $0x60] sm:$0x3]
    %v135 = vunpack.c.l.b16 %v85
    %v136 = vunpack.c.l.b16 %v86
    %v137 = vunpack.c.l.b16 %v87
    %v138 = vunpack.c.l.b16 %v88
    %v139 = vunpack.c.l.b16 %v89
    %v140 = vunpack.c.l.b16 %v90
    %v141 = vunpack.c.l.b16 %v91
    %v142 = vunpack.c.l.b16 %v92
    %v143 = vunpack.c.l.b16 %v93
    %v144 = vunpack.c.l.b16 %v94
    %v145 = vunpack.c.l.b16 %v95
    %v146 = vunpack.c.l.b16 %v96
    %v147 = vunpack.c.l.b16 %v97
    %v148 = vunpack.c.l.b16 %v98
    %v149 = vunpack.c.l.b16 %v99
    %v150 = vunpack.c.l.b16 %v100
    %v151 = vunpack.c.l.b16 %v101
    %v152 = vunpack.c.l.b16 %v102
    %v153 = vunpack.c.l.b16 %v103
    %v154 = vunpack.c.l.b16 %v104
    %v155 = vunpack.c.l.b16 %v105
    %v156 = vunpack.c.l.b16 %v106
    %v157 = vunpack.c.l.b16 %v107
    %v158 = vunpack.c.l.b16 %v108
    %v159 = vunpack.c.l.b16 %v109
    %v160 = vpack.c.b16 %v136, %v135
    %v161 = vpack.c.b16 %v138, %v137
    %v162 = vpack.c.b16 %v140, %v139
    %v163 = vpack.c.b16 %v142, %v141
    %v164 = vpack.c.b16 %v144, %v143
    %v165 = vpack.c.b16 %v146, %v145
    %v166 = vpack.c.b16 %v148, %v147
    %v167 = vpack.c.b16 %v150, %v149
    %v168 = vpack.c.b16 %v152, %v151
    %v169 = vpack.c.b16 %v154, %v153
    %v170 = vpack.c.b16 %v156, %v155
    %v171 = vpack.c.b16 %v158, %v157
    %v172 = vpack.c.b16 %v159, %v159
    %vm185 = vcmask 556032
    %v187 = vsel %vm185, %v70, 0
    %v190 = vsel %vm185, %v72, 0
    %v193 = vsel %vm185, %v74, 0
    %v196 = vsel %vm185, %v76, 0
    %v199 = vsel %vm185, %v78, 0
    %v202 = vsel %vm185, %v80, 0
    %v205 = vsel %vm185, %v82, 0
    %v208 = vsel %vm185, %v84, 0
    %vm210 = vcmask 1041408
    %v212 = vsel %vm210, %v172, 0
    %214 = vmatprep.subr.bf16.mxu0 0
    %215 = vmatpush1.bf16.msra.mxu0 %v160
    %216 = vmatprep.subr.bf16.mxu0 0
    %217 = vmatpush1.bf16.msra.mxu0 %v161
    %218 = vmatprep.subr.bf16.mxu0 0
    %219 = vmatpush1.bf16.msra.mxu0 %v162
    %220 = vmatprep.subr.bf16.mxu0 0
    %221 = vmatpush1.bf16.msra.mxu0 %v163
    %222 = vmatprep.subr.bf16.mxu0 0
    %223 = vmatpush1.bf16.msra.mxu0 %v164
    %224 = vmatprep.subr.bf16.mxu0 0
    %225 = vmatpush1.bf16.msra.mxu0 %v165
    %226 = vmatprep.subr.bf16.mxu0 0
    %227 = vmatpush1.bf16.msra.mxu0 %v166
    %228 = vmatprep.subr.bf16.mxu0 0
    %229 = vmatpush1.bf16.msra.mxu0 %v167
    %230 = vmatprep.subr.bf16.mxu0 0
    %231 = vmatpush1.bf16.msra.mxu0 %v168
    %232 = vmatprep.subr.bf16.mxu0 0
    %233 = vmatpush1.bf16.msra.mxu0 %v169
    %234 = vmatprep.subr.bf16.mxu0 0
    %235 = vmatpush1.bf16.msra.mxu0 %v170
    %236 = vmatprep.subr.bf16.mxu0 0
    %237 = vmatpush1.bf16.msra.mxu0 %v171
    %238 = vmatprep.subr.bf16.mxu0 0
    %239 = vmatpush1.bf16.msra.mxu0 %v212
    %240 = vmatprep.subr.bf16.mxu0 0
    %241 = vmatpush1.bf16.msra.mxu0 0
    %242 = vmatprep.subr.bf16.mxu0 0
    %243 = vmatpush1.bf16.msra.mxu0 0
    %244 = vmatprep.subr.bf16.mxu0 0
    %245 = vmatpush1.bf16.msra.mxu0 0
    %246 = vmatprep.mubr.bf16.mxu0 %v187
    %247 = vmatmul.mubr.bf16.gmra.mrb[0].mxu0 %v69
    %v248 = vpop.f32.mrb[0].mxu0
    %v249 = vadd.f32 0.0, %v248
    %v250 = vpop.f32.mrb[0].mxu0
    %v251 = vpop.f32.mrb[0].mxu0
    %v252 = vadd.f32 0.0, %v251
    %v253 = vpop.f32.mrb[0].mxu0
    %254 = vmatprep.mubr.bf16.mxu0 %v190
    %255 = vmatmul.mubr.bf16.gmra.mrb[0].mxu0 %v71
    %v256 = vpop.f32.mrb[0].mxu0
    %v257 = vadd.f32 0.0, %v256
    %v258 = vpop.f32.mrb[0].mxu0
    %v259 = vpop.f32.mrb[0].mxu0
    %v260 = vadd.f32 0.0, %v259
    %v261 = vpop.f32.mrb[0].mxu0
    %262 = vmatprep.mubr.bf16.mxu0 %v193
    %263 = vmatmul.mubr.bf16.gmra.mrb[0].mxu0 %v73
    %v264 = vpop.f32.mrb[0].mxu0
    %v265 = vadd.f32 0.0, %v264
    %v266 = vpop.f32.mrb[0].mxu0
    %v267 = vpop.f32.mrb[0].mxu0
    %v268 = vadd.f32 0.0, %v267
    %v269 = vpop.f32.mrb[0].mxu0
    %270 = vmatprep.mubr.bf16.mxu0 %v196
    %271 = vmatmul.mubr.bf16.gmra.mrb[0].mxu0 %v75
    %v272 = vpop.f32.mrb[0].mxu0
    %v273 = vadd.f32 0.0, %v272
    %v274 = vpop.f32.mrb[0].mxu0
    %v275 = vpop.f32.mrb[0].mxu0
    %v276 = vadd.f32 0.0, %v275
    %v277 = vpop.f32.mrb[0].mxu0
    %278 = vmatprep.mubr.bf16.mxu0 %v199
    %279 = vmatmul.mubr.bf16.gmra.mrb[0].mxu0 %v77
    %v280 = vpop.f32.mrb[0].mxu0
    %v281 = vadd.f32 0.0, %v280
    %v282 = vpop.f32.mrb[0].mxu0
    %v283 = vpop.f32.mrb[0].mxu0
    %v284 = vadd.f32 0.0, %v283
    %v285 = vpop.f32.mrb[0].mxu0
    %286 = vmatprep.mubr.bf16.mxu0 %v202
    %287 = vmatmul.mubr.bf16.gmra.mrb[0].mxu0 %v79
    %v288 = vpop.f32.mrb[0].mxu0
    %v289 = vadd.f32 0.0, %v288
    %v290 = vpop.f32.mrb[0].mxu0
    %v291 = vpop.f32.mrb[0].mxu0
    %v292 = vadd.f32 0.0, %v291
    %v293 = vpop.f32.mrb[0].mxu0
    %294 = vmatprep.mubr.bf16.mxu0 %v205
    %295 = vmatmul.mubr.bf16.gmra.mrb[0].mxu0 %v81
    %v296 = vpop.f32.mrb[0].mxu0
    %v297 = vadd.f32 0.0, %v296
    %v298 = vpop.f32.mrb[0].mxu0
    %v299 = vpop.f32.mrb[0].mxu0
    %v300 = vadd.f32 0.0, %v299
    %v301 = vpop.f32.mrb[0].mxu0
    %302 = vmatprep.mubr.bf16.mxu0 %v208
    %303 = vmatmul.mubr.bf16.gmra.mrb[0].mxu0 %v83
    %v304 = vpop.f32.mrb[0].mxu0
    %v305 = vadd.f32 0.0, %v304
    %v306 = vpop.f32.mrb[0].mxu0
    %v307 = vpop.f32.mrb[0].mxu0
    %v308 = vadd.f32 0.0, %v307
    %v309 = vpop.f32.mrb[0].mxu0
    %310 = vdwg.mxu0
    %vm311 = vcmask 523264
    %v312 = vsel %vm311, %v249, 0.0
    %v313 = vsel %vm311, %v252, 0.0
    %v314 = vadd.f32 %v312, %v313
    %v315 = vsel %vm311, %v257, 0.0
    %v316 = vadd.f32 %v314, %v315
    %v317 = vsel %vm311, %v260, 0.0
    %v318 = vadd.f32 %v316, %v317
    %v319 = vsel %vm311, %v265, 0.0
    %v320 = vadd.f32 %v318, %v319
    %v321 = vsel %vm311, %v268, 0.0
    %v322 = vadd.f32 %v320, %v321
    %v323 = vsel %vm311, %v273, 0.0
    %v324 = vadd.f32 %v322, %v323
    %v325 = vsel %vm311, %v276, 0.0
    %v326 = vadd.f32 %v324, %v325
    %v327 = vsel %vm311, %v281, 0.0
    %v328 = vadd.f32 %v326, %v327
    %v329 = vsel %vm311, %v284, 0.0
    %v330 = vadd.f32 %v328, %v329
    %v331 = vsel %vm311, %v289, 0.0
    %v332 = vadd.f32 %v330, %v331
    %v333 = vsel %vm311, %v292, 0.0
    %v334 = vadd.f32 %v332, %v333
    %v335 = vsel %vm311, %v297, 0.0
    %v336 = vadd.f32 %v334, %v335
    %v337 = vsel %vm311, %v300, 0.0
    %v338 = vadd.f32 %v336, %v337
    %v339 = vsel %vm311, %v305, 0.0
    %v340 = vadd.f32 %v338, %v339
    %v341 = vsel %vm311, %v308, 0.0
    %v342 = vadd.f32 %v340, %v341
    %v343 = vrot.slane %v342, 4
    %v344 = vadd.f32 %v342, %v343
    %v345 = vrot.slane %v344, 2
    %v346 = vadd.f32 %v344, %v345
    %v347 = vrot.slane %v346, 1
    %v348 = vadd.f32 %v346, %v347
    %v349 = vmul.f32 %v348, 0.0078125
    %v350 = vmul.f32 %v249, %v249
    %v351 = vmul.f32 %v252, %v252
    %v352 = vmul.f32 %v257, %v257
    %v353 = vmul.f32 %v260, %v260
    %v354 = vmul.f32 %v265, %v265
    %v355 = vmul.f32 %v268, %v268
    %v356 = vmul.f32 %v273, %v273
    %v357 = vmul.f32 %v276, %v276
    %v358 = vmul.f32 %v281, %v281
    %v359 = vmul.f32 %v284, %v284
    %v360 = vmul.f32 %v289, %v289
    %v361 = vmul.f32 %v292, %v292
    %v362 = vmul.f32 %v297, %v297
    %v363 = vmul.f32 %v300, %v300
    %v364 = vmul.f32 %v305, %v305
    %v365 = vmul.f32 %v308, %v308
    %v366 = vsel %vm311, %v350, 0.0
    %v367 = vsel %vm311, %v351, 0.0
    %v368 = vadd.f32 %v366, %v367
    %v369 = vsel %vm311, %v352, 0.0
    %v370 = vadd.f32 %v368, %v369
    %v371 = vsel %vm311, %v353, 0.0
    %v372 = vadd.f32 %v370, %v371
    %v373 = vsel %vm311, %v354, 0.0
    %v374 = vadd.f32 %v372, %v373
    %v375 = vsel %vm311, %v355, 0.0
    %v376 = vadd.f32 %v374, %v375
    %v377 = vsel %vm311, %v356, 0.0
    %v378 = vadd.f32 %v376, %v377
    %v379 = vsel %vm311, %v357, 0.0
    %v380 = vadd.f32 %v378, %v379
    %v381 = vsel %vm311, %v358, 0.0
    %v382 = vadd.f32 %v380, %v381
    %v383 = vsel %vm311, %v359, 0.0
    %v384 = vadd.f32 %v382, %v383
    %v385 = vsel %vm311, %v360, 0.0
    %v386 = vadd.f32 %v384, %v385
    %v387 = vsel %vm311, %v361, 0.0
    %v388 = vadd.f32 %v386, %v387
    %v389 = vsel %vm311, %v362, 0.0
    %v390 = vadd.f32 %v388, %v389
    %v391 = vsel %vm311, %v363, 0.0
    %v392 = vadd.f32 %v390, %v391
    %v393 = vsel %vm311, %v364, 0.0
    %v394 = vadd.f32 %v392, %v393
    %v395 = vsel %vm311, %v365, 0.0
    %v396 = vadd.f32 %v394, %v395
    %v397 = vrot.slane %v396, 4
    %v398 = vadd.f32 %v396, %v397
    %v399 = vrot.slane %v398, 2
    %v400 = vadd.f32 %v398, %v399
    %v401 = vrot.slane %v400, 1
    %v402 = vadd.f32 %v400, %v401
    %v403 = vmul.f32 %v402, 0.0078125
    %v404 = vmul.f32 %v349, %v349
    %v405 = vsub.f32 %v403, %v404
    %v406 = vld [vmem:[%s2] sm:$0x1]
    %v407 = vmax.f32 %v405, 0.0
    %v408 = vadd.f32 %v407, 1e-05
    %v409 = vrsqrt.pop %v408
    %v410 = vmul.f32 %v406, %v409
    %v411 = vsub.f32 %v249, %v349
    %v412 = vsub.f32 %v252, %v349
    %v413 = vsub.f32 %v257, %v349
    %v414 = vsub.f32 %v260, %v349
    %v415 = vsub.f32 %v265, %v349
    %v416 = vsub.f32 %v268, %v349
    %v417 = vsub.f32 %v273, %v349
    %v418 = vsub.f32 %v276, %v349
    %v419 = vsub.f32 %v281, %v349
    %v420 = vsub.f32 %v284, %v349
    %v421 = vsub.f32 %v289, %v349
    %v422 = vsub.f32 %v292, %v349
    %v423 = vsub.f32 %v297, %v349
    %v424 = vsub.f32 %v300, %v349
    %v425 = vsub.f32 %v305, %v349
    %v426 = vsub.f32 %v308, %v349
    %v428 = vlaneseq
    %v429 = vshrl.u32 %v428, 7
    %v430 = vsub.s32 0, %v429
    %v431 = vrot.slane %v410, %v430
    %v433 = vmul.f32 %v411, %v431
    %v434 = vmul.f32 %v412, %v431
    %v435 = vmul.f32 %v413, %v431
    %v436 = vmul.f32 %v414, %v431
    %v437 = vmul.f32 %v415, %v431
    %v438 = vmul.f32 %v416, %v431
    %v439 = vmul.f32 %v417, %v431
    %v440 = vmul.f32 %v418, %v431
    %v441 = vmul.f32 %v419, %v431
    %v442 = vmul.f32 %v420, %v431
    %v443 = vmul.f32 %v421, %v431
    %v444 = vmul.f32 %v422, %v431
    %v445 = vmul.f32 %v423, %v431
    %v446 = vmul.f32 %v424, %v431
    %v447 = vmul.f32 %v425, %v431
    %v448 = vmul.f32 %v426, %v431
    %v449 = vld [vmem:[%s3] sm:$0x1]
    %v451 = vlaneseq
    %v452 = vshrl.u32 %v451, 7
    %v453 = vsub.s32 0, %v452
    %v454 = vrot.slane %v449, %v453
    %v456 = vadd.f32 %v433, %v454
    %v457 = vadd.f32 %v434, %v454
    %v458 = vadd.f32 %v435, %v454
    %v459 = vadd.f32 %v436, %v454
    %v460 = vadd.f32 %v437, %v454
    %v461 = vadd.f32 %v438, %v454
    %v462 = vadd.f32 %v439, %v454
    %v463 = vadd.f32 %v440, %v454
    %v464 = vadd.f32 %v441, %v454
    %v465 = vadd.f32 %v442, %v454
    %v466 = vadd.f32 %v443, %v454
    %v467 = vadd.f32 %v444, %v454
    %v468 = vadd.f32 %v445, %v454
    %v469 = vadd.f32 %v446, %v454
    %v470 = vadd.f32 %v447, %v454
    %v471 = vadd.f32 %v448, %v454
    %v472 = vmax.f32 %v456, 0.0
    %v473 = vmax.f32 %v457, 0.0
    %v474 = vmax.f32 %v458, 0.0
    %v475 = vmax.f32 %v459, 0.0
    %v476 = vmax.f32 %v460, 0.0
    %v477 = vmax.f32 %v461, 0.0
    %v478 = vmax.f32 %v462, 0.0
    %v479 = vmax.f32 %v463, 0.0
    %v480 = vmax.f32 %v464, 0.0
    %v481 = vmax.f32 %v465, 0.0
    %v482 = vmax.f32 %v466, 0.0
    %v483 = vmax.f32 %v467, 0.0
    %v484 = vmax.f32 %v468, 0.0
    %v485 = vmax.f32 %v469, 0.0
    %v486 = vmax.f32 %v470, 0.0
    %v487 = vmax.f32 %v471, 0.0
    %v488 = vmax.f32 %v472, %v473
    %v490 = vrot.slane %v488, 1
    %v492 = vmax.f32 %v488, %v490
    %v493 = vrot.slane %v488, 2
    %v495 = vmax.f32 %v492, %v493
    %v497 = vrot.slane %v495, 1
    %v499 = vrot.slane %v495, 2
    %vm501 = vcmask 1040384
    %v502 = vsel %vm501, %v492, %v495
    %v503 = vsel %vm210, %v502, %v497
    %vm504 = vcmask 1042432
    %v505 = vsel %vm504, %v503, %v499
    %v506 = vmax.f32 %v473, %v474
    %v507 = vmax.f32 %v506, %v475
    %v509 = vrot.slane %v507, 1
    %v511 = vmax.f32 %v507, %v509
    %v512 = vrot.slane %v507, 2
    %v514 = vmax.f32 %v511, %v512
    %v516 = vrot.slane %v514, 1
    %v518 = vrot.slane %v514, 2
    %v520 = vsel %vm501, %v511, %v514
    %v521 = vsel %vm210, %v520, %v516
    %v522 = vsel %vm504, %v521, %v518
    %v523 = vmax.f32 %v475, %v476
    %v524 = vmax.f32 %v523, %v477
    %v526 = vrot.slane %v524, 1
    %v528 = vmax.f32 %v524, %v526
    %v529 = vrot.slane %v524, 2
    %v531 = vmax.f32 %v528, %v529
    %v533 = vrot.slane %v531, 1
    %v535 = vrot.slane %v531, 2
    %v537 = vsel %vm501, %v528, %v531
    %v538 = vsel %vm210, %v537, %v533
    %v539 = vsel %vm504, %v538, %v535
    %v540 = vmax.f32 %v477, %v478
    %v541 = vmax.f32 %v540, %v479
    %v543 = vrot.slane %v541, 1
    %v545 = vmax.f32 %v541, %v543
    %v546 = vrot.slane %v541, 2
    %v548 = vmax.f32 %v545, %v546
    %v550 = vrot.slane %v548, 1
    %v552 = vrot.slane %v548, 2
    %v554 = vsel %vm501, %v545, %v548
    %v555 = vsel %vm210, %v554, %v550
    %v556 = vsel %vm504, %v555, %v552
    %v557 = vmax.f32 %v480, %v481
    %v559 = vrot.slane %v557, 1
    %v561 = vmax.f32 %v557, %v559
    %v562 = vrot.slane %v557, 2
    %v564 = vmax.f32 %v561, %v562
    %v566 = vrot.slane %v564, 1
    %v568 = vrot.slane %v564, 2
    %v570 = vsel %vm501, %v561, %v564
    %v571 = vsel %vm210, %v570, %v566
    %v572 = vsel %vm504, %v571, %v568
    %v573 = vmax.f32 %v481, %v482
    %v574 = vmax.f32 %v573, %v483
    %v576 = vrot.slane %v574, 1
    %v578 = vmax.f32 %v574, %v576
    %v579 = vrot.slane %v574, 2
    %v581 = vmax.f32 %v578, %v579
    %v583 = vrot.slane %v581, 1
    %v585 = vrot.slane %v581, 2
    %v587 = vsel %vm501, %v578, %v581
    %v588 = vsel %vm210, %v587, %v583
    %v589 = vsel %vm504, %v588, %v585
    %v590 = vmax.f32 %v483, %v484
    %v591 = vmax.f32 %v590, %v485
    %v593 = vrot.slane %v591, 1
    %v595 = vmax.f32 %v591, %v593
    %v596 = vrot.slane %v591, 2
    %v598 = vmax.f32 %v595, %v596
    %v600 = vrot.slane %v598, 1
    %v602 = vrot.slane %v598, 2
    %v604 = vsel %vm501, %v595, %v598
    %v605 = vsel %vm210, %v604, %v600
    %v606 = vsel %vm504, %v605, %v602
    %v607 = vmax.f32 %v485, %v486
    %v608 = vmax.f32 %v607, %v487
    %v610 = vrot.slane %v608, 1
    %v612 = vmax.f32 %v608, %v610
    %v613 = vrot.slane %v608, 2
    %v615 = vmax.f32 %v612, %v613
    %v617 = vrot.slane %v615, 1
    %v619 = vrot.slane %v615, 2
    %v621 = vsel %vm501, %v612, %v615
    %v622 = vsel %vm210, %v621, %v617
    %v623 = vsel %vm504, %v622, %v619
    %v625 = vrot.slane %v522, 4
    %v628 = vrot.slane %v556, 4
    %v631 = vrot.slane %v589, 4
    %v634 = vrot.slane %v623, 4
    %vm636 = vcmask 1043456
    %v637 = vsel %vm636, %v505, %v625
    %v638 = vsel %vm636, %v539, %v628
    %v639 = vsel %vm636, %v572, %v631
    %v640 = vsel %vm636, %v606, %v634
    %641 = vst.msk [vmem:[#allocation2] sm:$0xff] %vm311, 0.0
    %642 = vst.msk [vmem:[#allocation2 + $0x8] sm:$0xff] %vm311, 0.0
    %643 = vst.msk [vmem:[#allocation2 + $0x10] sm:$0xff] %vm311, 0.0
    %644 = vst.msk [vmem:[#allocation2 + $0x18] sm:$0xff] %vm311, 0.0
    %645 = vst.msk [vmem:[#allocation2 + $0x20] sm:$0xff] %vm311, 0.0
    %646 = vst.msk [vmem:[#allocation2 + $0x28] sm:$0xff] %vm311, 0.0
    %647 = vst.msk [vmem:[#allocation2 + $0x30] sm:$0xff] %vm311, 0.0
    %648 = vst.msk [vmem:[#allocation2 + $0x38] sm:$0xff] %vm311, 0.0
    %649 = vst.msk [vmem:[#allocation2 + $0x40] sm:$0xff] %vm311, 0.0
    %vm650 = vcmask 519168
    %651 = vst.msk [vmem:[#allocation2 + $0x7] sm:$0xf] %vm650, %v637
    %vm652 = vcmask 523268
    %653 = vst.msk [vmem:[#allocation2 + $0x9] sm:$0xf0] %vm652, %v637
    %654 = vst.msk [vmem:[#allocation2 + $0x13] sm:$0xf] %vm650, %v638
    %655 = vst.msk [vmem:[#allocation2 + $0x15] sm:$0xf0] %vm652, %v638
    %656 = vst.msk [vmem:[#allocation2 + $0x2b] sm:$0xf] %vm650, %v639
    %657 = vst.msk [vmem:[#allocation2 + $0x2d] sm:$0xf0] %vm652, %v639
    %658 = vst.msk [vmem:[#allocation2 + $0x37] sm:$0xf] %vm650, %v640
    %659 = vst.msk [vmem:[#allocation2 + $0x39] sm:$0xf0] %vm652, %v640
    %v660 = vld [vmem:[#allocation2] sm:$0xf]
    %v661 = vld [vmem:[#allocation2 + $0x6] sm:$0xf]
    %v662 = vld [vmem:[#allocation2 + $0xc] sm:$0xf]
    %v663 = vld [vmem:[#allocation2 + $0x12] sm:$0xf]
    %v664 = vld [vmem:[#allocation2 + $0x24] sm:$0xf]
    %v665 = vld [vmem:[#allocation2 + $0x2a] sm:$0xf]
    %v666 = vld [vmem:[#allocation2 + $0x30] sm:$0xf]
    %v667 = vld [vmem:[#allocation2 + $0x36] sm:$0xf]
    %v669 = vrot.slane %v661, 4
    %v672 = vrot.slane %v663, 4
    %v675 = vrot.slane %v665, 4
    %v678 = vrot.slane %v667, 4
    %v680 = vsel %vm636, %v660, %v669
    %v681 = vsel %vm636, %v662, %v672
    %v682 = vsel %vm636, %v664, %v675
    %v683 = vsel %vm636, %v666, %v678
    %v684 = vpack.c.bf16 %v681, %v680
    %v685 = vpack.c.bf16 %v683, %v682
    %v686 = vld [vmem:[%s4] sm:$0xf]
    %v687 = vld [vmem:[%s4 + $0x4] sm:$0xf]
    %v688 = vld [vmem:[%s4 + $0x8] sm:$0xf]
    %v689 = vld [vmem:[%s4 + $0xc] sm:$0xf]
    %v690 = vld [vmem:[%s4 + $0x10] sm:$0xf]
    %v691 = vld [vmem:[%s4 + $0x14] sm:$0xf]
    %v692 = vld [vmem:[%s4 + $0x18] sm:$0xf]
    %v693 = vld [vmem:[%s4 + $0x1c] sm:$0xf]
    %v694 = vld [vmem:[#allocation2 + $0x1] sm:$0xf]
    %v695 = vld [vmem:[#allocation2 + $0x7] sm:$0xf]
    %v696 = vld [vmem:[#allocation2 + $0xd] sm:$0xf]
    %v697 = vld [vmem:[#allocation2 + $0x13] sm:$0xf]
    %v698 = vld [vmem:[#allocation2 + $0x25] sm:$0xf]
    %v699 = vld [vmem:[#allocation2 + $0x2b] sm:$0xf]
    %v700 = vld [vmem:[#allocation2 + $0x31] sm:$0xf]
    %v701 = vld [vmem:[#allocation2 + $0x37] sm:$0xf]
    %v703 = vrot.slane %v695, 4
    %v706 = vrot.slane %v697, 4
    %v709 = vrot.slane %v699, 4
    %v712 = vrot.slane %v701, 4
    %v714 = vsel %vm636, %v694, %v703
    %v715 = vsel %vm636, %v696, %v706
    %v716 = vsel %vm636, %v698, %v709
    %v717 = vsel %vm636, %v700, %v712
    %v718 = vpack.c.bf16 %v715, %v714
    %v719 = vpack.c.bf16 %v717, %v716
    %v720 = vld [vmem:[%s4 + $0x20] sm:$0xf]
    %v721 = vld [vmem:[%s4 + $0x24] sm:$0xf]
    %v722 = vld [vmem:[%s4 + $0x28] sm:$0xf]
    %v723 = vld [vmem:[%s4 + $0x2c] sm:$0xf]
    %v724 = vld [vmem:[%s4 + $0x30] sm:$0xf]
    %v725 = vld [vmem:[%s4 + $0x34] sm:$0xf]
    %v726 = vld [vmem:[%s4 + $0x38] sm:$0xf]
    %v727 = vld [vmem:[%s4 + $0x3c] sm:$0xf]
    %v736 = vunpack.c.l.b16 %v720
    %v737 = vunpack.c.l.b16 %v721
    %v738 = vunpack.c.l.b16 %v722
    %v739 = vunpack.c.l.b16 %v723
    %v740 = vunpack.c.l.b16 %v724
    %v741 = vunpack.c.l.b16 %v725
    %v742 = vunpack.c.l.b16 %v726
    %v743 = vunpack.c.l.b16 %v727
    %v744 = vpack.c.b16 %v737, %v736
    %v745 = vpack.c.b16 %v739, %v738
    %v746 = vpack.c.b16 %v741, %v740
    %v747 = vpack.c.b16 %v743, %v742
    %v753 = vsel %vm311, %v718, 0
    %v756 = vsel %vm311, %v719, 0
    %758 = vmatprep.subr.bf16.mxu0 0
    %759 = vmatpush1.bf16.msra.mxu0 %v744
    %760 = vmatprep.subr.bf16.mxu0 0
    %761 = vmatpush1.bf16.msra.mxu0 %v745
    %762 = vmatprep.subr.bf16.mxu0 0
    %763 = vmatpush1.bf16.msra.mxu0 %v746
    %764 = vmatprep.subr.bf16.mxu0 0
    %765 = vmatpush1.bf16.msra.mxu0 %v747
    %766 = vmatprep.subr.bf16.mxu0 0
    %767 = vmatpush1.bf16.msra.mxu0 0
    %768 = vmatprep.subr.bf16.mxu0 0
    %769 = vmatpush1.bf16.msra.mxu0 0
    %770 = vmatprep.subr.bf16.mxu0 0
    %771 = vmatpush1.bf16.msra.mxu0 0
    %772 = vmatprep.subr.bf16.mxu0 0
    %773 = vmatpush1.bf16.msra.mxu0 0
    %774 = vmatprep.subr.bf16.mxu0 0
    %775 = vmatpush1.bf16.msra.mxu0 0
    %776 = vmatprep.subr.bf16.mxu0 0
    %777 = vmatpush1.bf16.msra.mxu0 0
    %778 = vmatprep.subr.bf16.mxu0 0
    %779 = vmatpush1.bf16.msra.mxu0 0
    %780 = vmatprep.subr.bf16.mxu0 0
    %781 = vmatpush1.bf16.msra.mxu0 0
    %782 = vmatprep.subr.bf16.mxu0 0
    %783 = vmatpush1.bf16.msra.mxu0 0
    %784 = vmatprep.subr.bf16.mxu0 0
    %785 = vmatpush1.bf16.msra.mxu0 0
    %786 = vmatprep.subr.bf16.mxu0 0
    %787 = vmatpush1.bf16.msra.mxu0 0
    %788 = vmatprep.subr.bf16.mxu0 0
    %789 = vmatpush1.bf16.msra.mxu0 0
    %790 = vmatprep.mubr.bf16.mxu0 0
    %791 = vmatmul.mubr.bf16.gmra.mrb[0].mxu0 %v753
    %v792 = vpop.f32.mrb[0].mxu0
    %v793 = vadd.f32 0.0, %v792
    %v794 = vpop.f32.mrb[0].mxu0
    %v795 = vpop.f32.mrb[0].mxu0
    %v796 = vadd.f32 0.0, %v795
    %v797 = vpop.f32.mrb[0].mxu0
    %798 = vmatprep.mubr.bf16.mxu0 0
    %799 = vmatmul.mubr.bf16.gmra.mrb[0].mxu0 %v756
    %v800 = vpop.f32.mrb[0].mxu0
    %v801 = vadd.f32 0.0, %v800
    %v802 = vpop.f32.mrb[0].mxu0
    %v803 = vpop.f32.mrb[0].mxu0
    %v804 = vadd.f32 0.0, %v803
    %v805 = vpop.f32.mrb[0].mxu0
    %806 = vdwg.mxu0
    %v815 = vunpack.c.l.b16 %v686
    %v816 = vunpack.c.l.b16 %v687
    %v817 = vunpack.c.l.b16 %v688
    %v818 = vunpack.c.l.b16 %v689
    %v819 = vunpack.c.l.b16 %v690
    %v820 = vunpack.c.l.b16 %v691
    %v821 = vunpack.c.l.b16 %v692
    %v822 = vunpack.c.l.b16 %v693
    %v823 = vpack.c.b16 %v816, %v815
    %v824 = vpack.c.b16 %v818, %v817
    %v825 = vpack.c.b16 %v820, %v819
    %v826 = vpack.c.b16 %v822, %v821
    %v832 = vsel %vm311, %v684, 0
    %v835 = vsel %vm311, %v685, 0
    %837 = vmatprep.subr.bf16.mxu0 0
    %838 = vmatpush1.bf16.msra.mxu0 %v823
    %839 = vmatprep.subr.bf16.mxu0 0
    %840 = vmatpush1.bf16.msra.mxu0 %v824
    %841 = vmatprep.subr.bf16.mxu0 0
    %842 = vmatpush1.bf16.msra.mxu0 %v825
    %843 = vmatprep.subr.bf16.mxu0 0
    %844 = vmatpush1.bf16.msra.mxu0 %v826
    %845 = vmatprep.subr.bf16.mxu0 0
    %846 = vmatpush1.bf16.msra.mxu0 0
    %847 = vmatprep.subr.bf16.mxu0 0
    %848 = vmatpush1.bf16.msra.mxu0 0
    %849 = vmatprep.subr.bf16.mxu0 0
    %850 = vmatpush1.bf16.msra.mxu0 0
    %851 = vmatprep.subr.bf16.mxu0 0
    %852 = vmatpush1.bf16.msra.mxu0 0
    %853 = vmatprep.subr.bf16.mxu0 0
    %854 = vmatpush1.bf16.msra.mxu0 0
    %855 = vmatprep.subr.bf16.mxu0 0
    %856 = vmatpush1.bf16.msra.mxu0 0
    %857 = vmatprep.subr.bf16.mxu0 0
    %858 = vmatpush1.bf16.msra.mxu0 0
    %859 = vmatprep.subr.bf16.mxu0 0
    %860 = vmatpush1.bf16.msra.mxu0 0
    %861 = vmatprep.subr.bf16.mxu0 0
    %862 = vmatpush1.bf16.msra.mxu0 0
    %863 = vmatprep.subr.bf16.mxu0 0
    %864 = vmatpush1.bf16.msra.mxu0 0
    %865 = vmatprep.subr.bf16.mxu0 0
    %866 = vmatpush1.bf16.msra.mxu0 0
    %867 = vmatprep.subr.bf16.mxu0 0
    %868 = vmatpush1.bf16.msra.mxu0 0
    %869 = vmatprep.mubr.bf16.mxu0 0
    %870 = vmatmul.mubr.bf16.gmra.mrb[0].mxu0 %v832
    %v871 = vpop.f32.mrb[0].mxu0
    %v872 = vadd.f32 %v793, %v871
    %v873 = vpop.f32.mrb[0].mxu0
    %v874 = vpop.f32.mrb[0].mxu0
    %v875 = vadd.f32 %v796, %v874
    %v876 = vpop.f32.mrb[0].mxu0
    %877 = vmatprep.mubr.bf16.mxu0 0
    %878 = vmatmul.mubr.bf16.gmra.mrb[0].mxu0 %v835
    %v879 = vpop.f32.mrb[0].mxu0
    %v880 = vadd.f32 %v801, %v879
    %v881 = vpop.f32.mrb[0].mxu0
    %v882 = vpop.f32.mrb[0].mxu0
    %v883 = vadd.f32 %v804, %v882
    %v884 = vpop.f32.mrb[0].mxu0
    %885 = vdwg.mxu0
    %v886 = vld [vmem:[#allocation2 + $0x2] sm:$0xf]
    %v887 = vld [vmem:[#allocation2 + $0x8] sm:$0xf]
    %v888 = vld [vmem:[#allocation2 + $0xe] sm:$0xf]
    %v889 = vld [vmem:[#allocation2 + $0x14] sm:$0xf]
    %v890 = vld [vmem:[#allocation2 + $0x26] sm:$0xf]
    %v891 = vld [vmem:[#allocation2 + $0x2c] sm:$0xf]
    %v892 = vld [vmem:[#allocation2 + $0x32] sm:$0xf]
    %v893 = vld [vmem:[#allocation2 + $0x38] sm:$0xf]
    %v895 = vrot.slane %v887, 4
    %v898 = vrot.slane %v889, 4
    %v901 = vrot.slane %v891, 4
    %v904 = vrot.slane %v893, 4
    %v906 = vsel %vm636, %v886, %v895
    %v907 = vsel %vm636, %v888, %v898
    %v908 = vsel %vm636, %v890, %v901
    %v909 = vsel %vm636, %v892, %v904
    %v910 = vpack.c.bf16 %v907, %v906
    %v911 = vpack.c.bf16 %v909, %v908
    %v912 = vld [vmem:[%s4 + $0x40] sm:$0xf]
    %v913 = vld [vmem:[%s4 + $0x44] sm:$0xf]
    %v914 = vld [vmem:[%s4 + $0x48] sm:$0xf]
    %v915 = vld [vmem:[%s4 + $0x4c] sm:$0xf]
    %v916 = vld [vmem:[%s4 + $0x50] sm:$0xf]
    %v917 = vld [vmem:[%s4 + $0x54] sm:$0xf]
    %v918 = vld [vmem:[%s4 + $0x58] sm:$0xf]
    %v919 = vld [vmem:[%s4 + $0x5c] sm:$0xf]
    %v928 = vunpack.c.l.b16 %v912
    %v929 = vunpack.c.l.b16 %v913
    %v930 = vunpack.c.l.b16 %v914
    %v931 = vunpack.c.l.b16 %v915
    %v932 = vunpack.c.l.b16 %v916
    %v933 = vunpack.c.l.b16 %v917
    %v934 = vunpack.c.l.b16 %v918
    %v935 = vunpack.c.l.b16 %v919
    %v936 = vpack.c.b16 %v929, %v928
    %v937 = vpack.c.b16 %v931, %v930
    %v938 = vpack.c.b16 %v933, %v932
    %v939 = vpack.c.b16 %v935, %v934
    %v945 = vsel %vm311, %v910, 0
    %v948 = vsel %vm311, %v911, 0
    %950 = vmatprep.subr.bf16.mxu0 0
    %951 = vmatpush1.bf16.msra.mxu0 %v936
    %952 = vmatprep.subr.bf16.mxu0 0
    %953 = vmatpush1.bf16.msra.mxu0 %v937
    %954 = vmatprep.subr.bf16.mxu0 0
    %955 = vmatpush1.bf16.msra.mxu0 %v938
    %956 = vmatprep.subr.bf16.mxu0 0
    %957 = vmatpush1.bf16.msra.mxu0 %v939
    %958 = vmatprep.subr.bf16.mxu0 0
    %959 = vmatpush1.bf16.msra.mxu0 0
    %960 = vmatprep.subr.bf16.mxu0 0
    %961 = vmatpush1.bf16.msra.mxu0 0
    %962 = vmatprep.subr.bf16.mxu0 0
    %963 = vmatpush1.bf16.msra.mxu0 0
    %964 = vmatprep.subr.bf16.mxu0 0
    %965 = vmatpush1.bf16.msra.mxu0 0
    %966 = vmatprep.subr.bf16.mxu0 0
    %967 = vmatpush1.bf16.msra.mxu0 0
    %968 = vmatprep.subr.bf16.mxu0 0
    %969 = vmatpush1.bf16.msra.mxu0 0
    %970 = vmatprep.subr.bf16.mxu0 0
    %971 = vmatpush1.bf16.msra.mxu0 0
    %972 = vmatprep.subr.bf16.mxu0 0
    %973 = vmatpush1.bf16.msra.mxu0 0
    %974 = vmatprep.subr.bf16.mxu0 0
    %975 = vmatpush1.bf16.msra.mxu0 0
    %976 = vmatprep.subr.bf16.mxu0 0
    %977 = vmatpush1.bf16.msra.mxu0 0
    %978 = vmatprep.subr.bf16.mxu0 0
    %979 = vmatpush1.bf16.msra.mxu0 0
    %980 = vmatprep.subr.bf16.mxu0 0
    %981 = vmatpush1.bf16.msra.mxu0 0
    %982 = vmatprep.mubr.bf16.mxu0 0
    %983 = vmatmul.mubr.bf16.gmra.mrb[0].mxu0 %v945
    %v984 = vpop.f32.mrb[0].mxu0
    %v985 = vadd.f32 0.0, %v984
    %v986 = vpop.f32.mrb[0].mxu0
    %v987 = vpop.f32.mrb[0].mxu0
    %v988 = vadd.f32 0.0, %v987
    %v989 = vpop.f32.mrb[0].mxu0
    %990 = vmatprep.mubr.bf16.mxu0 0
    %991 = vmatmul.mubr.bf16.gmra.mrb[0].mxu0 %v948
    %v992 = vpop.f32.mrb[0].mxu0
    %v993 = vadd.f32 0.0, %v992
    %v994 = vpop.f32.mrb[0].mxu0
    %v995 = vpop.f32.mrb[0].mxu0
    %v996 = vadd.f32 0.0, %v995
    %v997 = vpop.f32.mrb[0].mxu0
    %998 = vdwg.mxu0
    %v999 = vadd.f32 %v872, %v985
    %v1000 = vadd.f32 %v875, %v988
    %v1001 = vadd.f32 %v880, %v993
    %v1002 = vadd.f32 %v883, %v996
    %v1003 = vld [vmem:[#allocation2 + $0x18] sm:$0xf]
    %v1004 = vld [vmem:[#allocation2 + $0x3c] sm:$0xf]
    %v1006 = vrot.slane %v662, 4
    %v1009 = vrot.slane %v1003, 4
    %v1012 = vrot.slane %v666, 4
    %v1015 = vrot.slane %v1004, 4
    %v1017 = vsel %vm636, %v661, %v1006
    %v1018 = vsel %vm636, %v663, %v1009
    %v1019 = vsel %vm636, %v665, %v1012
    %v1020 = vsel %vm636, %v667, %v1015
    %v1021 = vpack.c.bf16 %v1018, %v1017
    %v1022 = vpack.c.bf16 %v1020, %v1019
    %v1023 = vld [vmem:[%s4 + $0x60] sm:$0xf]
    %v1024 = vld [vmem:[%s4 + $0x64] sm:$0xf]
    %v1025 = vld [vmem:[%s4 + $0x68] sm:$0xf]
    %v1026 = vld [vmem:[%s4 + $0x6c] sm:$0xf]
    %v1027 = vld [vmem:[%s4 + $0x70] sm:$0xf]
    %v1028 = vld [vmem:[%s4 + $0x74] sm:$0xf]
    %v1029 = vld [vmem:[%s4 + $0x78] sm:$0xf]
    %v1030 = vld [vmem:[%s4 + $0x7c] sm:$0xf]
    %v1039 = vunpack.c.l.b16 %v1023
    %v1040 = vunpack.c.l.b16 %v1024
    %v1041 = vunpack.c.l.b16 %v1025
    %v1042 = vunpack.c.l.b16 %v1026
    %v1043 = vunpack.c.l.b16 %v1027
    %v1044 = vunpack.c.l.b16 %v1028
    %v1045 = vunpack.c.l.b16 %v1029
    %v1046 = vunpack.c.l.b16 %v1030
    %v1047 = vpack.c.b16 %v1040, %v1039
    %v1048 = vpack.c.b16 %v1042, %v1041
    %v1049 = vpack.c.b16 %v1044, %v1043
    %v1050 = vpack.c.b16 %v1046, %v1045
    %v1056 = vsel %vm311, %v1021, 0
    %v1059 = vsel %vm311, %v1022, 0
    %1061 = vmatprep.subr.bf16.mxu0 0
    %1062 = vmatpush1.bf16.msra.mxu0 %v1047
    %1063 = vmatprep.subr.bf16.mxu0 0
    %1064 = vmatpush1.bf16.msra.mxu0 %v1048
    %1065 = vmatprep.subr.bf16.mxu0 0
    %1066 = vmatpush1.bf16.msra.mxu0 %v1049
    %1067 = vmatprep.subr.bf16.mxu0 0
    %1068 = vmatpush1.bf16.msra.mxu0 %v1050
    %1069 = vmatprep.subr.bf16.mxu0 0
    %1070 = vmatpush1.bf16.msra.mxu0 0
    %1071 = vmatprep.subr.bf16.mxu0 0
    %1072 = vmatpush1.bf16.msra.mxu0 0
    %1073 = vmatprep.subr.bf16.mxu0 0
    %1074 = vmatpush1.bf16.msra.mxu0 0
    %1075 = vmatprep.subr.bf16.mxu0 0
    %1076 = vmatpush1.bf16.msra.mxu0 0
    %1077 = vmatprep.subr.bf16.mxu0 0
    %1078 = vmatpush1.bf16.msra.mxu0 0
    %1079 = vmatprep.subr.bf16.mxu0 0
    %1080 = vmatpush1.bf16.msra.mxu0 0
    %1081 = vmatprep.subr.bf16.mxu0 0
    %1082 = vmatpush1.bf16.msra.mxu0 0
    %1083 = vmatprep.subr.bf16.mxu0 0
    %1084 = vmatpush1.bf16.msra.mxu0 0
    %1085 = vmatprep.subr.bf16.mxu0 0
    %1086 = vmatpush1.bf16.msra.mxu0 0
    %1087 = vmatprep.subr.bf16.mxu0 0
    %1088 = vmatpush1.bf16.msra.mxu0 0
    %1089 = vmatprep.subr.bf16.mxu0 0
    %1090 = vmatpush1.bf16.msra.mxu0 0
    %1091 = vmatprep.subr.bf16.mxu0 0
    %1092 = vmatpush1.bf16.msra.mxu0 0
    %1093 = vmatprep.mubr.bf16.mxu0 0
    %1094 = vmatmul.mubr.bf16.gmra.mrb[0].mxu0 %v1056
    %v1095 = vpop.f32.mrb[0].mxu0
    %v1096 = vadd.f32 0.0, %v1095
    %v1097 = vpop.f32.mrb[0].mxu0
    %v1098 = vpop.f32.mrb[0].mxu0
    %v1099 = vadd.f32 0.0, %v1098
    %v1100 = vpop.f32.mrb[0].mxu0
    %1101 = vmatprep.mubr.bf16.mxu0 0
    %1102 = vmatmul.mubr.bf16.gmra.mrb[0].mxu0 %v1059
    %v1103 = vpop.f32.mrb[0].mxu0
    %v1104 = vadd.f32 0.0, %v1103
    %v1105 = vpop.f32.mrb[0].mxu0
    %v1106 = vpop.f32.mrb[0].mxu0
    %v1107 = vadd.f32 0.0, %v1106
    %v1108 = vpop.f32.mrb[0].mxu0
    %1109 = vdwg.mxu0
    %v1110 = vadd.f32 %v999, %v1096
    %v1111 = vadd.f32 %v1000, %v1099
    %v1112 = vadd.f32 %v1001, %v1104
    %v1113 = vadd.f32 %v1002, %v1107
    %v1114 = vld [vmem:[#allocation2 + $0x19] sm:$0xf]
    %v1115 = vld [vmem:[#allocation2 + $0x3d] sm:$0xf]
    %v1117 = vrot.slane %v696, 4
    %v1120 = vrot.slane %v1114, 4
    %v1123 = vrot.slane %v700, 4
    %v1126 = vrot.slane %v1115, 4
    %v1128 = vsel %vm636, %v695, %v1117
    %v1129 = vsel %vm636, %v697, %v1120
    %v1130 = vsel %vm636, %v699, %v1123
    %v1131 = vsel %vm636, %v701, %v1126
    %v1132 = vpack.c.bf16 %v1129, %v1128
    %v1133 = vpack.c.bf16 %v1131, %v1130
    %v1134 = vld [vmem:[%s4 + $0x80] sm:$0xf]
    %v1135 = vld [vmem:[%s4 + $0x84] sm:$0xf]
    %v1136 = vld [vmem:[%s4 + $0x88] sm:$0xf]
    %v1137 = vld [vmem:[%s4 + $0x8c] sm:$0xf]
    %v1138 = vld [vmem:[%s4 + $0x90] sm:$0xf]
    %v1139 = vld [vmem:[%s4 + $0x94] sm:$0xf]
    %v1140 = vld [vmem:[%s4 + $0x98] sm:$0xf]
    %v1141 = vld [vmem:[%s4 + $0x9c] sm:$0xf]
    %v1150 = vunpack.c.l.b16 %v1134
    %v1151 = vunpack.c.l.b16 %v1135
    %v1152 = vunpack.c.l.b16 %v1136
    %v1153 = vunpack.c.l.b16 %v1137
    %v1154 = vunpack.c.l.b16 %v1138
    %v1155 = vunpack.c.l.b16 %v1139
    %v1156 = vunpack.c.l.b16 %v1140
    %v1157 = vunpack.c.l.b16 %v1141
    %v1158 = vpack.c.b16 %v1151, %v1150
    %v1159 = vpack.c.b16 %v1153, %v1152
    %v1160 = vpack.c.b16 %v1155, %v1154
    %v1161 = vpack.c.b16 %v1157, %v1156
    %v1167 = vsel %vm311, %v1132, 0
    %v1170 = vsel %vm311, %v1133, 0
    %1172 = vmatprep.subr.bf16.mxu0 0
    %1173 = vmatpush1.bf16.msra.mxu0 %v1158
    %1174 = vmatprep.subr.bf16.mxu0 0
    %1175 = vmatpush1.bf16.msra.mxu0 %v1159
    %1176 = vmatprep.subr.bf16.mxu0 0
    %1177 = vmatpush1.bf16.msra.mxu0 %v1160
    %1178 = vmatprep.subr.bf16.mxu0 0
    %1179 = vmatpush1.bf16.msra.mxu0 %v1161
    %1180 = vmatprep.subr.bf16.mxu0 0
    %1181 = vmatpush1.bf16.msra.mxu0 0
    %1182 = vmatprep.subr.bf16.mxu0 0
    %1183 = vmatpush1.bf16.msra.mxu0 0
    %1184 = vmatprep.subr.bf16.mxu0 0
    %1185 = vmatpush1.bf16.msra.mxu0 0
    %1186 = vmatprep.subr.bf16.mxu0 0
    %1187 = vmatpush1.bf16.msra.mxu0 0
    %1188 = vmatprep.subr.bf16.mxu0 0
    %1189 = vmatpush1.bf16.msra.mxu0 0
    %1190 = vmatprep.subr.bf16.mxu0 0
    %1191 = vmatpush1.bf16.msra.mxu0 0
    %1192 = vmatprep.subr.bf16.mxu0 0
    %1193 = vmatpush1.bf16.msra.mxu0 0
    %1194 = vmatprep.subr.bf16.mxu0 0
    %1195 = vmatpush1.bf16.msra.mxu0 0
    %1196 = vmatprep.subr.bf16.mxu0 0
    %1197 = vmatpush1.bf16.msra.mxu0 0
    %1198 = vmatprep.subr.bf16.mxu0 0
    %1199 = vmatpush1.bf16.msra.mxu0 0
    %1200 = vmatprep.subr.bf16.mxu0 0
    %1201 = vmatpush1.bf16.msra.mxu0 0
    %1202 = vmatprep.subr.bf16.mxu0 0
    %1203 = vmatpush1.bf16.msra.mxu0 0
    %1204 = vmatprep.mubr.bf16.mxu0 0
    %1205 = vmatmul.mubr.bf16.gmra.mrb[0].mxu0 %v1167
    %v1206 = vpop.f32.mrb[0].mxu0
    %v1207 = vadd.f32 0.0, %v1206
    %v1208 = vpop.f32.mrb[0].mxu0
    %v1209 = vpop.f32.mrb[0].mxu0
    %v1210 = vadd.f32 0.0, %v1209
    %v1211 = vpop.f32.mrb[0].mxu0
    %1212 = vmatprep.mubr.bf16.mxu0 0
    %1213 = vmatmul.mubr.bf16.gmra.mrb[0].mxu0 %v1170
    %v1214 = vpop.f32.mrb[0].mxu0
    %v1215 = vadd.f32 0.0, %v1214
    %v1216 = vpop.f32.mrb[0].mxu0
    %v1217 = vpop.f32.mrb[0].mxu0
    %v1218 = vadd.f32 0.0, %v1217
    %v1219 = vpop.f32.mrb[0].mxu0
    %1220 = vdwg.mxu0
    %v1221 = vadd.f32 %v1110, %v1207
    %v1222 = vadd.f32 %v1111, %v1210
    %v1223 = vadd.f32 %v1112, %v1215
    %v1224 = vadd.f32 %v1113, %v1218
    %v1225 = vld [vmem:[#allocation2 + $0x1a] sm:$0xf]
    %v1226 = vld [vmem:[#allocation2 + $0x3e] sm:$0xf]
    %v1228 = vrot.slane %v888, 4
    %v1231 = vrot.slane %v1225, 4
    %v1234 = vrot.slane %v892, 4
    %v1237 = vrot.slane %v1226, 4
    %v1239 = vsel %vm636, %v887, %v1228
    %v1240 = vsel %vm636, %v889, %v1231
    %v1241 = vsel %vm636, %v891, %v1234
    %v1242 = vsel %vm636, %v893, %v1237
    %v1243 = vpack.c.bf16 %v1240, %v1239
    %v1244 = vpack.c.bf16 %v1242, %v1241
    %v1245 = vld [vmem:[%s4 + $0xa0] sm:$0xf]
    %v1246 = vld [vmem:[%s4 + $0xa4] sm:$0xf]
    %v1247 = vld [vmem:[%s4 + $0xa8] sm:$0xf]
    %v1248 = vld [vmem:[%s4 + $0xac] sm:$0xf]
    %v1249 = vld [vmem:[%s4 + $0xb0] sm:$0xf]
    %v1250 = vld [vmem:[%s4 + $0xb4] sm:$0xf]
    %v1251 = vld [vmem:[%s4 + $0xb8] sm:$0xf]
    %v1252 = vld [vmem:[%s4 + $0xbc] sm:$0xf]
    %v1261 = vunpack.c.l.b16 %v1245
    %v1262 = vunpack.c.l.b16 %v1246
    %v1263 = vunpack.c.l.b16 %v1247
    %v1264 = vunpack.c.l.b16 %v1248
    %v1265 = vunpack.c.l.b16 %v1249
    %v1266 = vunpack.c.l.b16 %v1250
    %v1267 = vunpack.c.l.b16 %v1251
    %v1268 = vunpack.c.l.b16 %v1252
    %v1269 = vpack.c.b16 %v1262, %v1261
    %v1270 = vpack.c.b16 %v1264, %v1263
    %v1271 = vpack.c.b16 %v1266, %v1265
    %v1272 = vpack.c.b16 %v1268, %v1267
    %v1278 = vsel %vm311, %v1243, 0
    %v1281 = vsel %vm311, %v1244, 0
    %1283 = vmatprep.subr.bf16.mxu0 0
    %1284 = vmatpush1.bf16.msra.mxu0 %v1269
    %1285 = vmatprep.subr.bf16.mxu0 0
    %1286 = vmatpush1.bf16.msra.mxu0 %v1270
    %1287 = vmatprep.subr.bf16.mxu0 0
    %1288 = vmatpush1.bf16.msra.mxu0 %v1271
    %1289 = vmatprep.subr.bf16.mxu0 0
    %1290 = vmatpush1.bf16.msra.mxu0 %v1272
    %1291 = vmatprep.subr.bf16.mxu0 0
    %1292 = vmatpush1.bf16.msra.mxu0 0
    %1293 = vmatprep.subr.bf16.mxu0 0
    %1294 = vmatpush1.bf16.msra.mxu0 0
    %1295 = vmatprep.subr.bf16.mxu0 0
    %1296 = vmatpush1.bf16.msra.mxu0 0
    %1297 = vmatprep.subr.bf16.mxu0 0
    %1298 = vmatpush1.bf16.msra.mxu0 0
    %1299 = vmatprep.subr.bf16.mxu0 0
    %1300 = vmatpush1.bf16.msra.mxu0 0
    %1301 = vmatprep.subr.bf16.mxu0 0
    %1302 = vmatpush1.bf16.msra.mxu0 0
    %1303 = vmatprep.subr.bf16.mxu0 0
    %1304 = vmatpush1.bf16.msra.mxu0 0
    %1305 = vmatprep.subr.bf16.mxu0 0
    %1306 = vmatpush1.bf16.msra.mxu0 0
    %1307 = vmatprep.subr.bf16.mxu0 0
    %1308 = vmatpush1.bf16.msra.mxu0 0
    %1309 = vmatprep.subr.bf16.mxu0 0
    %1310 = vmatpush1.bf16.msra.mxu0 0
    %1311 = vmatprep.subr.bf16.mxu0 0
    %1312 = vmatpush1.bf16.msra.mxu0 0
    %1313 = vmatprep.subr.bf16.mxu0 0
    %1314 = vmatpush1.bf16.msra.mxu0 0
    %1315 = vmatprep.mubr.bf16.mxu0 0
    %1316 = vmatmul.mubr.bf16.gmra.mrb[0].mxu0 %v1278
    %v1317 = vpop.f32.mrb[0].mxu0
    %v1318 = vadd.f32 0.0, %v1317
    %v1319 = vpop.f32.mrb[0].mxu0
    %v1320 = vpop.f32.mrb[0].mxu0
    %v1321 = vadd.f32 0.0, %v1320
    %v1322 = vpop.f32.mrb[0].mxu0
    %1323 = vmatprep.mubr.bf16.mxu0 0
    %1324 = vmatmul.mubr.bf16.gmra.mrb[0].mxu0 %v1281
    %v1325 = vpop.f32.mrb[0].mxu0
    %v1326 = vadd.f32 0.0, %v1325
    %v1327 = vpop.f32.mrb[0].mxu0
    %v1328 = vpop.f32.mrb[0].mxu0
    %v1329 = vadd.f32 0.0, %v1328
    %v1330 = vpop.f32.mrb[0].mxu0
    %1331 = vdwg.mxu0
    %v1332 = vadd.f32 %v1221, %v1318
    %v1333 = vadd.f32 %v1222, %v1321
    %v1334 = vadd.f32 %v1223, %v1326
    %v1335 = vadd.f32 %v1224, %v1329
    %v1336 = vld [vmem:[#allocation2 + $0x1e] sm:$0xf]
    %v1337 = vld [vmem:[#allocation2 + $0x42] sm:$0xf]
    %v1339 = vrot.slane %v1336, 4
    %v1342 = vrot.slane %v1337, 4
    %v1344 = vsel %vm636, %v1003, %v1339
    %v1345 = vsel %vm636, %v1004, %v1342
    %v1346 = vpack.c.bf16 %v1344, %v681
    %v1347 = vpack.c.bf16 %v1345, %v683
    %v1348 = vld [vmem:[%s4 + $0xc0] sm:$0xf]
    %v1349 = vld [vmem:[%s4 + $0xc4] sm:$0xf]
    %v1350 = vld [vmem:[%s4 + $0xc8] sm:$0xf]
    %v1351 = vld [vmem:[%s4 + $0xcc] sm:$0xf]
    %v1352 = vld [vmem:[%s4 + $0xd0] sm:$0xf]
    %v1353 = vld [vmem:[%s4 + $0xd4] sm:$0xf]
    %v1354 = vld [vmem:[%s4 + $0xd8] sm:$0xf]
    %v1355 = vld [vmem:[%s4 + $0xdc] sm:$0xf]
    %v1364 = vunpack.c.l.b16 %v1348
    %v1365 = vunpack.c.l.b16 %v1349
    %v1366 = vunpack.c.l.b16 %v1350
    %v1367 = vunpack.c.l.b16 %v1351
    %v1368 = vunpack.c.l.b16 %v1352
    %v1369 = vunpack.c.l.b16 %v1353
    %v1370 = vunpack.c.l.b16 %v1354
    %v1371 = vunpack.c.l.b16 %v1355
    %v1372 = vpack.c.b16 %v1365, %v1364
    %v1373 = vpack.c.b16 %v1367, %v1366
    %v1374 = vpack.c.b16 %v1369, %v1368
    %v1375 = vpack.c.b16 %v1371, %v1370
    %v1381 = vsel %vm311, %v1346, 0
    %v1384 = vsel %vm311, %v1347, 0
    %1386 = vmatprep.subr.bf16.mxu0 0
    %1387 = vmatpush1.bf16.msra.mxu0 %v1372
    %1388 = vmatprep.subr.bf16.mxu0 0
    %1389 = vmatpush1.bf16.msra.mxu0 %v1373
    %1390 = vmatprep.subr.bf16.mxu0 0
    %1391 = vmatpush1.bf16.msra.mxu0 %v1374
    %1392 = vmatprep.subr.bf16.mxu0 0
    %1393 = vmatpush1.bf16.msra.mxu0 %v1375
    %1394 = vmatprep.subr.bf16.mxu0 0
    %1395 = vmatpush1.bf16.msra.mxu0 0
    %1396 = vmatprep.subr.bf16.mxu0 0
    %1397 = vmatpush1.bf16.msra.mxu0 0
    %1398 = vmatprep.subr.bf16.mxu0 0
    %1399 = vmatpush1.bf16.msra.mxu0 0
    %1400 = vmatprep.subr.bf16.mxu0 0
    %1401 = vmatpush1.bf16.msra.mxu0 0
    %1402 = vmatprep.subr.bf16.mxu0 0
    %1403 = vmatpush1.bf16.msra.mxu0 0
    %1404 = vmatprep.subr.bf16.mxu0 0
    %1405 = vmatpush1.bf16.msra.mxu0 0
    %1406 = vmatprep.subr.bf16.mxu0 0
    %1407 = vmatpush1.bf16.msra.mxu0 0
    %1408 = vmatprep.subr.bf16.mxu0 0
    %1409 = vmatpush1.bf16.msra.mxu0 0
    %1410 = vmatprep.subr.bf16.mxu0 0
    %1411 = vmatpush1.bf16.msra.mxu0 0
    %1412 = vmatprep.subr.bf16.mxu0 0
    %1413 = vmatpush1.bf16.msra.mxu0 0
    %1414 = vmatprep.subr.bf16.mxu0 0
    %1415 = vmatpush1.bf16.msra.mxu0 0
    %1416 = vmatprep.subr.bf16.mxu0 0
    %1417 = vmatpush1.bf16.msra.mxu0 0
    %1418 = vmatprep.mubr.bf16.mxu0 0
    %1419 = vmatmul.mubr.bf16.gmra.mrb[0].mxu0 %v1381
    %v1420 = vpop.f32.mrb[0].mxu0
    %v1421 = vadd.f32 0.0, %v1420
    %v1422 = vpop.f32.mrb[0].mxu0
    %v1423 = vpop.f32.mrb[0].mxu0
    %v1424 = vadd.f32 0.0, %v1423
    %v1425 = vpop.f32.mrb[0].mxu0
    %1426 = vmatprep.mubr.bf16.mxu0 0
    %1427 = vmatmul.mubr.bf16.gmra.mrb[0].mxu0 %v1384
    %v1428 = vpop.f32.mrb[0].mxu0
    %v1429 = vadd.f32 0.0, %v1428
    %v1430 = vpop.f32.mrb[0].mxu0
    %v1431 = vpop.f32.mrb[0].mxu0
    %v1432 = vadd.f32 0.0, %v1431
    %v1433 = vpop.f32.mrb[0].mxu0
    %1434 = vdwg.mxu0
    %v1435 = vadd.f32 %v1332, %v1421
    %v1436 = vadd.f32 %v1333, %v1424
    %v1437 = vadd.f32 %v1334, %v1429
    %v1438 = vadd.f32 %v1335, %v1432
    %v1439 = vld [vmem:[#allocation2 + $0x1f] sm:$0xf]
    %v1440 = vld [vmem:[#allocation2 + $0x43] sm:$0xf]
    %v1442 = vrot.slane %v1439, 4
    %v1445 = vrot.slane %v1440, 4
    %v1447 = vsel %vm636, %v1114, %v1442
    %v1448 = vsel %vm636, %v1115, %v1445
    %v1449 = vpack.c.bf16 %v1447, %v715
    %v1450 = vpack.c.bf16 %v1448, %v717
    %v1451 = vld [vmem:[%s4 + $0xe0] sm:$0xf]
    %v1452 = vld [vmem:[%s4 + $0xe4] sm:$0xf]
    %v1453 = vld [vmem:[%s4 + $0xe8] sm:$0xf]
    %v1454 = vld [vmem:[%s4 + $0xec] sm:$0xf]
    %v1455 = vld [vmem:[%s4 + $0xf0] sm:$0xf]
    %v1456 = vld [vmem:[%s4 + $0xf4] sm:$0xf]
    %v1457 = vld [vmem:[%s4 + $0xf8] sm:$0xf]
    %v1458 = vld [vmem:[%s4 + $0xfc] sm:$0xf]
    %v1467 = vunpack.c.l.b16 %v1451
    %v1468 = vunpack.c.l.b16 %v1452
    %v1469 = vunpack.c.l.b16 %v1453
    %v1470 = vunpack.c.l.b16 %v1454
    %v1471 = vunpack.c.l.b16 %v1455
    %v1472 = vunpack.c.l.b16 %v1456
    %v1473 = vunpack.c.l.b16 %v1457
    %v1474 = vunpack.c.l.b16 %v1458
    %v1475 = vpack.c.b16 %v1468, %v1467
    %v1476 = vpack.c.b16 %v1470, %v1469
    %v1477 = vpack.c.b16 %v1472, %v1471
    %v1478 = vpack.c.b16 %v1474, %v1473
    %v1484 = vsel %vm311, %v1449, 0
    %v1487 = vsel %vm311, %v1450, 0
    %1489 = vmatprep.subr.bf16.mxu0 0
    %1490 = vmatpush1.bf16.msra.mxu0 %v1475
    %1491 = vmatprep.subr.bf16.mxu0 0
    %1492 = vmatpush1.bf16.msra.mxu0 %v1476
    %1493 = vmatprep.subr.bf16.mxu0 0
    %1494 = vmatpush1.bf16.msra.mxu0 %v1477
    %1495 = vmatprep.subr.bf16.mxu0 0
    %1496 = vmatpush1.bf16.msra.mxu0 %v1478
    %1497 = vmatprep.subr.bf16.mxu0 0
    %1498 = vmatpush1.bf16.msra.mxu0 0
    %1499 = vmatprep.subr.bf16.mxu0 0
    %1500 = vmatpush1.bf16.msra.mxu0 0
    %1501 = vmatprep.subr.bf16.mxu0 0
    %1502 = vmatpush1.bf16.msra.mxu0 0
    %1503 = vmatprep.subr.bf16.mxu0 0
    %1504 = vmatpush1.bf16.msra.mxu0 0
    %1505 = vmatprep.subr.bf16.mxu0 0
    %1506 = vmatpush1.bf16.msra.mxu0 0
    %1507 = vmatprep.subr.bf16.mxu0 0
    %1508 = vmatpush1.bf16.msra.mxu0 0
    %1509 = vmatprep.subr.bf16.mxu0 0
    %1510 = vmatpush1.bf16.msra.mxu0 0
    %1511 = vmatprep.subr.bf16.mxu0 0
    %1512 = vmatpush1.bf16.msra.mxu0 0
    %1513 = vmatprep.subr.bf16.mxu0 0
    %1514 = vmatpush1.bf16.msra.mxu0 0
    %1515 = vmatprep.subr.bf16.mxu0 0
    %1516 = vmatpush1.bf16.msra.mxu0 0
    %1517 = vmatprep.subr.bf16.mxu0 0
    %1518 = vmatpush1.bf16.msra.mxu0 0
    %1519 = vmatprep.subr.bf16.mxu0 0
    %1520 = vmatpush1.bf16.msra.mxu0 0
    %1521 = vmatprep.mubr.bf16.mxu0 0
    %1522 = vmatmul.mubr.bf16.gmra.mrb[0].mxu0 %v1484
    %v1523 = vpop.f32.mrb[0].mxu0
    %v1524 = vadd.f32 0.0, %v1523
    %v1525 = vpop.f32.mrb[0].mxu0
    %v1526 = vpop.f32.mrb[0].mxu0
    %v1527 = vadd.f32 0.0, %v1526
    %v1528 = vpop.f32.mrb[0].mxu0
    %1529 = vmatprep.mubr.bf16.mxu0 0
    %1530 = vmatmul.mubr.bf16.gmra.mrb[0].mxu0 %v1487
    %v1531 = vpop.f32.mrb[0].mxu0
    %v1532 = vadd.f32 0.0, %v1531
    %v1533 = vpop.f32.mrb[0].mxu0
    %v1534 = vpop.f32.mrb[0].mxu0
    %v1535 = vadd.f32 0.0, %v1534
    %v1536 = vpop.f32.mrb[0].mxu0
    %1537 = vdwg.mxu0
    %v1538 = vadd.f32 %v1435, %v1524
    %v1539 = vadd.f32 %v1436, %v1527
    %v1540 = vadd.f32 %v1437, %v1532
    %v1541 = vadd.f32 %v1438, %v1535
    %v1542 = vld [vmem:[#allocation2 + $0x20] sm:$0xf]
    %v1543 = vld [vmem:[#allocation2 + $0x44] sm:$0xf]
    %v1545 = vrot.slane %v1542, 4
    %v1548 = vrot.slane %v1543, 4
    %v1550 = vsel %vm636, %v1225, %v1545
    %v1551 = vsel %vm636, %v1226, %v1548
    %v1552 = vpack.c.bf16 %v1550, %v907
    %v1553 = vpack.c.bf16 %v1551, %v909
    %v1554 = vld [vmem:[%s4 + $0x100] sm:$0xf]
    %v1555 = vld [vmem:[%s4 + $0x104] sm:$0xf]
    %v1556 = vld [vmem:[%s4 + $0x108] sm:$0xf]
    %v1557 = vld [vmem:[%s4 + $0x10c] sm:$0xf]
    %v1558 = vld [vmem:[%s4 + $0x110] sm:$0xf]
    %v1559 = vld [vmem:[%s4 + $0x114] sm:$0xf]
    %v1560 = vld [vmem:[%s4 + $0x118] sm:$0xf]
    %v1561 = vld [vmem:[%s4 + $0x11c] sm:$0xf]
    %v1570 = vunpack.c.l.b16 %v1554
    %v1571 = vunpack.c.l.b16 %v1555
    %v1572 = vunpack.c.l.b16 %v1556
    %v1573 = vunpack.c.l.b16 %v1557
    %v1574 = vunpack.c.l.b16 %v1558
    %v1575 = vunpack.c.l.b16 %v1559
    %v1576 = vunpack.c.l.b16 %v1560
    %v1577 = vunpack.c.l.b16 %v1561
    %v1578 = vpack.c.b16 %v1571, %v1570
    %v1579 = vpack.c.b16 %v1573, %v1572
    %v1580 = vpack.c.b16 %v1575, %v1574
    %v1581 = vpack.c.b16 %v1577, %v1576
    %v1587 = vsel %vm311, %v1552, 0
    %v1590 = vsel %vm311, %v1553, 0
    %1592 = vmatprep.subr.bf16.mxu0 0
    %1593 = vmatpush1.bf16.msra.mxu0 %v1578
    %1594 = vmatprep.subr.bf16.mxu0 0
    %1595 = vmatpush1.bf16.msra.mxu0 %v1579
    %1596 = vmatprep.subr.bf16.mxu0 0
    %1597 = vmatpush1.bf16.msra.mxu0 %v1580
    %1598 = vmatprep.subr.bf16.mxu0 0
    %1599 = vmatpush1.bf16.msra.mxu0 %v1581
    %1600 = vmatprep.subr.bf16.mxu0 0
    %1601 = vmatpush1.bf16.msra.mxu0 0
    %1602 = vmatprep.subr.bf16.mxu0 0
    %1603 = vmatpush1.bf16.msra.mxu0 0
    %1604 = vmatprep.subr.bf16.mxu0 0
    %1605 = vmatpush1.bf16.msra.mxu0 0
    %1606 = vmatprep.subr.bf16.mxu0 0
    %1607 = vmatpush1.bf16.msra.mxu0 0
    %1608 = vmatprep.subr.bf16.mxu0 0
    %1609 = vmatpush1.bf16.msra.mxu0 0
    %1610 = vmatprep.subr.bf16.mxu0 0
    %1611 = vmatpush1.bf16.msra.mxu0 0
    %1612 = vmatprep.subr.bf16.mxu0 0
    %1613 = vmatpush1.bf16.msra.mxu0 0
    %1614 = vmatprep.subr.bf16.mxu0 0
    %1615 = vmatpush1.bf16.msra.mxu0 0
    %1616 = vmatprep.subr.bf16.mxu0 0
    %1617 = vmatpush1.bf16.msra.mxu0 0
    %1618 = vmatprep.subr.bf16.mxu0 0
    %1619 = vmatpush1.bf16.msra.mxu0 0
    %1620 = vmatprep.subr.bf16.mxu0 0
    %1621 = vmatpush1.bf16.msra.mxu0 0
    %1622 = vmatprep.subr.bf16.mxu0 0
    %1623 = vmatpush1.bf16.msra.mxu0 0
    %1624 = vmatprep.mubr.bf16.mxu0 0
    %1625 = vmatmul.mubr.bf16.gmra.mrb[0].mxu0 %v1587
    %v1626 = vpop.f32.mrb[0].mxu0
    %v1627 = vadd.f32 0.0, %v1626
    %v1628 = vpop.f32.mrb[0].mxu0
    %v1629 = vpop.f32.mrb[0].mxu0
    %v1630 = vadd.f32 0.0, %v1629
    %v1631 = vpop.f32.mrb[0].mxu0
    %1632 = vmatprep.mubr.bf16.mxu0 0
    %1633 = vmatmul.mubr.bf16.gmra.mrb[0].mxu0 %v1590
    %v1634 = vpop.f32.mrb[0].mxu0
    %v1635 = vadd.f32 0.0, %v1634
    %v1636 = vpop.f32.mrb[0].mxu0
    %v1637 = vpop.f32.mrb[0].mxu0
    %v1638 = vadd.f32 0.0, %v1637
    %v1639 = vpop.f32.mrb[0].mxu0
    %1640 = vdwg.mxu0
    %v1641 = vadd.f32 %v1538, %v1627
    %v1642 = vadd.f32 %v1539, %v1630
    %v1643 = vadd.f32 %v1540, %v1635
    %v1644 = vadd.f32 %v1541, %v1638
    %v1645 = vsel %vm311, %v1641, 0.0
    %v1646 = vsel %vm311, %v1642, 0.0
    %v1647 = vadd.f32 %v1645, %v1646
    %v1648 = vsel %vm311, %v1643, 0.0
    %v1649 = vadd.f32 %v1647, %v1648
    %v1650 = vsel %vm311, %v1644, 0.0
    %v1651 = vadd.f32 %v1649, %v1650
    %v1652 = vrot.slane %v1651, 4
    %v1653 = vadd.f32 %v1651, %v1652
    %v1654 = vrot.slane %v1653, 2
    %v1655 = vadd.f32 %v1653, %v1654
    %v1656 = vrot.slane %v1655, 1
    %v1657 = vadd.f32 %v1655, %v1656
    %v1658 = vmul.f32 %v1657, 0.03125
    %v1659 = vmul.f32 %v1641, %v1641
    %v1660 = vmul.f32 %v1642, %v1642
    %v1661 = vmul.f32 %v1643, %v1643
    %v1662 = vmul.f32 %v1644, %v1644
    %v1663 = vsel %vm311, %v1659, 0.0
    %v1664 = vsel %vm311, %v1660, 0.0
    %v1665 = vadd.f32 %v1663, %v1664
    %v1666 = vsel %vm311, %v1661, 0.0
    %v1667 = vadd.f32 %v1665, %v1666
    %v1668 = vsel %vm311, %v1662, 0.0
    %v1669 = vadd.f32 %v1667, %v1668
    %v1670 = vrot.slane %v1669, 4
    %v1671 = vadd.f32 %v1669, %v1670
    %v1672 = vrot.slane %v1671, 2
    %v1673 = vadd.f32 %v1671, %v1672
    %v1674 = vrot.slane %v1673, 1
    %v1675 = vadd.f32 %v1673, %v1674
    %v1676 = vmul.f32 %v1675, 0.03125
    %v1677 = vmul.f32 %v1658, %v1658
    %v1678 = vsub.f32 %v1676, %v1677
    %v1679 = vld [vmem:[%s5] sm:$0x1]
    %v1680 = vmax.f32 %v1678, 0.0
    %v1681 = vadd.f32 %v1680, 1e-05
    %v1682 = vrsqrt.pop %v1681
    %v1683 = vmul.f32 %v1679, %v1682
    %v1684 = vsub.f32 %v1641, %v1658
    %v1685 = vsub.f32 %v1642, %v1658
    %v1686 = vsub.f32 %v1643, %v1658
    %v1687 = vsub.f32 %v1644, %v1658
    %v1689 = vlaneseq
    %v1690 = vshrl.u32 %v1689, 7
    %v1691 = vsub.s32 0, %v1690
    %v1692 = vrot.slane %v1683, %v1691
    %v1694 = vmul.f32 %v1684, %v1692
    %v1695 = vmul.f32 %v1685, %v1692
    %v1696 = vmul.f32 %v1686, %v1692
    %v1697 = vmul.f32 %v1687, %v1692
    %v1698 = vld [vmem:[%s6] sm:$0x1]
    %v1700 = vlaneseq
    %v1701 = vshrl.u32 %v1700, 7
    %v1702 = vsub.s32 0, %v1701
    %v1703 = vrot.slane %v1698, %v1702
    %v1705 = vadd.f32 %v1694, %v1703
    %v1706 = vadd.f32 %v1695, %v1703
    %v1707 = vadd.f32 %v1696, %v1703
    %v1708 = vadd.f32 %v1697, %v1703
    %v1709 = vmax.f32 %v1705, 0.0
    %v1710 = vmax.f32 %v1706, 0.0
    %v1711 = vmax.f32 %v1707, 0.0
    %v1712 = vmax.f32 %v1708, 0.0
    %1713 = vst.msk [vmem:[#allocation2 + $0x7] sm:$0xf] %vm650, %v1709
    %1714 = vst.msk [vmem:[#allocation2 + $0x9] sm:$0xf0] %vm652, %v1709
    %1715 = vst.msk [vmem:[#allocation2 + $0x13] sm:$0xf] %vm650, %v1710
    %1716 = vst.msk [vmem:[#allocation2 + $0x15] sm:$0xf0] %vm652, %v1710
    %1717 = vst.msk [vmem:[#allocation2 + $0x2b] sm:$0xf] %vm650, %v1711
    %1718 = vst.msk [vmem:[#allocation2 + $0x2d] sm:$0xf0] %vm652, %v1711
    %1719 = vst.msk [vmem:[#allocation2 + $0x37] sm:$0xf] %vm650, %v1712
    %1720 = vst.msk [vmem:[#allocation2 + $0x39] sm:$0xf0] %vm652, %v1712
    %v1721 = vld [vmem:[#allocation2] sm:$0xf]
    %v1722 = vld [vmem:[#allocation2 + $0x6] sm:$0xf]
    %v1723 = vld [vmem:[#allocation2 + $0xc] sm:$0xf]
    %v1724 = vld [vmem:[#allocation2 + $0x12] sm:$0xf]
    %v1725 = vld [vmem:[#allocation2 + $0x24] sm:$0xf]
    %v1726 = vld [vmem:[#allocation2 + $0x2a] sm:$0xf]
    %v1727 = vld [vmem:[#allocation2 + $0x30] sm:$0xf]
    %v1728 = vld [vmem:[#allocation2 + $0x36] sm:$0xf]
    %v1730 = vrot.slane %v1722, 4
    %v1733 = vrot.slane %v1724, 4
    %v1736 = vrot.slane %v1726, 4
    %v1739 = vrot.slane %v1728, 4
    %v1741 = vsel %vm636, %v1721, %v1730
    %v1742 = vsel %vm636, %v1723, %v1733
    %v1743 = vsel %vm636, %v1725, %v1736
    %v1744 = vsel %vm636, %v1727, %v1739
    %v1745 = vpack.c.bf16 %v1742, %v1741
    %v1746 = vpack.c.bf16 %v1744, %v1743
    %v1747 = vld [vmem:[%s7] sm:$0xf]
    %v1748 = vld [vmem:[%s7 + $0x4] sm:$0xf]
    %v1749 = vld [vmem:[%s7 + $0x8] sm:$0xf]
    %v1750 = vld [vmem:[%s7 + $0xc] sm:$0xf]
    %v1751 = vld [vmem:[%s7 + $0x10] sm:$0xf]
    %v1752 = vld [vmem:[%s7 + $0x14] sm:$0xf]
    %v1753 = vld [vmem:[%s7 + $0x18] sm:$0xf]
    %v1754 = vld [vmem:[%s7 + $0x1c] sm:$0xf]
    %v1755 = vld [vmem:[#allocation2 + $0x1] sm:$0xf]
    %v1756 = vld [vmem:[#allocation2 + $0x7] sm:$0xf]
    %v1757 = vld [vmem:[#allocation2 + $0xd] sm:$0xf]
    %v1758 = vld [vmem:[#allocation2 + $0x13] sm:$0xf]
    %v1759 = vld [vmem:[#allocation2 + $0x25] sm:$0xf]
    %v1760 = vld [vmem:[#allocation2 + $0x2b] sm:$0xf]
    %v1761 = vld [vmem:[#allocation2 + $0x31] sm:$0xf]
    %v1762 = vld [vmem:[#allocation2 + $0x37] sm:$0xf]
    %v1764 = vrot.slane %v1756, 4
    %v1767 = vrot.slane %v1758, 4
    %v1770 = vrot.slane %v1760, 4
    %v1773 = vrot.slane %v1762, 4
    %v1775 = vsel %vm636, %v1755, %v1764
    %v1776 = vsel %vm636, %v1757, %v1767
    %v1777 = vsel %vm636, %v1759, %v1770
    %v1778 = vsel %vm636, %v1761, %v1773
    %v1779 = vpack.c.bf16 %v1776, %v1775
    %v1780 = vpack.c.bf16 %v1778, %v1777
    %v1781 = vld [vmem:[%s7 + $0x20] sm:$0xf]
    %v1782 = vld [vmem:[%s7 + $0x24] sm:$0xf]
    %v1783 = vld [vmem:[%s7 + $0x28] sm:$0xf]
    %v1784 = vld [vmem:[%s7 + $0x2c] sm:$0xf]
    %v1785 = vld [vmem:[%s7 + $0x30] sm:$0xf]
    %v1786 = vld [vmem:[%s7 + $0x34] sm:$0xf]
    %v1787 = vld [vmem:[%s7 + $0x38] sm:$0xf]
    %v1788 = vld [vmem:[%s7 + $0x3c] sm:$0xf]
    %v1797 = vunpack.c.l.b16 %v1781
    %v1798 = vunpack.c.l.b16 %v1782
    %v1799 = vunpack.c.l.b16 %v1783
    %v1800 = vunpack.c.l.b16 %v1784
    %v1801 = vunpack.c.l.b16 %v1785
    %v1802 = vunpack.c.l.b16 %v1786
    %v1803 = vunpack.c.l.b16 %v1787
    %v1804 = vunpack.c.l.b16 %v1788
    %v1805 = vpack.c.b16 %v1798, %v1797
    %v1806 = vpack.c.b16 %v1800, %v1799
    %v1807 = vpack.c.b16 %v1802, %v1801
    %v1808 = vpack.c.b16 %v1804, %v1803
    %v1814 = vsel %vm311, %v1779, 0
    %v1817 = vsel %vm311, %v1780, 0
    %1819 = vmatprep.subr.bf16.mxu0 0
    %1820 = vmatpush1.bf16.msra.mxu0 %v1805
    %1821 = vmatprep.subr.bf16.mxu0 0
    %1822 = vmatpush1.bf16.msra.mxu0 %v1806
    %1823 = vmatprep.subr.bf16.mxu0 0
    %1824 = vmatpush1.bf16.msra.mxu0 %v1807
    %1825 = vmatprep.subr.bf16.mxu0 0
    %1826 = vmatpush1.bf16.msra.mxu0 %v1808
    %1827 = vmatprep.subr.bf16.mxu0 0
    %1828 = vmatpush1.bf16.msra.mxu0 0
    %1829 = vmatprep.subr.bf16.mxu0 0
    %1830 = vmatpush1.bf16.msra.mxu0 0
    %1831 = vmatprep.subr.bf16.mxu0 0
    %1832 = vmatpush1.bf16.msra.mxu0 0
    %1833 = vmatprep.subr.bf16.mxu0 0
    %1834 = vmatpush1.bf16.msra.mxu0 0
    %1835 = vmatprep.subr.bf16.mxu0 0
    %1836 = vmatpush1.bf16.msra.mxu0 0
    %1837 = vmatprep.subr.bf16.mxu0 0
    %1838 = vmatpush1.bf16.msra.mxu0 0
    %1839 = vmatprep.subr.bf16.mxu0 0
    %1840 = vmatpush1.bf16.msra.mxu0 0
    %1841 = vmatprep.subr.bf16.mxu0 0
    %1842 = vmatpush1.bf16.msra.mxu0 0
    %1843 = vmatprep.subr.bf16.mxu0 0
    %1844 = vmatpush1.bf16.msra.mxu0 0
    %1845 = vmatprep.subr.bf16.mxu0 0
    %1846 = vmatpush1.bf16.msra.mxu0 0
    %1847 = vmatprep.subr.bf16.mxu0 0
    %1848 = vmatpush1.bf16.msra.mxu0 0
    %1849 = vmatprep.subr.bf16.mxu0 0
    %1850 = vmatpush1.bf16.msra.mxu0 0
    %1851 = vmatprep.mubr.bf16.mxu0 0
    %1852 = vmatmul.mubr.bf16.gmra.mrb[0].mxu0 %v1814
    %v1853 = vpop.f32.mrb[0].mxu0
    %v1854 = vadd.f32 0.0, %v1853
    %v1855 = vpop.f32.mrb[0].mxu0
    %v1856 = vpop.f32.mrb[0].mxu0
    %v1857 = vadd.f32 0.0, %v1856
    %v1858 = vpop.f32.mrb[0].mxu0
    %1859 = vmatprep.mubr.bf16.mxu0 0
    %1860 = vmatmul.mubr.bf16.gmra.mrb[0].mxu0 %v1817
    %v1861 = vpop.f32.mrb[0].mxu0
    %v1862 = vadd.f32 0.0, %v1861
    %v1863 = vpop.f32.mrb[0].mxu0
    %v1864 = vpop.f32.mrb[0].mxu0
    %v1865 = vadd.f32 0.0, %v1864
    %v1866 = vpop.f32.mrb[0].mxu0
    %1867 = vdwg.mxu0
    %v1876 = vunpack.c.l.b16 %v1747
    %v1877 = vunpack.c.l.b16 %v1748
    %v1878 = vunpack.c.l.b16 %v1749
    %v1879 = vunpack.c.l.b16 %v1750
    %v1880 = vunpack.c.l.b16 %v1751
    %v1881 = vunpack.c.l.b16 %v1752
    %v1882 = vunpack.c.l.b16 %v1753
    %v1883 = vunpack.c.l.b16 %v1754
    %v1884 = vpack.c.b16 %v1877, %v1876
    %v1885 = vpack.c.b16 %v1879, %v1878
    %v1886 = vpack.c.b16 %v1881, %v1880
    %v1887 = vpack.c.b16 %v1883, %v1882
    %v1893 = vsel %vm311, %v1745, 0
    %v1896 = vsel %vm311, %v1746, 0
    %1898 = vmatprep.subr.bf16.mxu0 0
    %1899 = vmatpush1.bf16.msra.mxu0 %v1884
    %1900 = vmatprep.subr.bf16.mxu0 0
    %1901 = vmatpush1.bf16.msra.mxu0 %v1885
    %1902 = vmatprep.subr.bf16.mxu0 0
    %1903 = vmatpush1.bf16.msra.mxu0 %v1886
    %1904 = vmatprep.subr.bf16.mxu0 0
    %1905 = vmatpush1.bf16.msra.mxu0 %v1887
    %1906 = vmatprep.subr.bf16.mxu0 0
    %1907 = vmatpush1.bf16.msra.mxu0 0
    %1908 = vmatprep.subr.bf16.mxu0 0
    %1909 = vmatpush1.bf16.msra.mxu0 0
    %1910 = vmatprep.subr.bf16.mxu0 0
    %1911 = vmatpush1.bf16.msra.mxu0 0
    %1912 = vmatprep.subr.bf16.mxu0 0
    %1913 = vmatpush1.bf16.msra.mxu0 0
    %1914 = vmatprep.subr.bf16.mxu0 0
    %1915 = vmatpush1.bf16.msra.mxu0 0
    %1916 = vmatprep.subr.bf16.mxu0 0
    %1917 = vmatpush1.bf16.msra.mxu0 0
    %1918 = vmatprep.subr.bf16.mxu0 0
    %1919 = vmatpush1.bf16.msra.mxu0 0
    %1920 = vmatprep.subr.bf16.mxu0 0
    %1921 = vmatpush1.bf16.msra.mxu0 0
    %1922 = vmatprep.subr.bf16.mxu0 0
    %1923 = vmatpush1.bf16.msra.mxu0 0
    %1924 = vmatprep.subr.bf16.mxu0 0
    %1925 = vmatpush1.bf16.msra.mxu0 0
    %1926 = vmatprep.subr.bf16.mxu0 0
    %1927 = vmatpush1.bf16.msra.mxu0 0
    %1928 = vmatprep.subr.bf16.mxu0 0
    %1929 = vmatpush1.bf16.msra.mxu0 0
    %1930 = vmatprep.mubr.bf16.mxu0 0
    %1931 = vmatmul.mubr.bf16.gmra.mrb[0].mxu0 %v1893
    %v1932 = vpop.f32.mrb[0].mxu0
    %v1933 = vadd.f32 %v1854, %v1932
    %v1934 = vpop.f32.mrb[0].mxu0
    %v1935 = vpop.f32.mrb[0].mxu0
    %v1936 = vadd.f32 %v1857, %v1935
    %v1937 = vpop.f32.mrb[0].mxu0
    %1938 = vmatprep.mubr.bf16.mxu0 0
    %1939 = vmatmul.mubr.bf16.gmra.mrb[0].mxu0 %v1896
    %v1940 = vpop.f32.mrb[0].mxu0
    %v1941 = vadd.f32 %v1862, %v1940
    %v1942 = vpop.f32.mrb[0].mxu0
    %v1943 = vpop.f32.mrb[0].mxu0
    %v1944 = vadd.f32 %v1865, %v1943
    %v1945 = vpop.f32.mrb[0].mxu0
    %1946 = vdwg.mxu0
    %v1947 = vld [vmem:[#allocation2 + $0x2] sm:$0xf]
    %v1948 = vld [vmem:[#allocation2 + $0x8] sm:$0xf]
    %v1949 = vld [vmem:[#allocation2 + $0xe] sm:$0xf]
    %v1950 = vld [vmem:[#allocation2 + $0x14] sm:$0xf]
    %v1951 = vld [vmem:[#allocation2 + $0x26] sm:$0xf]
    %v1952 = vld [vmem:[#allocation2 + $0x2c] sm:$0xf]
    %v1953 = vld [vmem:[#allocation2 + $0x32] sm:$0xf]
    %v1954 = vld [vmem:[#allocation2 + $0x38] sm:$0xf]
    %v1956 = vrot.slane %v1948, 4
    %v1959 = vrot.slane %v1950, 4
    %v1962 = vrot.slane %v1952, 4
    %v1965 = vrot.slane %v1954, 4
    %v1967 = vsel %vm636, %v1947, %v1956
    %v1968 = vsel %vm636, %v1949, %v1959
    %v1969 = vsel %vm636, %v1951, %v1962
    %v1970 = vsel %vm636, %v1953, %v1965
    %v1971 = vpack.c.bf16 %v1968, %v1967
    %v1972 = vpack.c.bf16 %v1970, %v1969
    %v1973 = vld [vmem:[%s7 + $0x40] sm:$0xf]
    %v1974 = vld [vmem:[%s7 + $0x44] sm:$0xf]
    %v1975 = vld [vmem:[%s7 + $0x48] sm:$0xf]
    %v1976 = vld [vmem:[%s7 + $0x4c] sm:$0xf]
    %v1977 = vld [vmem:[%s7 + $0x50] sm:$0xf]
    %v1978 = vld [vmem:[%s7 + $0x54] sm:$0xf]
    %v1979 = vld [vmem:[%s7 + $0x58] sm:$0xf]
    %v1980 = vld [vmem:[%s7 + $0x5c] sm:$0xf]
    %v1989 = vunpack.c.l.b16 %v1973
    %v1990 = vunpack.c.l.b16 %v1974
    %v1991 = vunpack.c.l.b16 %v1975
    %v1992 = vunpack.c.l.b16 %v1976
    %v1993 = vunpack.c.l.b16 %v1977
    %v1994 = vunpack.c.l.b16 %v1978
    %v1995 = vunpack.c.l.b16 %v1979
    %v1996 = vunpack.c.l.b16 %v1980
    %v1997 = vpack.c.b16 %v1990, %v1989
    %v1998 = vpack.c.b16 %v1992, %v1991
    %v1999 = vpack.c.b16 %v1994, %v1993
    %v2000 = vpack.c.b16 %v1996, %v1995
    %v2006 = vsel %vm311, %v1971, 0
    %v2009 = vsel %vm311, %v1972, 0
    %2011 = vmatprep.subr.bf16.mxu0 0
    %2012 = vmatpush1.bf16.msra.mxu0 %v1997
    %2013 = vmatprep.subr.bf16.mxu0 0
    %2014 = vmatpush1.bf16.msra.mxu0 %v1998
    %2015 = vmatprep.subr.bf16.mxu0 0
    %2016 = vmatpush1.bf16.msra.mxu0 %v1999
    %2017 = vmatprep.subr.bf16.mxu0 0
    %2018 = vmatpush1.bf16.msra.mxu0 %v2000
    %2019 = vmatprep.subr.bf16.mxu0 0
    %2020 = vmatpush1.bf16.msra.mxu0 0
    %2021 = vmatprep.subr.bf16.mxu0 0
    %2022 = vmatpush1.bf16.msra.mxu0 0
    %2023 = vmatprep.subr.bf16.mxu0 0
    %2024 = vmatpush1.bf16.msra.mxu0 0
    %2025 = vmatprep.subr.bf16.mxu0 0
    %2026 = vmatpush1.bf16.msra.mxu0 0
    %2027 = vmatprep.subr.bf16.mxu0 0
    %2028 = vmatpush1.bf16.msra.mxu0 0
    %2029 = vmatprep.subr.bf16.mxu0 0
    %2030 = vmatpush1.bf16.msra.mxu0 0
    %2031 = vmatprep.subr.bf16.mxu0 0
    %2032 = vmatpush1.bf16.msra.mxu0 0
    %2033 = vmatprep.subr.bf16.mxu0 0
    %2034 = vmatpush1.bf16.msra.mxu0 0
    %2035 = vmatprep.subr.bf16.mxu0 0
    %2036 = vmatpush1.bf16.msra.mxu0 0
    %2037 = vmatprep.subr.bf16.mxu0 0
    %2038 = vmatpush1.bf16.msra.mxu0 0
    %2039 = vmatprep.subr.bf16.mxu0 0
    %2040 = vmatpush1.bf16.msra.mxu0 0
    %2041 = vmatprep.subr.bf16.mxu0 0
    %2042 = vmatpush1.bf16.msra.mxu0 0
    %2043 = vmatprep.mubr.bf16.mxu0 0
    %2044 = vmatmul.mubr.bf16.gmra.mrb[0].mxu0 %v2006
    %v2045 = vpop.f32.mrb[0].mxu0
    %v2046 = vadd.f32 0.0, %v2045
    %v2047 = vpop.f32.mrb[0].mxu0
    %v2048 = vpop.f32.mrb[0].mxu0
    %v2049 = vadd.f32 0.0, %v2048
    %v2050 = vpop.f32.mrb[0].mxu0
    %2051 = vmatprep.mubr.bf16.mxu0 0
    %2052 = vmatmul.mubr.bf16.gmra.mrb[0].mxu0 %v2009
    %v2053 = vpop.f32.mrb[0].mxu0
    %v2054 = vadd.f32 0.0, %v2053
    %v2055 = vpop.f32.mrb[0].mxu0
    %v2056 = vpop.f32.mrb[0].mxu0
    %v2057 = vadd.f32 0.0, %v2056
    %v2058 = vpop.f32.mrb[0].mxu0
    %2059 = vdwg.mxu0
    %v2060 = vadd.f32 %v1933, %v2046
    %v2061 = vadd.f32 %v1936, %v2049
    %v2062 = vadd.f32 %v1941, %v2054
    %v2063 = vadd.f32 %v1944, %v2057
    %v2064 = vld [vmem:[#allocation2 + $0x18] sm:$0xf]
    %v2065 = vld [vmem:[#allocation2 + $0x3c] sm:$0xf]
    %v2067 = vrot.slane %v1723, 4
    %v2070 = vrot.slane %v2064, 4
    %v2073 = vrot.slane %v1727, 4
    %v2076 = vrot.slane %v2065, 4
    %v2078 = vsel %vm636, %v1722, %v2067
    %v2079 = vsel %vm636, %v1724, %v2070
    %v2080 = vsel %vm636, %v1726, %v2073
    %v2081 = vsel %vm636, %v1728, %v2076
    %v2082 = vpack.c.bf16 %v2079, %v2078
    %v2083 = vpack.c.bf16 %v2081, %v2080
    %v2084 = vld [vmem:[%s7 + $0x60] sm:$0xf]
    %v2085 = vld [vmem:[%s7 + $0x64] sm:$0xf]
    %v2086 = vld [vmem:[%s7 + $0x68] sm:$0xf]
    %v2087 = vld [vmem:[%s7 + $0x6c] sm:$0xf]
    %v2088 = vld [vmem:[%s7 + $0x70] sm:$0xf]
    %v2089 = vld [vmem:[%s7 + $0x74] sm:$0xf]
    %v2090 = vld [vmem:[%s7 + $0x78] sm:$0xf]
    %v2091 = vld [vmem:[%s7 + $0x7c] sm:$0xf]
    %v2100 = vunpack.c.l.b16 %v2084
    %v2101 = vunpack.c.l.b16 %v2085
    %v2102 = vunpack.c.l.b16 %v2086
    %v2103 = vunpack.c.l.b16 %v2087
    %v2104 = vunpack.c.l.b16 %v2088
    %v2105 = vunpack.c.l.b16 %v2089
    %v2106 = vunpack.c.l.b16 %v2090
    %v2107 = vunpack.c.l.b16 %v2091
    %v2108 = vpack.c.b16 %v2101, %v2100
    %v2109 = vpack.c.b16 %v2103, %v2102
    %v2110 = vpack.c.b16 %v2105, %v2104
    %v2111 = vpack.c.b16 %v2107, %v2106
    %v2117 = vsel %vm311, %v2082, 0
    %v2120 = vsel %vm311, %v2083, 0
    %2122 = vmatprep.subr.bf16.mxu0 0
    %2123 = vmatpush1.bf16.msra.mxu0 %v2108
    %2124 = vmatprep.subr.bf16.mxu0 0
    %2125 = vmatpush1.bf16.msra.mxu0 %v2109
    %2126 = vmatprep.subr.bf16.mxu0 0
    %2127 = vmatpush1.bf16.msra.mxu0 %v2110
    %2128 = vmatprep.subr.bf16.mxu0 0
    %2129 = vmatpush1.bf16.msra.mxu0 %v2111
    %2130 = vmatprep.subr.bf16.mxu0 0
    %2131 = vmatpush1.bf16.msra.mxu0 0
    %2132 = vmatprep.subr.bf16.mxu0 0
    %2133 = vmatpush1.bf16.msra.mxu0 0
    %2134 = vmatprep.subr.bf16.mxu0 0
    %2135 = vmatpush1.bf16.msra.mxu0 0
    %2136 = vmatprep.subr.bf16.mxu0 0
    %2137 = vmatpush1.bf16.msra.mxu0 0
    %2138 = vmatprep.subr.bf16.mxu0 0
    %2139 = vmatpush1.bf16.msra.mxu0 0
    %2140 = vmatprep.subr.bf16.mxu0 0
    %2141 = vmatpush1.bf16.msra.mxu0 0
    %2142 = vmatprep.subr.bf16.mxu0 0
    %2143 = vmatpush1.bf16.msra.mxu0 0
    %2144 = vmatprep.subr.bf16.mxu0 0
    %2145 = vmatpush1.bf16.msra.mxu0 0
    %2146 = vmatprep.subr.bf16.mxu0 0
    %2147 = vmatpush1.bf16.msra.mxu0 0
    %2148 = vmatprep.subr.bf16.mxu0 0
    %2149 = vmatpush1.bf16.msra.mxu0 0
    %2150 = vmatprep.subr.bf16.mxu0 0
    %2151 = vmatpush1.bf16.msra.mxu0 0
    %2152 = vmatprep.subr.bf16.mxu0 0
    %2153 = vmatpush1.bf16.msra.mxu0 0
    %2154 = vmatprep.mubr.bf16.mxu0 0
    %2155 = vmatmul.mubr.bf16.gmra.mrb[0].mxu0 %v2117
    %v2156 = vpop.f32.mrb[0].mxu0
    %v2157 = vadd.f32 0.0, %v2156
    %v2158 = vpop.f32.mrb[0].mxu0
    %v2159 = vpop.f32.mrb[0].mxu0
    %v2160 = vadd.f32 0.0, %v2159
    %v2161 = vpop.f32.mrb[0].mxu0
    %2162 = vmatprep.mubr.bf16.mxu0 0
    %2163 = vmatmul.mubr.bf16.gmra.mrb[0].mxu0 %v2120
    %v2164 = vpop.f32.mrb[0].mxu0
    %v2165 = vadd.f32 0.0, %v2164
    %v2166 = vpop.f32.mrb[0].mxu0
    %v2167 = vpop.f32.mrb[0].mxu0
    %v2168 = vadd.f32 0.0, %v2167
    %v2169 = vpop.f32.mrb[0].mxu0
    %2170 = vdwg.mxu0
    %v2171 = vadd.f32 %v2060, %v2157
    %v2172 = vadd.f32 %v2061, %v2160
    %v2173 = vadd.f32 %v2062, %v2165
    %v2174 = vadd.f32 %v2063, %v2168
    %v2175 = vld [vmem:[#allocation2 + $0x19] sm:$0xf]
    %v2176 = vld [vmem:[#allocation2 + $0x3d] sm:$0xf]
    %v2178 = vrot.slane %v1757, 4
    %v2181 = vrot.slane %v2175, 4
    %v2184 = vrot.slane %v1761, 4
    %v2187 = vrot.slane %v2176, 4
    %v2189 = vsel %vm636, %v1756, %v2178
    %v2190 = vsel %vm636, %v1758, %v2181
    %v2191 = vsel %vm636, %v1760, %v2184
    %v2192 = vsel %vm636, %v1762, %v2187
    %v2193 = vpack.c.bf16 %v2190, %v2189
    %v2194 = vpack.c.bf16 %v2192, %v2191
    %v2195 = vld [vmem:[%s7 + $0x80] sm:$0xf]
    %v2196 = vld [vmem:[%s7 + $0x84] sm:$0xf]
    %v2197 = vld [vmem:[%s7 + $0x88] sm:$0xf]
    %v2198 = vld [vmem:[%s7 + $0x8c] sm:$0xf]
    %v2199 = vld [vmem:[%s7 + $0x90] sm:$0xf]
    %v2200 = vld [vmem:[%s7 + $0x94] sm:$0xf]
    %v2201 = vld [vmem:[%s7 + $0x98] sm:$0xf]
    %v2202 = vld [vmem:[%s7 + $0x9c] sm:$0xf]
    %v2211 = vunpack.c.l.b16 %v2195
    %v2212 = vunpack.c.l.b16 %v2196
    %v2213 = vunpack.c.l.b16 %v2197
    %v2214 = vunpack.c.l.b16 %v2198
    %v2215 = vunpack.c.l.b16 %v2199
    %v2216 = vunpack.c.l.b16 %v2200
    %v2217 = vunpack.c.l.b16 %v2201
    %v2218 = vunpack.c.l.b16 %v2202
    %v2219 = vpack.c.b16 %v2212, %v2211
    %v2220 = vpack.c.b16 %v2214, %v2213
    %v2221 = vpack.c.b16 %v2216, %v2215
    %v2222 = vpack.c.b16 %v2218, %v2217
    %v2228 = vsel %vm311, %v2193, 0
    %v2231 = vsel %vm311, %v2194, 0
    %2233 = vmatprep.subr.bf16.mxu0 0
    %2234 = vmatpush1.bf16.msra.mxu0 %v2219
    %2235 = vmatprep.subr.bf16.mxu0 0
    %2236 = vmatpush1.bf16.msra.mxu0 %v2220
    %2237 = vmatprep.subr.bf16.mxu0 0
    %2238 = vmatpush1.bf16.msra.mxu0 %v2221
    %2239 = vmatprep.subr.bf16.mxu0 0
    %2240 = vmatpush1.bf16.msra.mxu0 %v2222
    %2241 = vmatprep.subr.bf16.mxu0 0
    %2242 = vmatpush1.bf16.msra.mxu0 0
    %2243 = vmatprep.subr.bf16.mxu0 0
    %2244 = vmatpush1.bf16.msra.mxu0 0
    %2245 = vmatprep.subr.bf16.mxu0 0
    %2246 = vmatpush1.bf16.msra.mxu0 0
    %2247 = vmatprep.subr.bf16.mxu0 0
    %2248 = vmatpush1.bf16.msra.mxu0 0
    %2249 = vmatprep.subr.bf16.mxu0 0
    %2250 = vmatpush1.bf16.msra.mxu0 0
    %2251 = vmatprep.subr.bf16.mxu0 0
    %2252 = vmatpush1.bf16.msra.mxu0 0
    %2253 = vmatprep.subr.bf16.mxu0 0
    %2254 = vmatpush1.bf16.msra.mxu0 0
    %2255 = vmatprep.subr.bf16.mxu0 0
    %2256 = vmatpush1.bf16.msra.mxu0 0
    %2257 = vmatprep.subr.bf16.mxu0 0
    %2258 = vmatpush1.bf16.msra.mxu0 0
    %2259 = vmatprep.subr.bf16.mxu0 0
    %2260 = vmatpush1.bf16.msra.mxu0 0
    %2261 = vmatprep.subr.bf16.mxu0 0
    %2262 = vmatpush1.bf16.msra.mxu0 0
    %2263 = vmatprep.subr.bf16.mxu0 0
    %2264 = vmatpush1.bf16.msra.mxu0 0
    %2265 = vmatprep.mubr.bf16.mxu0 0
    %2266 = vmatmul.mubr.bf16.gmra.mrb[0].mxu0 %v2228
    %v2267 = vpop.f32.mrb[0].mxu0
    %v2268 = vadd.f32 0.0, %v2267
    %v2269 = vpop.f32.mrb[0].mxu0
    %v2270 = vpop.f32.mrb[0].mxu0
    %v2271 = vadd.f32 0.0, %v2270
    %v2272 = vpop.f32.mrb[0].mxu0
    %2273 = vmatprep.mubr.bf16.mxu0 0
    %2274 = vmatmul.mubr.bf16.gmra.mrb[0].mxu0 %v2231
    %v2275 = vpop.f32.mrb[0].mxu0
    %v2276 = vadd.f32 0.0, %v2275
    %v2277 = vpop.f32.mrb[0].mxu0
    %v2278 = vpop.f32.mrb[0].mxu0
    %v2279 = vadd.f32 0.0, %v2278
    %v2280 = vpop.f32.mrb[0].mxu0
    %2281 = vdwg.mxu0
    %v2282 = vadd.f32 %v2171, %v2268
    %v2283 = vadd.f32 %v2172, %v2271
    %v2284 = vadd.f32 %v2173, %v2276
    %v2285 = vadd.f32 %v2174, %v2279
    %v2286 = vld [vmem:[#allocation2 + $0x1a] sm:$0xf]
    %v2287 = vld [vmem:[#allocation2 + $0x3e] sm:$0xf]
    %v2289 = vrot.slane %v1949, 4
    %v2292 = vrot.slane %v2286, 4
    %v2295 = vrot.slane %v1953, 4
    %v2298 = vrot.slane %v2287, 4
    %v2300 = vsel %vm636, %v1948, %v2289
    %v2301 = vsel %vm636, %v1950, %v2292
    %v2302 = vsel %vm636, %v1952, %v2295
    %v2303 = vsel %vm636, %v1954, %v2298
    %v2304 = vpack.c.bf16 %v2301, %v2300
    %v2305 = vpack.c.bf16 %v2303, %v2302
    %v2306 = vld [vmem:[%s7 + $0xa0] sm:$0xf]
    %v2307 = vld [vmem:[%s7 + $0xa4] sm:$0xf]
    %v2308 = vld [vmem:[%s7 + $0xa8] sm:$0xf]
    %v2309 = vld [vmem:[%s7 + $0xac] sm:$0xf]
    %v2310 = vld [vmem:[%s7 + $0xb0] sm:$0xf]
    %v2311 = vld [vmem:[%s7 + $0xb4] sm:$0xf]
    %v2312 = vld [vmem:[%s7 + $0xb8] sm:$0xf]
    %v2313 = vld [vmem:[%s7 + $0xbc] sm:$0xf]
    %v2322 = vunpack.c.l.b16 %v2306
    %v2323 = vunpack.c.l.b16 %v2307
    %v2324 = vunpack.c.l.b16 %v2308
    %v2325 = vunpack.c.l.b16 %v2309
    %v2326 = vunpack.c.l.b16 %v2310
    %v2327 = vunpack.c.l.b16 %v2311
    %v2328 = vunpack.c.l.b16 %v2312
    %v2329 = vunpack.c.l.b16 %v2313
    %v2330 = vpack.c.b16 %v2323, %v2322
    %v2331 = vpack.c.b16 %v2325, %v2324
    %v2332 = vpack.c.b16 %v2327, %v2326
    %v2333 = vpack.c.b16 %v2329, %v2328
    %v2339 = vsel %vm311, %v2304, 0
    %v2342 = vsel %vm311, %v2305, 0
    %2344 = vmatprep.subr.bf16.mxu0 0
    %2345 = vmatpush1.bf16.msra.mxu0 %v2330
    %2346 = vmatprep.subr.bf16.mxu0 0
    %2347 = vmatpush1.bf16.msra.mxu0 %v2331
    %2348 = vmatprep.subr.bf16.mxu0 0
    %2349 = vmatpush1.bf16.msra.mxu0 %v2332
    %2350 = vmatprep.subr.bf16.mxu0 0
    %2351 = vmatpush1.bf16.msra.mxu0 %v2333
    %2352 = vmatprep.subr.bf16.mxu0 0
    %2353 = vmatpush1.bf16.msra.mxu0 0
    %2354 = vmatprep.subr.bf16.mxu0 0
    %2355 = vmatpush1.bf16.msra.mxu0 0
    %2356 = vmatprep.subr.bf16.mxu0 0
    %2357 = vmatpush1.bf16.msra.mxu0 0
    %2358 = vmatprep.subr.bf16.mxu0 0
    %2359 = vmatpush1.bf16.msra.mxu0 0
    %2360 = vmatprep.subr.bf16.mxu0 0
    %2361 = vmatpush1.bf16.msra.mxu0 0
    %2362 = vmatprep.subr.bf16.mxu0 0
    %2363 = vmatpush1.bf16.msra.mxu0 0
    %2364 = vmatprep.subr.bf16.mxu0 0
    %2365 = vmatpush1.bf16.msra.mxu0 0
    %2366 = vmatprep.subr.bf16.mxu0 0
    %2367 = vmatpush1.bf16.msra.mxu0 0
    %2368 = vmatprep.subr.bf16.mxu0 0
    %2369 = vmatpush1.bf16.msra.mxu0 0
    %2370 = vmatprep.subr.bf16.mxu0 0
    %2371 = vmatpush1.bf16.msra.mxu0 0
    %2372 = vmatprep.subr.bf16.mxu0 0
    %2373 = vmatpush1.bf16.msra.mxu0 0
    %2374 = vmatprep.subr.bf16.mxu0 0
    %2375 = vmatpush1.bf16.msra.mxu0 0
    %2376 = vmatprep.mubr.bf16.mxu0 0
    %2377 = vmatmul.mubr.bf16.gmra.mrb[0].mxu0 %v2339
    %v2378 = vpop.f32.mrb[0].mxu0
    %v2379 = vadd.f32 0.0, %v2378
    %v2380 = vpop.f32.mrb[0].mxu0
    %v2381 = vpop.f32.mrb[0].mxu0
    %v2382 = vadd.f32 0.0, %v2381
    %v2383 = vpop.f32.mrb[0].mxu0
    %2384 = vmatprep.mubr.bf16.mxu0 0
    %2385 = vmatmul.mubr.bf16.gmra.mrb[0].mxu0 %v2342
    %v2386 = vpop.f32.mrb[0].mxu0
    %v2387 = vadd.f32 0.0, %v2386
    %v2388 = vpop.f32.mrb[0].mxu0
    %v2389 = vpop.f32.mrb[0].mxu0
    %v2390 = vadd.f32 0.0, %v2389
    %v2391 = vpop.f32.mrb[0].mxu0
    %2392 = vdwg.mxu0
    %v2393 = vadd.f32 %v2282, %v2379
    %v2394 = vadd.f32 %v2283, %v2382
    %v2395 = vadd.f32 %v2284, %v2387
    %v2396 = vadd.f32 %v2285, %v2390
    %v2397 = vld [vmem:[#allocation2 + $0x1e] sm:$0xf]
    %v2398 = vld [vmem:[#allocation2 + $0x42] sm:$0xf]
    %v2400 = vrot.slane %v2397, 4
    %v2403 = vrot.slane %v2398, 4
    %v2405 = vsel %vm636, %v2064, %v2400
    %v2406 = vsel %vm636, %v2065, %v2403
    %v2407 = vpack.c.bf16 %v2405, %v1742
    %v2408 = vpack.c.bf16 %v2406, %v1744
    %v2409 = vld [vmem:[%s7 + $0xc0] sm:$0xf]
    %v2410 = vld [vmem:[%s7 + $0xc4] sm:$0xf]
    %v2411 = vld [vmem:[%s7 + $0xc8] sm:$0xf]
    %v2412 = vld [vmem:[%s7 + $0xcc] sm:$0xf]
    %v2413 = vld [vmem:[%s7 + $0xd0] sm:$0xf]
    %v2414 = vld [vmem:[%s7 + $0xd4] sm:$0xf]
    %v2415 = vld [vmem:[%s7 + $0xd8] sm:$0xf]
    %v2416 = vld [vmem:[%s7 + $0xdc] sm:$0xf]
    %v2425 = vunpack.c.l.b16 %v2409
    %v2426 = vunpack.c.l.b16 %v2410
    %v2427 = vunpack.c.l.b16 %v2411
    %v2428 = vunpack.c.l.b16 %v2412
    %v2429 = vunpack.c.l.b16 %v2413
    %v2430 = vunpack.c.l.b16 %v2414
    %v2431 = vunpack.c.l.b16 %v2415
    %v2432 = vunpack.c.l.b16 %v2416
    %v2433 = vpack.c.b16 %v2426, %v2425
    %v2434 = vpack.c.b16 %v2428, %v2427
    %v2435 = vpack.c.b16 %v2430, %v2429
    %v2436 = vpack.c.b16 %v2432, %v2431
    %v2442 = vsel %vm311, %v2407, 0
    %v2445 = vsel %vm311, %v2408, 0
    %2447 = vmatprep.subr.bf16.mxu0 0
    %2448 = vmatpush1.bf16.msra.mxu0 %v2433
    %2449 = vmatprep.subr.bf16.mxu0 0
    %2450 = vmatpush1.bf16.msra.mxu0 %v2434
    %2451 = vmatprep.subr.bf16.mxu0 0
    %2452 = vmatpush1.bf16.msra.mxu0 %v2435
    %2453 = vmatprep.subr.bf16.mxu0 0
    %2454 = vmatpush1.bf16.msra.mxu0 %v2436
    %2455 = vmatprep.subr.bf16.mxu0 0
    %2456 = vmatpush1.bf16.msra.mxu0 0
    %2457 = vmatprep.subr.bf16.mxu0 0
    %2458 = vmatpush1.bf16.msra.mxu0 0
    %2459 = vmatprep.subr.bf16.mxu0 0
    %2460 = vmatpush1.bf16.msra.mxu0 0
    %2461 = vmatprep.subr.bf16.mxu0 0
    %2462 = vmatpush1.bf16.msra.mxu0 0
    %2463 = vmatprep.subr.bf16.mxu0 0
    %2464 = vmatpush1.bf16.msra.mxu0 0
    %2465 = vmatprep.subr.bf16.mxu0 0
    %2466 = vmatpush1.bf16.msra.mxu0 0
    %2467 = vmatprep.subr.bf16.mxu0 0
    %2468 = vmatpush1.bf16.msra.mxu0 0
    %2469 = vmatprep.subr.bf16.mxu0 0
    %2470 = vmatpush1.bf16.msra.mxu0 0
    %2471 = vmatprep.subr.bf16.mxu0 0
    %2472 = vmatpush1.bf16.msra.mxu0 0
    %2473 = vmatprep.subr.bf16.mxu0 0
    %2474 = vmatpush1.bf16.msra.mxu0 0
    %2475 = vmatprep.subr.bf16.mxu0 0
    %2476 = vmatpush1.bf16.msra.mxu0 0
    %2477 = vmatprep.subr.bf16.mxu0 0
    %2478 = vmatpush1.bf16.msra.mxu0 0
    %2479 = vmatprep.mubr.bf16.mxu0 0
    %2480 = vmatmul.mubr.bf16.gmra.mrb[0].mxu0 %v2442
    %v2481 = vpop.f32.mrb[0].mxu0
    %v2482 = vadd.f32 0.0, %v2481
    %v2483 = vpop.f32.mrb[0].mxu0
    %v2484 = vpop.f32.mrb[0].mxu0
    %v2485 = vadd.f32 0.0, %v2484
    %v2486 = vpop.f32.mrb[0].mxu0
    %2487 = vmatprep.mubr.bf16.mxu0 0
    %2488 = vmatmul.mubr.bf16.gmra.mrb[0].mxu0 %v2445
    %v2489 = vpop.f32.mrb[0].mxu0
    %v2490 = vadd.f32 0.0, %v2489
    %v2491 = vpop.f32.mrb[0].mxu0
    %v2492 = vpop.f32.mrb[0].mxu0
    %v2493 = vadd.f32 0.0, %v2492
    %v2494 = vpop.f32.mrb[0].mxu0
    %2495 = vdwg.mxu0
    %v2496 = vadd.f32 %v2393, %v2482
    %v2497 = vadd.f32 %v2394, %v2485
    %v2498 = vadd.f32 %v2395, %v2490
    %v2499 = vadd.f32 %v2396, %v2493
    %v2500 = vld [vmem:[#allocation2 + $0x1f] sm:$0xf]
    %v2501 = vld [vmem:[#allocation2 + $0x43] sm:$0xf]
    %v2503 = vrot.slane %v2500, 4
    %v2506 = vrot.slane %v2501, 4
    %v2508 = vsel %vm636, %v2175, %v2503
    %v2509 = vsel %vm636, %v2176, %v2506
    %v2510 = vpack.c.bf16 %v2508, %v1776
    %v2511 = vpack.c.bf16 %v2509, %v1778
    %v2512 = vld [vmem:[%s7 + $0xe0] sm:$0xf]
    %v2513 = vld [vmem:[%s7 + $0xe4] sm:$0xf]
    %v2514 = vld [vmem:[%s7 + $0xe8] sm:$0xf]
    %v2515 = vld [vmem:[%s7 + $0xec] sm:$0xf]
    %v2516 = vld [vmem:[%s7 + $0xf0] sm:$0xf]
    %v2517 = vld [vmem:[%s7 + $0xf4] sm:$0xf]
    %v2518 = vld [vmem:[%s7 + $0xf8] sm:$0xf]
    %v2519 = vld [vmem:[%s7 + $0xfc] sm:$0xf]
    %v2528 = vunpack.c.l.b16 %v2512
    %v2529 = vunpack.c.l.b16 %v2513
    %v2530 = vunpack.c.l.b16 %v2514
    %v2531 = vunpack.c.l.b16 %v2515
    %v2532 = vunpack.c.l.b16 %v2516
    %v2533 = vunpack.c.l.b16 %v2517
    %v2534 = vunpack.c.l.b16 %v2518
    %v2535 = vunpack.c.l.b16 %v2519
    %v2536 = vpack.c.b16 %v2529, %v2528
    %v2537 = vpack.c.b16 %v2531, %v2530
    %v2538 = vpack.c.b16 %v2533, %v2532
    %v2539 = vpack.c.b16 %v2535, %v2534
    %v2545 = vsel %vm311, %v2510, 0
    %v2548 = vsel %vm311, %v2511, 0
    %2550 = vmatprep.subr.bf16.mxu0 0
    %2551 = vmatpush1.bf16.msra.mxu0 %v2536
    %2552 = vmatprep.subr.bf16.mxu0 0
    %2553 = vmatpush1.bf16.msra.mxu0 %v2537
    %2554 = vmatprep.subr.bf16.mxu0 0
    %2555 = vmatpush1.bf16.msra.mxu0 %v2538
    %2556 = vmatprep.subr.bf16.mxu0 0
    %2557 = vmatpush1.bf16.msra.mxu0 %v2539
    %2558 = vmatprep.subr.bf16.mxu0 0
    %2559 = vmatpush1.bf16.msra.mxu0 0
    %2560 = vmatprep.subr.bf16.mxu0 0
    %2561 = vmatpush1.bf16.msra.mxu0 0
    %2562 = vmatprep.subr.bf16.mxu0 0
    %2563 = vmatpush1.bf16.msra.mxu0 0
    %2564 = vmatprep.subr.bf16.mxu0 0
    %2565 = vmatpush1.bf16.msra.mxu0 0
    %2566 = vmatprep.subr.bf16.mxu0 0
    %2567 = vmatpush1.bf16.msra.mxu0 0
    %2568 = vmatprep.subr.bf16.mxu0 0
    %2569 = vmatpush1.bf16.msra.mxu0 0
    %2570 = vmatprep.subr.bf16.mxu0 0
    %2571 = vmatpush1.bf16.msra.mxu0 0
    %2572 = vmatprep.subr.bf16.mxu0 0
    %2573 = vmatpush1.bf16.msra.mxu0 0
    %2574 = vmatprep.subr.bf16.mxu0 0
    %2575 = vmatpush1.bf16.msra.mxu0 0
    %2576 = vmatprep.subr.bf16.mxu0 0
    %2577 = vmatpush1.bf16.msra.mxu0 0
    %2578 = vmatprep.subr.bf16.mxu0 0
    %2579 = vmatpush1.bf16.msra.mxu0 0
    %2580 = vmatprep.subr.bf16.mxu0 0
    %2581 = vmatpush1.bf16.msra.mxu0 0
    %2582 = vmatprep.mubr.bf16.mxu0 0
    %2583 = vmatmul.mubr.bf16.gmra.mrb[0].mxu0 %v2545
    %v2584 = vpop.f32.mrb[0].mxu0
    %v2585 = vadd.f32 0.0, %v2584
    %v2586 = vpop.f32.mrb[0].mxu0
    %v2587 = vpop.f32.mrb[0].mxu0
    %v2588 = vadd.f32 0.0, %v2587
    %v2589 = vpop.f32.mrb[0].mxu0
    %2590 = vmatprep.mubr.bf16.mxu0 0
    %2591 = vmatmul.mubr.bf16.gmra.mrb[0].mxu0 %v2548
    %v2592 = vpop.f32.mrb[0].mxu0
    %v2593 = vadd.f32 0.0, %v2592
    %v2594 = vpop.f32.mrb[0].mxu0
    %v2595 = vpop.f32.mrb[0].mxu0
    %v2596 = vadd.f32 0.0, %v2595
    %v2597 = vpop.f32.mrb[0].mxu0
    %2598 = vdwg.mxu0
    %v2599 = vadd.f32 %v2496, %v2585
    %v2600 = vadd.f32 %v2497, %v2588
    %v2601 = vadd.f32 %v2498, %v2593
    %v2602 = vadd.f32 %v2499, %v2596
    %v2603 = vld [vmem:[#allocation2 + $0x20] sm:$0xf]
    %v2604 = vld [vmem:[#allocation2 + $0x44] sm:$0xf]
    %v2606 = vrot.slane %v2603, 4
    %v2609 = vrot.slane %v2604, 4
    %v2611 = vsel %vm636, %v2286, %v2606
    %v2612 = vsel %vm636, %v2287, %v2609
    %v2613 = vpack.c.bf16 %v2611, %v1968
    %v2614 = vpack.c.bf16 %v2612, %v1970
    %v2615 = vld [vmem:[%s7 + $0x100] sm:$0xf]
    %v2616 = vld [vmem:[%s7 + $0x104] sm:$0xf]
    %v2617 = vld [vmem:[%s7 + $0x108] sm:$0xf]
    %v2618 = vld [vmem:[%s7 + $0x10c] sm:$0xf]
    %v2619 = vld [vmem:[%s7 + $0x110] sm:$0xf]
    %v2620 = vld [vmem:[%s7 + $0x114] sm:$0xf]
    %v2621 = vld [vmem:[%s7 + $0x118] sm:$0xf]
    %v2622 = vld [vmem:[%s7 + $0x11c] sm:$0xf]
    %v2631 = vunpack.c.l.b16 %v2615
    %v2632 = vunpack.c.l.b16 %v2616
    %v2633 = vunpack.c.l.b16 %v2617
    %v2634 = vunpack.c.l.b16 %v2618
    %v2635 = vunpack.c.l.b16 %v2619
    %v2636 = vunpack.c.l.b16 %v2620
    %v2637 = vunpack.c.l.b16 %v2621
    %v2638 = vunpack.c.l.b16 %v2622
    %v2639 = vpack.c.b16 %v2632, %v2631
    %v2640 = vpack.c.b16 %v2634, %v2633
    %v2641 = vpack.c.b16 %v2636, %v2635
    %v2642 = vpack.c.b16 %v2638, %v2637
    %v2648 = vsel %vm311, %v2613, 0
    %v2651 = vsel %vm311, %v2614, 0
    %2653 = vmatprep.subr.bf16.mxu0 0
    %2654 = vmatpush1.bf16.msra.mxu0 %v2639
    %2655 = vmatprep.subr.bf16.mxu0 0
    %2656 = vmatpush1.bf16.msra.mxu0 %v2640
    %2657 = vmatprep.subr.bf16.mxu0 0
    %2658 = vmatpush1.bf16.msra.mxu0 %v2641
    %2659 = vmatprep.subr.bf16.mxu0 0
    %2660 = vmatpush1.bf16.msra.mxu0 %v2642
    %2661 = vmatprep.subr.bf16.mxu0 0
    %2662 = vmatpush1.bf16.msra.mxu0 0
    %2663 = vmatprep.subr.bf16.mxu0 0
    %2664 = vmatpush1.bf16.msra.mxu0 0
    %2665 = vmatprep.subr.bf16.mxu0 0
    %2666 = vmatpush1.bf16.msra.mxu0 0
    %2667 = vmatprep.subr.bf16.mxu0 0
    %2668 = vmatpush1.bf16.msra.mxu0 0
    %2669 = vmatprep.subr.bf16.mxu0 0
    %2670 = vmatpush1.bf16.msra.mxu0 0
    %2671 = vmatprep.subr.bf16.mxu0 0
    %2672 = vmatpush1.bf16.msra.mxu0 0
    %2673 = vmatprep.subr.bf16.mxu0 0
    %2674 = vmatpush1.bf16.msra.mxu0 0
    %2675 = vmatprep.subr.bf16.mxu0 0
    %2676 = vmatpush1.bf16.msra.mxu0 0
    %2677 = vmatprep.subr.bf16.mxu0 0
    %2678 = vmatpush1.bf16.msra.mxu0 0
    %2679 = vmatprep.subr.bf16.mxu0 0
    %2680 = vmatpush1.bf16.msra.mxu0 0
    %2681 = vmatprep.subr.bf16.mxu0 0
    %2682 = vmatpush1.bf16.msra.mxu0 0
    %2683 = vmatprep.subr.bf16.mxu0 0
    %2684 = vmatpush1.bf16.msra.mxu0 0
    %2685 = vmatprep.mubr.bf16.mxu0 0
    %2686 = vmatmul.mubr.bf16.gmra.mrb[0].mxu0 %v2648
    %v2687 = vpop.f32.mrb[0].mxu0
    %v2688 = vadd.f32 0.0, %v2687
    %v2689 = vpop.f32.mrb[0].mxu0
    %v2690 = vpop.f32.mrb[0].mxu0
    %v2691 = vadd.f32 0.0, %v2690
    %v2692 = vpop.f32.mrb[0].mxu0
    %2693 = vmatprep.mubr.bf16.mxu0 0
    %2694 = vmatmul.mubr.bf16.gmra.mrb[0].mxu0 %v2651
    %v2695 = vpop.f32.mrb[0].mxu0
    %v2696 = vadd.f32 0.0, %v2695
    %v2697 = vpop.f32.mrb[0].mxu0
    %v2698 = vpop.f32.mrb[0].mxu0
    %v2699 = vadd.f32 0.0, %v2698
    %v2700 = vpop.f32.mrb[0].mxu0
    %2701 = vdwg.mxu0
    %v2702 = vadd.f32 %v2599, %v2688
    %v2703 = vadd.f32 %v2600, %v2691
    %v2704 = vadd.f32 %v2601, %v2696
    %v2705 = vadd.f32 %v2602, %v2699
    %v2706 = vsel %vm311, %v2702, 0.0
    %v2707 = vsel %vm311, %v2703, 0.0
    %v2708 = vadd.f32 %v2706, %v2707
    %v2709 = vsel %vm311, %v2704, 0.0
    %v2710 = vadd.f32 %v2708, %v2709
    %v2711 = vsel %vm311, %v2705, 0.0
    %v2712 = vadd.f32 %v2710, %v2711
    %v2713 = vrot.slane %v2712, 4
    %v2714 = vadd.f32 %v2712, %v2713
    %v2715 = vrot.slane %v2714, 2
    %v2716 = vadd.f32 %v2714, %v2715
    %v2717 = vrot.slane %v2716, 1
    %v2718 = vadd.f32 %v2716, %v2717
    %v2719 = vmul.f32 %v2718, 0.03125
    %v2720 = vmul.f32 %v2702, %v2702
    %v2721 = vmul.f32 %v2703, %v2703
    %v2722 = vmul.f32 %v2704, %v2704
    %v2723 = vmul.f32 %v2705, %v2705
    %v2724 = vsel %vm311, %v2720, 0.0
    %v2725 = vsel %vm311, %v2721, 0.0
    %v2726 = vadd.f32 %v2724, %v2725
    %v2727 = vsel %vm311, %v2722, 0.0
    %v2728 = vadd.f32 %v2726, %v2727
    %v2729 = vsel %vm311, %v2723, 0.0
    %v2730 = vadd.f32 %v2728, %v2729
    %v2731 = vrot.slane %v2730, 4
    %v2732 = vadd.f32 %v2730, %v2731
    %v2733 = vrot.slane %v2732, 2
    %v2734 = vadd.f32 %v2732, %v2733
    %v2735 = vrot.slane %v2734, 1
    %v2736 = vadd.f32 %v2734, %v2735
    %v2737 = vmul.f32 %v2736, 0.03125
    %v2738 = vmul.f32 %v2719, %v2719
    %v2739 = vsub.f32 %v2737, %v2738
    %v2740 = vld [vmem:[%s8] sm:$0x1]
    %v2741 = vmax.f32 %v2739, 0.0
    %v2742 = vadd.f32 %v2741, 1e-05
    %v2743 = vrsqrt.pop %v2742
    %v2744 = vmul.f32 %v2740, %v2743
    %v2745 = vsub.f32 %v2702, %v2719
    %v2746 = vsub.f32 %v2703, %v2719
    %v2747 = vsub.f32 %v2704, %v2719
    %v2748 = vsub.f32 %v2705, %v2719
    %v2750 = vlaneseq
    %v2751 = vshrl.u32 %v2750, 7
    %v2752 = vsub.s32 0, %v2751
    %v2753 = vrot.slane %v2744, %v2752
    %v2755 = vmul.f32 %v2745, %v2753
    %v2756 = vmul.f32 %v2746, %v2753
    %v2757 = vmul.f32 %v2747, %v2753
    %v2758 = vmul.f32 %v2748, %v2753
    %v2759 = vld [vmem:[%s9] sm:$0x1]
    %v2761 = vlaneseq
    %v2762 = vshrl.u32 %v2761, 7
    %v2763 = vsub.s32 0, %v2762
    %v2764 = vrot.slane %v2759, %v2763
    %v2766 = vadd.f32 %v2755, %v2764
    %v2767 = vadd.f32 %v2756, %v2764
    %v2768 = vadd.f32 %v2757, %v2764
    %v2769 = vadd.f32 %v2758, %v2764
    %v2770 = vadd.f32 %v2766, %v637
    %v2771 = vadd.f32 %v2767, %v638
    %v2772 = vadd.f32 %v2768, %v639
    %v2773 = vadd.f32 %v2769, %v640
    %v2774 = vmax.f32 %v2770, 0.0
    %v2775 = vmax.f32 %v2771, 0.0
    %v2776 = vmax.f32 %v2772, 0.0
    %v2777 = vmax.f32 %v2773, 0.0
    %2778 = vst.msk [vmem:[#allocation3] sm:$0xff] %vm311, %v2774
    %2779 = vst.msk [vmem:[#allocation3 + $0x8] sm:$0xff] %vm311, %v2775
    %2780 = vst.msk [vmem:[#allocation3 + $0x10] sm:$0xff] %vm311, %v2776
    %2781 = vst.msk [vmem:[#allocation3 + $0x18] sm:$0xff] %vm311, %v2777
    // Predicated region
    $region42: #{forward.1} parent=1 // pred_check
      _
    $region43: #{forward.1} parent=1 // pred_check_branch
      %2783 = sbr.rel (0) target = $region45
    $region44: #{forward.1} parent=1 // pred_region
      %s2785 = ssub.s32 512, 512
      %2786 = vsyncadd [#allocation4], %s2785
      %s2787 = sshll.u32 [#allocation3], 4
      %s2788 = int_to_ptr.vmem [resolvable:$true] %s2787
      %2793 = dma.vmem_to_hbm [thread:$0]  %s2788, 512, %s10, [#allocation4], 128, 128, 8
    $region45: #{forward.1} parent=1 // pred_fallthru
      _
    // Predicated region
    $region46: #{forward.1} parent=1 // pred_check
      _
    $region47: #{forward.1} parent=1 // pred_check_branch
      %2795 = sbr.rel (0) target = $region49
    $region48: #{forward.1} parent=1 // pred_region
      %2796 = dma.done [#allocation4], 512
    $region49: #{forward.1} parent=1 // pred_fallthru
      _
    %2797 = vsyncpa [#allocation4], 1

</llo_original>
